<compile_context>
chip_gen: v6e
topology: v6e:2x2x1
jax: 0.10.0
libtpu: 0.0.40
codegen_flags: <defaults>
</compile_context>

<pallas_src>
import functools

import jax
import jax.numpy as jnp
from jax.experimental import pallas as pl
from jax.experimental.pallas import tpu as pltpu

LN_EPS = 1e-5

# Kernel-side parameter order. All entries except pred_* are stacked over layers
# (leading NL axis) and streamed one layer slab per grid step.
PARAM_ORDER = (
    "sa_qkv_w", "sa_qkv_b", "sa_o_w", "sa_o_b",
    "ca_q_w", "ca_q_b", "ca_kv_w", "ca_kv_b", "ca_o_w", "ca_o_b",
    "ln1_g", "ln1_b", "ln2_g", "ln2_b", "ln3_g", "ln3_b",
    "ff_w1", "ff_b1", "ff_w2", "ff_b2",
    "pred_w", "pred_b",
)


# ---------------------------------------------------------------------------
# Kernel-side math helpers (all statistics / normalization in f32)
# ---------------------------------------------------------------------------
def _layer_norm(y, g, b):
    mu = jnp.mean(y, axis=-1, keepdims=True)
    var = jnp.mean(jnp.square(y - mu), axis=-1, keepdims=True)
    return (y - mu) * jax.lax.rsqrt(var + LN_EPS) * g + b


def _softmax_approx(s):
    # s is f32; pl.reciprocal(approx=True) uses the EUP slot (nearly free).
    m = jnp.max(s, axis=-1, keepdims=True)
    e = jnp.exp(s - m)
    return e * pl.reciprocal(jnp.sum(e, axis=-1, keepdims=True), approx=True)


def _attn_core(q, k, v, o_w, o_b, mask, num_head):
    """Scaled-dot attention on already-projected q/k/v (f32), one batch element.

    q: (T, E) pre-scaled by 1/sqrt(dh) host-side; k, v: (S, E).
    Score/context matmuls stay per-head (tiny); the output projection is a
    single lane-dense (T,E)x(E,E) bf16 matmul on the concatenated context.
    """
    E = q.shape[-1]
    dh = E // num_head
    q16 = q.astype(jnp.bfloat16)
    k16 = k.astype(jnp.bfloat16)
    v16 = v.astype(jnp.bfloat16)
    ctx_heads = []
    for h in range(num_head):
        qh = q16[:, h * dh:(h + 1) * dh]          # (T, dh)
        kh = k16[:, h * dh:(h + 1) * dh]          # (S, dh)
        vh = v16[:, h * dh:(h + 1) * dh]          # (S, dh)
        # q @ k^T without materializing a transposed copy of k.
        s = jax.lax.dot_general(qh, kh, (((1,), (1,)), ((), ())),
                                preferred_element_type=jnp.float32)   # (T, S)
        if mask is not None:
            s = s + mask                           # f32 mask add
        p = _softmax_approx(s)                     # f32 probabilities
        ctx_heads.append(jnp.dot(p.astype(jnp.bfloat16), vh,
                                 preferred_element_type=jnp.float32))  # (T, dh)
    ctx = jnp.concatenate(ctx_heads, axis=-1).astype(jnp.bfloat16)     # (T, E)
    return jnp.dot(ctx, o_w, preferred_element_type=jnp.float32) + o_b


# ---------------------------------------------------------------------------
# Fused kernel: one (batch, layer) grid step == one full decoder layer.
# Predictor matmul is applied on the last layer step only.
# ---------------------------------------------------------------------------
def fused_dec_head_kernel(x_ref, mem_ref,
                          sa_qkv_w, sa_qkv_b, sa_o_w, sa_o_b,
                          ca_q_w, ca_q_b, ca_kv_w, ca_kv_b, ca_o_w, ca_o_b,
                          ln1_g, ln1_b, ln2_g, ln2_b, ln3_g, ln3_b,
                          ff_w1, ff_b1, ff_w2, ff_b2,
                          pred_w, pred_b,
                          out_ref, xb_scratch, *, num_head):
    layer = pl.program_id(1)
    T = x_ref.shape[1]
    E = x_ref.shape[2]

    @pl.when(layer == 0)
    def _():  # (re)initialize the residual-stream carry for this batch element
        xb_scratch[...] = x_ref[0].astype(jnp.float32)

    xb = xb_scratch[...]                         # (T, E) f32 residual stream
    mb16 = mem_ref[0].astype(jnp.bfloat16)       # (S, E) bf16 MXU operand

    # Causal mask, f32 (bf16 -1e30 would overflow/flush and corrupt masked rows).
    row = jax.lax.broadcasted_iota(jnp.int32, (T, T), 0)
    col = jax.lax.broadcasted_iota(jnp.int32, (T, T), 1)
    causal = jnp.where(col > row, jnp.float32(-1e30), jnp.float32(0.0))

    # ---- self-attention: ONE fused (T,E)x(E,3E) QKV matmul (q pre-scaled) ----
    xb16 = xb.astype(jnp.bfloat16)
    qkv = jnp.dot(xb16, sa_qkv_w[0],
                  preferred_element_type=jnp.float32) + sa_qkv_b[0]   # (T, 3E)
    sa = _attn_core(qkv[:, :E], qkv[:, E:2 * E], qkv[:, 2 * E:],
                    sa_o_w[0], sa_o_b[0], causal, num_head)
    xb = _layer_norm(xb + sa, ln1_g[0], ln1_b[0])

    # ---- cross-attention over encoder memory (fused KV matmul) ----
    xb16 = xb.astype(jnp.bfloat16)
    q = jnp.dot(xb16, ca_q_w[0],
                preferred_element_type=jnp.float32) + ca_q_b[0]       # (T, E)
    kv = jnp.dot(mb16, ca_kv_w[0],
                 preferred_element_type=jnp.float32) + ca_kv_b[0]     # (S, 2E)
    ca = _attn_core(q, kv[:, :E], kv[:, E:], ca_o_w[0], ca_o_b[0],
                    None, num_head)
    xb = _layer_norm(xb + ca, ln2_g[0], ln2_b[0])

    # ---- ReLU feed-forward ----
    xb16 = xb.astype(jnp.bfloat16)
    h1 = jnp.maximum(
        jnp.dot(xb16, ff_w1[0], preferred_element_type=jnp.float32) + ff_b1[0],
        0.0)
    ff = jnp.dot(h1.astype(jnp.bfloat16), ff_w2[0],
                 preferred_element_type=jnp.float32) + ff_b2[0]
    xb = _layer_norm(xb + ff, ln3_g[0], ln3_b[0])

    xb_scratch[...] = xb                          # carry to the next layer step

    # ---- predictor on the final layer (lane-dense, 128-padded vocab) ----
    @pl.when(layer == pl.num_programs(1) - 1)
    def _():
        logits = jnp.dot(xb.astype(jnp.bfloat16), pred_w[...],
                         preferred_element_type=jnp.float32) + pred_b[...]
        out_ref[0] = logits.astype(out_ref.dtype)


def fused_forward_pallas(x, memory, kp, num_head):
    B, T, E = x.shape
    S = memory.shape[1]
    Vp = kp["pred_w"].shape[1]
    num_layer = kp["ff_w1"].shape[0]
    plist = [kp[k] for k in PARAM_ORDER]

    def param_spec(name, p):
        if name.startswith("pred"):
            nd = p.ndim                       # constant index -> fetched once
            return pl.BlockSpec(p.shape, lambda b, l, nd=nd: (0,) * nd)
        blk = (1,) + p.shape[1:]              # one layer slab, streamed over l
        pad = (0,) * (p.ndim - 1)
        return pl.BlockSpec(blk, lambda b, l, pad=pad: (l,) + pad)

    grid_spec = pltpu.PrefetchScalarGridSpec(
        num_scalar_prefetch=0,
        # Batch axis parallel (feeds both v7x TensorCores when B>=2; with B==1
        # one core idles -- split T/batch halves if that case matters).
        # Layer axis arbitrary (sequential carry through xb_scratch).
        grid=(B, num_layer),
        in_specs=[pl.BlockSpec((1, T, E), lambda b, l: (b, 0, 0)),
                  pl.BlockSpec((1, S, E), lambda b, l: (b, 0, 0))]
                 + [param_spec(n, p) for n, p in zip(PARAM_ORDER, plist)],
        out_specs=pl.BlockSpec((1, T, Vp), lambda b, l: (b, 0, 0)),
        scratch_shapes=[pltpu.VMEM((T, E), jnp.float32)],
    )
    return pl.pallas_call(
        functools.partial(fused_dec_head_kernel, num_head=num_head),
        out_shape=jax.ShapeDtypeStruct((B, T, Vp), x.dtype),
        grid_spec=grid_spec,
        compiler_params=pltpu.CompilerParams(
            dimension_semantics=("parallel", "arbitrary"),
            vmem_limit_bytes=48 * 1024 * 1024),
    )(x, memory, *plist)


# ---------------------------------------------------------------------------
# Host-side parameter preparation: run ONCE and cache the resulting pytree.
# All transposes / fusions / scale folding / padding happen here, not per step.
# ---------------------------------------------------------------------------
def prepare_kernel_params(params, num_head, lane=128):
    E = params["layers"][0]["sa_out_w"].shape[0]
    dh = E // num_head
    scale = 1.0 / float(dh) ** 0.5

    per = {k: [] for k in PARAM_ORDER if not k.startswith("pred")}
    for lp in params["layers"]:
        # self-attention: fused lane-dense QKV (q part pre-scaled by 1/sqrt(dh))
        w, b = lp["sa_in_w"], lp["sa_in_b"]
        wq, wk, wv = w[:E], w[E:2 * E], w[2 * E:]
        bq, bk, bv = b[:E], b[E:2 * E], b[2 * E:]
        per["sa_qkv_w"].append(
            jnp.concatenate([wq.T * scale, wk.T, wv.T], axis=1))   # (E, 3E)
        per["sa_qkv_b"].append(
            jnp.concatenate([bq * scale, bk, bv]).reshape(1, 3 * E))
        per["sa_o_w"].append(lp["sa_out_w"].T)                     # (E, E)
        per["sa_o_b"].append(lp["sa_out_b"].reshape(1, E))
        # cross-attention: q from the target stream, fused kv from memory
        w, b = lp["ca_in_w"], lp["ca_in_b"]
        wq, wk, wv = w[:E], w[E:2 * E], w[2 * E:]
        bq, bk, bv = b[:E], b[E:2 * E], b[2 * E:]
        per["ca_q_w"].append(wq.T * scale)                         # (E, E)
        per["ca_q_b"].append((bq * scale).reshape(1, E))
        per["ca_kv_w"].append(jnp.concatenate([wk.T, wv.T], axis=1))  # (E, 2E)
        per["ca_kv_b"].append(jnp.concatenate([bk, bv]).reshape(1, 2 * E))
        per["ca_o_w"].append(lp["ca_out_w"].T)
        per["ca_o_b"].append(lp["ca_out_b"].reshape(1, E))
        for i in (1, 2, 3):
            per[f"ln{i}_g"].append(lp[f"ln{i}_g"].reshape(1, E))
            per[f"ln{i}_b"].append(lp[f"ln{i}_b"].reshape(1, E))
        per["ff_w1"].append(lp["ff_w1"].T)                         # (E, F)
        per["ff_b1"].append(lp["ff_b1"].reshape(1, -1))
        per["ff_w2"].append(lp["ff_w2"].T)                         # (F, E)
        per["ff_b2"].append(lp["ff_b2"].reshape(1, E))

    kp = {}
    for k, v in per.items():
        arr = jnp.stack(v)
        # Matmul weights in bf16 (native MXU input); biases / LN gains in f32.
        kp[k] = arr.astype(jnp.bfloat16 if k.endswith("_w") else jnp.float32)

    # Predictor: transpose, pad vocab to a lane-dense multiple of 128.
    V = params["pred_w"].shape[0]
    Vp = ((V + lane - 1) // lane) * lane
    pw = jnp.zeros((E, Vp), jnp.float32).at[:, :V].set(params["pred_w"].T)
    pb = jnp.zeros((1, Vp), jnp.float32).at[:, :V].set(params["pred_b"][None])
    kp["pred_w"] = pw.astype(jnp.bfloat16)
    kp["pred_b"] = pb
    return kp


# ---------------------------------------------------------------------------
# Module forward (training path of TorchTFDecHead.forward); takes the CACHED
# prepared kernel params (prep is not re-run per call).
# ---------------------------------------------------------------------------
def torch_tf_dec_head_forward(kparams, x, x_seq, memory, num_head, vocab_size):
    o_seqs = x_seq[:, 1:]
    h = x[:, :-1]                                   # drop last target position
    logits_padded = fused_forward_pallas(h, memory, kparams, num_head)
    logits = logits_padded[..., :vocab_size]        # strip lane padding
    return logits, o_seqs, None, {}


# ---------------------------------------------------------------------------
# Pure-JAX reference (independent math: torch-layout f32 weights, exact softmax)
# ---------------------------------------------------------------------------
def _layer_norm_ref(y, g, b):
    mu = jnp.mean(y, axis=-1, keepdims=True)
    var = jnp.mean(jnp.square(y - mu), axis=-1, keepdims=True)
    return (y - mu) * jax.lax.rsqrt(var + LN_EPS) * g + b


def _softmax_ref(s):
    m = jnp.max(s, axis=-1, keepdims=True)
    e = jnp.exp(s - m)
    return e / jnp.sum(e, axis=-1, keepdims=True)


def _mha_ref(q_in, kv_in, in_w, in_b, out_w, out_b, num_head, causal):
    E = q_in.shape[-1]
    dh = E // num_head
    wq, wk, wv = in_w[0:E], in_w[E:2 * E], in_w[2 * E:3 * E]
    bq, bk, bv = in_b[0:E], in_b[E:2 * E], in_b[2 * E:3 * E]
    q = q_in @ wq.T + bq
    k = kv_in @ wk.T + bk
    v = kv_in @ wv.T + bv
    Tq, Tk = q.shape[0], k.shape[0]
    scale = 1.0 / (float(dh) ** 0.5)
    if causal:
        row = jax.lax.broadcasted_iota(jnp.int32, (Tq, Tk), 0)
        col = jax.lax.broadcasted_iota(jnp.int32, (Tq, Tk), 1)
        neg = jnp.where(col > row, jnp.float32(-1e30), jnp.float32(0.0))
    heads = []
    for h in range(num_head):
        qh = q[:, h * dh:(h + 1) * dh]
        kh = k[:, h * dh:(h + 1) * dh]
        vh = v[:, h * dh:(h + 1) * dh]
        s = (qh @ kh.T) * scale
        if causal:
            s = s + neg
        heads.append(_softmax_ref(s) @ vh)
    o = jnp.concatenate(heads, axis=-1)
    return o @ out_w.T + out_b


def _decoder_layer_ref(xb, mb, lp, num_head):
    sa = _mha_ref(xb, xb, lp["sa_in_w"], lp["sa_in_b"], lp["sa_out_w"],
                  lp["sa_out_b"], num_head, causal=True)
    xb = _layer_norm_ref(xb + sa, lp["ln1_g"], lp["ln1_b"])
    ca = _mha_ref(xb, mb, lp["ca_in_w"], lp["ca_in_b"], lp["ca_out_w"],
                  lp["ca_out_b"], num_head, causal=False)
    xb = _layer_norm_ref(xb + ca, lp["ln2_g"], lp["ln2_b"])
    hh = jnp.maximum(xb @ lp["ff_w1"].T + lp["ff_b1"], 0.0)
    ff = hh @ lp["ff_w2"].T + lp["ff_b2"]
    return _layer_norm_ref(xb + ff, lp["ln3_g"], lp["ln3_b"])


def reference_forward(params, x, x_seq, memory, num_head):
    o_seqs = x_seq[:, 1:]
    outs = []
    for b in range(x.shape[0]):
        xb = x[b, :-1].astype(jnp.float32)
        mb = memory[b].astype(jnp.float32)
        for lp in params["layers"]:
            xb = _decoder_layer_ref(xb, mb, lp, num_head)
        outs.append(xb @ params["pred_w"].T + params["pred_b"])
    return jnp.stack(outs), o_seqs, None, {}


# ---------------------------------------------------------------------------
# Deterministic parameter init (shapes match the PyTorch module's __init__)
# ---------------------------------------------------------------------------
def init_params(key, m_dim, f_dim, vocab_size, num_layer, w_scale=0.08):
    def w(k, shape, s):
        return jax.random.normal(k, shape, jnp.float32) * s

    layers = []
    for _ in range(num_layer):
        key, *ks = jax.random.split(key, 19)
        layers.append({
            "sa_in_w": w(ks[0], (3 * m_dim, m_dim), w_scale),
            "sa_in_b": w(ks[1], (3 * m_dim,), 0.02),
            "sa_out_w": w(ks[2], (m_dim, m_dim), w_scale),
            "sa_out_b": w(ks[3], (m_dim,), 0.02),
            "ca_in_w": w(ks[4], (3 * m_dim, m_dim), w_scale),
            "ca_in_b": w(ks[5], (3 * m_dim,), 0.02),
            "ca_out_w": w(ks[6], (m_dim, m_dim), w_scale),
            "ca_out_b": w(ks[7], (m_dim,), 0.02),
            "ln1_g": 1.0 + w(ks[8], (m_dim,), 0.05),
            "ln1_b": w(ks[9], (m_dim,), 0.02),
            "ln2_g": 1.0 + w(ks[10], (m_dim,), 0.05),
            "ln2_b": w(ks[11], (m_dim,), 0.02),
            "ln3_g": 1.0 + w(ks[12], (m_dim,), 0.05),
            "ln3_b": w(ks[13], (m_dim,), 0.02),
            "ff_w1": w(ks[14], (f_dim, m_dim), w_scale),
            "ff_b1": w(ks[15], (f_dim,), 0.02),
            "ff_w2": w(ks[16], (m_dim, f_dim), w_scale),
            "ff_b2": w(ks[17], (m_dim,), 0.02),
        })
    key, kpw, kpb = jax.random.split(key, 3)
    return {
        "layers": layers,
        "pred_w": w(kpw, (vocab_size, m_dim), w_scale),  # nn.Linear(m_dim, V)
        "pred_b": w(kpb, (vocab_size,), 0.02),
    }


if __name__ == "__main__":
    # cfg: m_dim=32, num_head=4, f_dim=64, num_layer=2, block_size >= L-1,
    #      activation='relu', t_dropout=0.0, norm_first=False; vocab size 16.
    B, L, S = 2, 8, 6
    m_dim, num_head, f_dim, num_layer = 32, 4, 64, 2
    vocab_size = 16

    key = jax.random.PRNGKey(0)
    kx, ks, km, kp = jax.random.split(key, 4)
    x = jax.random.normal(kx, (B, L, m_dim), jnp.float32)          # tgt embeds
    x_seq = jax.random.randint(ks, (B, L), 0, vocab_size)          # token ids
    memory = jax.random.normal(km, (B, S, m_dim), jnp.float32)     # enc memory
    params = init_params(kp, m_dim, f_dim, vocab_size, num_layer)

    # One-time (cached) host-side weight prep -- NOT re-run per forward call.
    kernel_params = prepare_kernel_params(params, num_head)

    logits, o_seqs, _, _ = torch_tf_dec_head_forward(
        kernel_params, x, x_seq, memory, num_head, vocab_size)
    logits = jax.block_until_ready(logits)

    ref_logits, ref_o, _, _ = reference_forward(
        params, x, x_seq, memory, num_head)

    assert logits.shape == (B, L - 1, vocab_size), logits.shape
    assert o_seqs.shape == (B, L - 1), o_seqs.shape
    assert jnp.array_equal(o_seqs, ref_o)
    # bf16 MXU operands vs. f32 reference -> allow ~1% of the logit scale.
    max_ref = float(jnp.max(jnp.abs(ref_logits)))
    max_err = float(jnp.max(jnp.abs(logits - ref_logits)))
    assert max_err <= 1e-2 + 1e-2 * max_ref, (max_err, max_ref)
    print("KERNEL_OK")
</pallas_src>

<mosaic_0001>
module attributes {stable_mosaic.version = 11 : i64} {
  func.func @fused_dec_head_kernel(%arg0: i32, %arg1: i32, %arg2: memref<1x7x32xf32, #tpu.memory_space<vmem>>, %arg3: memref<1x6x32xf32, #tpu.memory_space<vmem>>, %arg4: memref<1x32x96xbf16, #tpu.memory_space<vmem>>, %arg5: memref<1x1x96xf32, #tpu.memory_space<vmem>>, %arg6: memref<1x32x32xbf16, #tpu.memory_space<vmem>>, %arg7: memref<1x1x32xf32, #tpu.memory_space<vmem>>, %arg8: memref<1x32x32xbf16, #tpu.memory_space<vmem>>, %arg9: memref<1x1x32xf32, #tpu.memory_space<vmem>>, %arg10: memref<1x32x64xbf16, #tpu.memory_space<vmem>>, %arg11: memref<1x1x64xf32, #tpu.memory_space<vmem>>, %arg12: memref<1x32x32xbf16, #tpu.memory_space<vmem>>, %arg13: memref<1x1x32xf32, #tpu.memory_space<vmem>>, %arg14: memref<1x1x32xf32, #tpu.memory_space<vmem>>, %arg15: memref<1x1x32xf32, #tpu.memory_space<vmem>>, %arg16: memref<1x1x32xf32, #tpu.memory_space<vmem>>, %arg17: memref<1x1x32xf32, #tpu.memory_space<vmem>>, %arg18: memref<1x1x32xf32, #tpu.memory_space<vmem>>, %arg19: memref<1x1x32xf32, #tpu.memory_space<vmem>>, %arg20: memref<1x32x64xf32, #tpu.memory_space<vmem>>, %arg21: memref<1x1x64xf32, #tpu.memory_space<vmem>>, %arg22: memref<1x64x32xf32, #tpu.memory_space<vmem>>, %arg23: memref<1x1x32xf32, #tpu.memory_space<vmem>>, %arg24: memref<32x128xbf16, #tpu.memory_space<vmem>>, %arg25: memref<1x128xf32, #tpu.memory_space<vmem>>, %arg26: memref<1x7x128xf32, #tpu.memory_space<vmem>>, %arg27: memref<7x32xf32, #tpu.memory_space<vmem>>) attributes {dimension_semantics = [#tpu.dimension_semantics<parallel>, #tpu.dimension_semantics<arbitrary>], iteration_bounds = array<i64: 2, 2>, scalar_prefetch = 0 : i64, scratch_operands = 1 : i64, tpu.core_type = #tpu.core_type<tc>, window_params = [{transform_indices = @transform_0, window_bounds = array<i64: 1, 7, 32>}, {transform_indices = @transform_1, window_bounds = array<i64: 1, 6, 32>}, {transform_indices = @transform_2, window_bounds = array<i64: 1, 32, 96>}, {transform_indices = @transform_3, window_bounds = array<i64: 1, 1, 96>}, {transform_indices = @transform_4, window_bounds = array<i64: 1, 32, 32>}, {transform_indices = @transform_5, window_bounds = array<i64: 1, 1, 32>}, {transform_indices = @transform_6, window_bounds = array<i64: 1, 32, 32>}, {transform_indices = @transform_7, window_bounds = array<i64: 1, 1, 32>}, {transform_indices = @transform_8, window_bounds = array<i64: 1, 32, 64>}, {transform_indices = @transform_9, window_bounds = array<i64: 1, 1, 64>}, {transform_indices = @transform_10, window_bounds = array<i64: 1, 32, 32>}, {transform_indices = @transform_11, window_bounds = array<i64: 1, 1, 32>}, {transform_indices = @transform_12, window_bounds = array<i64: 1, 1, 32>}, {transform_indices = @transform_13, window_bounds = array<i64: 1, 1, 32>}, {transform_indices = @transform_14, window_bounds = array<i64: 1, 1, 32>}, {transform_indices = @transform_15, window_bounds = array<i64: 1, 1, 32>}, {transform_indices = @transform_16, window_bounds = array<i64: 1, 1, 32>}, {transform_indices = @transform_17, window_bounds = array<i64: 1, 1, 32>}, {transform_indices = @transform_18, window_bounds = array<i64: 1, 32, 64>}, {transform_indices = @transform_19, window_bounds = array<i64: 1, 1, 64>}, {transform_indices = @transform_20, window_bounds = array<i64: 1, 64, 32>}, {transform_indices = @transform_21, window_bounds = array<i64: 1, 1, 32>}, {pipeline_mode = #tpu.pipeline_mode<synchronous>, transform_indices = @transform_22, window_bounds = array<i64: 32, 128>}, {pipeline_mode = #tpu.pipeline_mode<synchronous>, transform_indices = @transform_23, window_bounds = array<i64: 1, 128>}, {transform_indices = @transform_24, window_bounds = array<i64: 1, 7, 128>}]} {
    %c0_i32 = arith.constant 0 : i32
    %0 = arith.cmpi eq, %arg1, %c0_i32 : i32
    %1 = arith.extui %0 : i1 to i32
    %c0_i32_0 = arith.constant 0 : i32
    %2 = arith.cmpi ne, %1, %c0_i32_0 : i32
    scf.if %2 {
      %c0_124 = arith.constant 0 : index
      %c0_125 = arith.constant 0 : index
      %c0_126 = arith.constant 0 : index
      %300 = vector.load %arg2[%c0_124, %c0_125, %c0_126] : memref<1x7x32xf32, #tpu.memory_space<vmem>>, vector<1x7x32xf32>
      %301 = vector.shape_cast %300 : vector<1x7x32xf32> to vector<7x32xf32>
      %c0_127 = arith.constant 0 : index
      %c0_128 = arith.constant 0 : index
      %302 = vector.load %arg27[%c0_127, %c0_128] : memref<7x32xf32, #tpu.memory_space<vmem>>, vector<7x32xf32>
      tpu.vector_store %arg27[%c0_127, %c0_128], %301 {strides = array<i32>} : memref<7x32xf32, #tpu.memory_space<vmem>>, vector<7x32xf32>,
    } else {
    }
    %c0 = arith.constant 0 : index
    %c0_1 = arith.constant 0 : index
    %3 = vector.load %arg27[%c0, %c0_1] : memref<7x32xf32, #tpu.memory_space<vmem>>, vector<7x32xf32>
    %c0_2 = arith.constant 0 : index
    %c0_3 = arith.constant 0 : index
    %c0_4 = arith.constant 0 : index
    %4 = vector.load %arg3[%c0_2, %c0_3, %c0_4] : memref<1x6x32xf32, #tpu.memory_space<vmem>>, vector<1x6x32xf32>
    %5 = vector.shape_cast %4 : vector<1x6x32xf32> to vector<6x32xf32>
    %6 = arith.truncf %5 : vector<6x32xf32> to vector<6x32xbf16>
    %7 = tpu.iota {dimensions = array<i32: 0>} : vector<7x7xi32>
    %8 = tpu.iota {dimensions = array<i32: 1>} : vector<7x7xi32>
    %9 = arith.cmpi sgt, %8, %7 : vector<7x7xi32>
    %cst = arith.constant -1.000000e+30 : f32
    %cst_5 = arith.constant 0.000000e+00 : f32
    %10 = vector.broadcast %cst : f32 to vector<7x7xf32>
    %11 = vector.broadcast %cst_5 : f32 to vector<7x7xf32>
    %12 = arith.select %9, %10, %11 : vector<7x7xi1>, vector<7x7xf32>
    %13 = arith.truncf %3 : vector<7x32xf32> to vector<7x32xbf16>
    %c0_6 = arith.constant 0 : index
    %c0_7 = arith.constant 0 : index
    %c0_8 = arith.constant 0 : index
    %14 = vector.load %arg4[%c0_6, %c0_7, %c0_8] : memref<1x32x96xbf16, #tpu.memory_space<vmem>>, vector<1x32x96xbf16>
    %15 = vector.shape_cast %14 : vector<1x32x96xbf16> to vector<32x96xbf16>
    %cst_9 = arith.constant dense<0.000000e+00> : vector<7x96xf32>
    %16 = tpu.matmul %13, %15, %cst_9 {dimension_numbers = #tpu.dot_dimension_numbers<[1], [0], [0], [1], [0, 0, 1, 1], [], []>} : vector<7x32xbf16>, vector<32x96xbf16>, vector<7x96xf32> -> vector<7x96xf32>
    %c0_10 = arith.constant 0 : index
    %c0_11 = arith.constant 0 : index
    %c0_12 = arith.constant 0 : index
    %17 = vector.load %arg5[%c0_10, %c0_11, %c0_12] : memref<1x1x96xf32, #tpu.memory_space<vmem>>, vector<1x1x96xf32>
    %18 = vector.shape_cast %17 : vector<1x1x96xf32> to vector<1x96xf32>
    %19 = vector.broadcast %18 : vector<1x96xf32> to vector<7x96xf32>
    %20 = arith.addf %16, %19 : vector<7x96xf32>
    %21 = vector.extract_strided_slice %20 {offsets = [0, 0], sizes = [7, 32], strides = [1, 1]} : vector<7x96xf32> to vector<7x32xf32>
    %22 = vector.extract_strided_slice %20 {offsets = [0, 32], sizes = [7, 32], strides = [1, 1]} : vector<7x96xf32> to vector<7x32xf32>
    %23 = vector.extract_strided_slice %20 {offsets = [0, 64], sizes = [7, 32], strides = [1, 1]} : vector<7x96xf32> to vector<7x32xf32>
    %c0_13 = arith.constant 0 : index
    %c0_14 = arith.constant 0 : index
    %c0_15 = arith.constant 0 : index
    %24 = vector.load %arg6[%c0_13, %c0_14, %c0_15] : memref<1x32x32xbf16, #tpu.memory_space<vmem>>, vector<1x32x32xbf16>
    %25 = vector.shape_cast %24 : vector<1x32x32xbf16> to vector<32x32xbf16>
    %c0_16 = arith.constant 0 : index
    %c0_17 = arith.constant 0 : index
    %c0_18 = arith.constant 0 : index
    %26 = vector.load %arg7[%c0_16, %c0_17, %c0_18] : memref<1x1x32xf32, #tpu.memory_space<vmem>>, vector<1x1x32xf32>
    %27 = vector.shape_cast %26 : vector<1x1x32xf32> to vector<1x32xf32>
    %28 = arith.truncf %21 : vector<7x32xf32> to vector<7x32xbf16>
    %29 = arith.truncf %22 : vector<7x32xf32> to vector<7x32xbf16>
    %30 = arith.truncf %23 : vector<7x32xf32> to vector<7x32xbf16>
    %31 = vector.extract_strided_slice %28 {offsets = [0, 0], sizes = [7, 8], strides = [1, 1]} : vector<7x32xbf16> to vector<7x8xbf16>
    %32 = vector.extract_strided_slice %29 {offsets = [0, 0], sizes = [7, 8], strides = [1, 1]} : vector<7x32xbf16> to vector<7x8xbf16>
    %33 = vector.extract_strided_slice %30 {offsets = [0, 0], sizes = [7, 8], strides = [1, 1]} : vector<7x32xbf16> to vector<7x8xbf16>
    %cst_19 = arith.constant dense<0.000000e+00> : vector<7x7xf32>
    %34 = tpu.matmul %31, %32, %cst_19 {dimension_numbers = #tpu.dot_dimension_numbers<[1], [1], [0], [0], [0, 0, 1, 0], [], []>} : vector<7x8xbf16>, vector<7x8xbf16>, vector<7x7xf32> -> vector<7x7xf32>
    %35 = arith.addf %34, %12 : vector<7x7xf32>
    %cst_20 = arith.constant dense<0xFF800000> : vector<7xf32>
    %36 = vector.multi_reduction <maximumf>, %35, %cst_20 [1] : vector<7x7xf32> to vector<7xf32>
    %37 = vector.shape_cast %36 : vector<7xf32> to vector<7x1xf32>
    %38 = vector.broadcast %37 : vector<7x1xf32> to vector<7x7xf32>
    %39 = arith.subf %35, %38 : vector<7x7xf32>
    %40 = math.exp %39 : vector<7x7xf32>
    %cst_21 = arith.constant dense<0.000000e+00> : vector<7xf32>
    %41 = vector.multi_reduction <add>, %40, %cst_21 [1] : vector<7x7xf32> to vector<7xf32>
    %42 = vector.shape_cast %41 : vector<7xf32> to vector<7x1xf32>
    %43 = tpu.reciprocal %42 {approx = true} : vector<7x1xf32> -> vector<7x1xf32>
    %44 = vector.broadcast %43 : vector<7x1xf32> to vector<7x7xf32>
    %45 = arith.mulf %40, %44 : vector<7x7xf32>
    %46 = arith.truncf %45 : vector<7x7xf32> to vector<7x7xbf16>
    %cst_22 = arith.constant dense<0.000000e+00> : vector<7x8xf32>
    %47 = tpu.matmul %46, %33, %cst_22 {dimension_numbers = #tpu.dot_dimension_numbers<[1], [0], [0], [1], [0, 0, 1, 1], [], []>} : vector<7x7xbf16>, vector<7x8xbf16>, vector<7x8xf32> -> vector<7x8xf32>
    %48 = vector.extract_strided_slice %28 {offsets = [0, 8], sizes = [7, 8], strides = [1, 1]} : vector<7x32xbf16> to vector<7x8xbf16>
    %49 = vector.extract_strided_slice %29 {offsets = [0, 8], sizes = [7, 8], strides = [1, 1]} : vector<7x32xbf16> to vector<7x8xbf16>
    %50 = vector.extract_strided_slice %30 {offsets = [0, 8], sizes = [7, 8], strides = [1, 1]} : vector<7x32xbf16> to vector<7x8xbf16>
    %cst_23 = arith.constant dense<0.000000e+00> : vector<7x7xf32>
    %51 = tpu.matmul %48, %49, %cst_23 {dimension_numbers = #tpu.dot_dimension_numbers<[1], [1], [0], [0], [0, 0, 1, 0], [], []>} : vector<7x8xbf16>, vector<7x8xbf16>, vector<7x7xf32> -> vector<7x7xf32>
    %52 = arith.addf %51, %12 : vector<7x7xf32>
    %cst_24 = arith.constant dense<0xFF800000> : vector<7xf32>
    %53 = vector.multi_reduction <maximumf>, %52, %cst_24 [1] : vector<7x7xf32> to vector<7xf32>
    %54 = vector.shape_cast %53 : vector<7xf32> to vector<7x1xf32>
    %55 = vector.broadcast %54 : vector<7x1xf32> to vector<7x7xf32>
    %56 = arith.subf %52, %55 : vector<7x7xf32>
    %57 = math.exp %56 : vector<7x7xf32>
    %cst_25 = arith.constant dense<0.000000e+00> : vector<7xf32>
    %58 = vector.multi_reduction <add>, %57, %cst_25 [1] : vector<7x7xf32> to vector<7xf32>
    %59 = vector.shape_cast %58 : vector<7xf32> to vector<7x1xf32>
    %60 = tpu.reciprocal %59 {approx = true} : vector<7x1xf32> -> vector<7x1xf32>
    %61 = vector.broadcast %60 : vector<7x1xf32> to vector<7x7xf32>
    %62 = arith.mulf %57, %61 : vector<7x7xf32>
    %63 = arith.truncf %62 : vector<7x7xf32> to vector<7x7xbf16>
    %cst_26 = arith.constant dense<0.000000e+00> : vector<7x8xf32>
    %64 = tpu.matmul %63, %50, %cst_26 {dimension_numbers = #tpu.dot_dimension_numbers<[1], [0], [0], [1], [0, 0, 1, 1], [], []>} : vector<7x7xbf16>, vector<7x8xbf16>, vector<7x8xf32> -> vector<7x8xf32>
    %65 = vector.extract_strided_slice %28 {offsets = [0, 16], sizes = [7, 8], strides = [1, 1]} : vector<7x32xbf16> to vector<7x8xbf16>
    %66 = vector.extract_strided_slice %29 {offsets = [0, 16], sizes = [7, 8], strides = [1, 1]} : vector<7x32xbf16> to vector<7x8xbf16>
    %67 = vector.extract_strided_slice %30 {offsets = [0, 16], sizes = [7, 8], strides = [1, 1]} : vector<7x32xbf16> to vector<7x8xbf16>
    %cst_27 = arith.constant dense<0.000000e+00> : vector<7x7xf32>
    %68 = tpu.matmul %65, %66, %cst_27 {dimension_numbers = #tpu.dot_dimension_numbers<[1], [1], [0], [0], [0, 0, 1, 0], [], []>} : vector<7x8xbf16>, vector<7x8xbf16>, vector<7x7xf32> -> vector<7x7xf32>
    %69 = arith.addf %68, %12 : vector<7x7xf32>
    %cst_28 = arith.constant dense<0xFF800000> : vector<7xf32>
    %70 = vector.multi_reduction <maximumf>, %69, %cst_28 [1] : vector<7x7xf32> to vector<7xf32>
    %71 = vector.shape_cast %70 : vector<7xf32> to vector<7x1xf32>
    %72 = vector.broadcast %71 : vector<7x1xf32> to vector<7x7xf32>
    %73 = arith.subf %69, %72 : vector<7x7xf32>
    %74 = math.exp %73 : vector<7x7xf32>
    %cst_29 = arith.constant dense<0.000000e+00> : vector<7xf32>
    %75 = vector.multi_reduction <add>, %74, %cst_29 [1] : vector<7x7xf32> to vector<7xf32>
    %76 = vector.shape_cast %75 : vector<7xf32> to vector<7x1xf32>
    %77 = tpu.reciprocal %76 {approx = true} : vector<7x1xf32> -> vector<7x1xf32>
    %78 = vector.broadcast %77 : vector<7x1xf32> to vector<7x7xf32>
    %79 = arith.mulf %74, %78 : vector<7x7xf32>
    %80 = arith.truncf %79 : vector<7x7xf32> to vector<7x7xbf16>
    %cst_30 = arith.constant dense<0.000000e+00> : vector<7x8xf32>
    %81 = tpu.matmul %80, %67, %cst_30 {dimension_numbers = #tpu.dot_dimension_numbers<[1], [0], [0], [1], [0, 0, 1, 1], [], []>} : vector<7x7xbf16>, vector<7x8xbf16>, vector<7x8xf32> -> vector<7x8xf32>
    %82 = vector.extract_strided_slice %28 {offsets = [0, 24], sizes = [7, 8], strides = [1, 1]} : vector<7x32xbf16> to vector<7x8xbf16>
    %83 = vector.extract_strided_slice %29 {offsets = [0, 24], sizes = [7, 8], strides = [1, 1]} : vector<7x32xbf16> to vector<7x8xbf16>
    %84 = vector.extract_strided_slice %30 {offsets = [0, 24], sizes = [7, 8], strides = [1, 1]} : vector<7x32xbf16> to vector<7x8xbf16>
    %cst_31 = arith.constant dense<0.000000e+00> : vector<7x7xf32>
    %85 = tpu.matmul %82, %83, %cst_31 {dimension_numbers = #tpu.dot_dimension_numbers<[1], [1], [0], [0], [0, 0, 1, 0], [], []>} : vector<7x8xbf16>, vector<7x8xbf16>, vector<7x7xf32> -> vector<7x7xf32>
    %86 = arith.addf %85, %12 : vector<7x7xf32>
    %cst_32 = arith.constant dense<0xFF800000> : vector<7xf32>
    %87 = vector.multi_reduction <maximumf>, %86, %cst_32 [1] : vector<7x7xf32> to vector<7xf32>
    %88 = vector.shape_cast %87 : vector<7xf32> to vector<7x1xf32>
    %89 = vector.broadcast %88 : vector<7x1xf32> to vector<7x7xf32>
    %90 = arith.subf %86, %89 : vector<7x7xf32>
    %91 = math.exp %90 : vector<7x7xf32>
    %cst_33 = arith.constant dense<0.000000e+00> : vector<7xf32>
    %92 = vector.multi_reduction <add>, %91, %cst_33 [1] : vector<7x7xf32> to vector<7xf32>
    %93 = vector.shape_cast %92 : vector<7xf32> to vector<7x1xf32>
    %94 = tpu.reciprocal %93 {approx = true} : vector<7x1xf32> -> vector<7x1xf32>
    %95 = vector.broadcast %94 : vector<7x1xf32> to vector<7x7xf32>
    %96 = arith.mulf %91, %95 : vector<7x7xf32>
    %97 = arith.truncf %96 : vector<7x7xf32> to vector<7x7xbf16>
    %cst_34 = arith.constant dense<0.000000e+00> : vector<7x8xf32>
    %98 = tpu.matmul %97, %84, %cst_34 {dimension_numbers = #tpu.dot_dimension_numbers<[1], [0], [0], [1], [0, 0, 1, 1], [], []>} : vector<7x7xbf16>, vector<7x8xbf16>, vector<7x8xf32> -> vector<7x8xf32>
    %99 = tpu.concatenate %47, %64, %81, %98 in 1 : vector<7x8xf32>, vector<7x8xf32>, vector<7x8xf32>, vector<7x8xf32> -> vector<7x32xf32>
    %100 = arith.truncf %99 : vector<7x32xf32> to vector<7x32xbf16>
    %cst_35 = arith.constant dense<0.000000e+00> : vector<7x32xf32>
    %101 = tpu.matmul %100, %25, %cst_35 {dimension_numbers = #tpu.dot_dimension_numbers<[1], [0], [0], [1], [0, 0, 1, 1], [], []>} : vector<7x32xbf16>, vector<32x32xbf16>, vector<7x32xf32> -> vector<7x32xf32>
    %102 = vector.broadcast %27 : vector<1x32xf32> to vector<7x32xf32>
    %103 = arith.addf %101, %102 : vector<7x32xf32>
    %104 = arith.addf %3, %103 : vector<7x32xf32>
    %c0_36 = arith.constant 0 : index
    %c0_37 = arith.constant 0 : index
    %c0_38 = arith.constant 0 : index
    %105 = vector.load %arg14[%c0_36, %c0_37, %c0_38] : memref<1x1x32xf32, #tpu.memory_space<vmem>>, vector<1x1x32xf32>
    %106 = vector.shape_cast %105 : vector<1x1x32xf32> to vector<1x32xf32>
    %c0_39 = arith.constant 0 : index
    %c0_40 = arith.constant 0 : index
    %c0_41 = arith.constant 0 : index
    %107 = vector.load %arg15[%c0_39, %c0_40, %c0_41] : memref<1x1x32xf32, #tpu.memory_space<vmem>>, vector<1x1x32xf32>
    %108 = vector.shape_cast %107 : vector<1x1x32xf32> to vector<1x32xf32>
    %cst_42 = arith.constant dense<0.000000e+00> : vector<7xf32>
    %109 = vector.multi_reduction <add>, %104, %cst_42 [1] : vector<7x32xf32> to vector<7xf32>
    %110 = vector.shape_cast %109 : vector<7xf32> to vector<7x1xf32>
    %cst_43 = arith.constant 3.200000e+01 : f32
    %111 = vector.broadcast %cst_43 : f32 to vector<7x1xf32>
    %112 = arith.divf %110, %111 : vector<7x1xf32>
    %113 = vector.broadcast %112 : vector<7x1xf32> to vector<7x32xf32>
    %114 = arith.subf %104, %113 : vector<7x32xf32>
    %115 = arith.mulf %114, %114 : vector<7x32xf32>
    %cst_44 = arith.constant dense<0.000000e+00> : vector<7xf32>
    %116 = vector.multi_reduction <add>, %115, %cst_44 [1] : vector<7x32xf32> to vector<7xf32>
    %117 = vector.shape_cast %116 : vector<7xf32> to vector<7x1xf32>
    %cst_45 = arith.constant 3.200000e+01 : f32
    %118 = vector.broadcast %cst_45 : f32 to vector<7x1xf32>
    %119 = arith.divf %117, %118 : vector<7x1xf32>
    %120 = vector.broadcast %112 : vector<7x1xf32> to vector<7x32xf32>
    %121 = arith.subf %104, %120 : vector<7x32xf32>
    %cst_46 = arith.constant 9.99999974E-6 : f32
    %122 = vector.broadcast %cst_46 : f32 to vector<7x1xf32>
    %123 = arith.addf %119, %122 : vector<7x1xf32>
    %124 = math.rsqrt %123 : vector<7x1xf32>
    %125 = vector.broadcast %124 : vector<7x1xf32> to vector<7x32xf32>
    %126 = arith.mulf %121, %125 : vector<7x32xf32>
    %127 = vector.broadcast %106 : vector<1x32xf32> to vector<7x32xf32>
    %128 = arith.mulf %126, %127 : vector<7x32xf32>
    %129 = vector.broadcast %108 : vector<1x32xf32> to vector<7x32xf32>
    %130 = arith.addf %128, %129 : vector<7x32xf32>
    %131 = arith.truncf %130 : vector<7x32xf32> to vector<7x32xbf16>
    %c0_47 = arith.constant 0 : index
    %c0_48 = arith.constant 0 : index
    %c0_49 = arith.constant 0 : index
    %132 = vector.load %arg8[%c0_47, %c0_48, %c0_49] : memref<1x32x32xbf16, #tpu.memory_space<vmem>>, vector<1x32x32xbf16>
    %133 = vector.shape_cast %132 : vector<1x32x32xbf16> to vector<32x32xbf16>
    %cst_50 = arith.constant dense<0.000000e+00> : vector<7x32xf32>
    %134 = tpu.matmul %131, %133, %cst_50 {dimension_numbers = #tpu.dot_dimension_numbers<[1], [0], [0], [1], [0, 0, 1, 1], [], []>} : vector<7x32xbf16>, vector<32x32xbf16>, vector<7x32xf32> -> vector<7x32xf32>
    %c0_51 = arith.constant 0 : index
    %c0_52 = arith.constant 0 : index
    %c0_53 = arith.constant 0 : index
    %135 = vector.load %arg9[%c0_51, %c0_52, %c0_53] : memref<1x1x32xf32, #tpu.memory_space<vmem>>, vector<1x1x32xf32>
    %136 = vector.shape_cast %135 : vector<1x1x32xf32> to vector<1x32xf32>
    %137 = vector.broadcast %136 : vector<1x32xf32> to vector<7x32xf32>
    %138 = arith.addf %134, %137 : vector<7x32xf32>
    %c0_54 = arith.constant 0 : index
    %c0_55 = arith.constant 0 : index
    %c0_56 = arith.constant 0 : index
    %139 = vector.load %arg10[%c0_54, %c0_55, %c0_56] : memref<1x32x64xbf16, #tpu.memory_space<vmem>>, vector<1x32x64xbf16>
    %140 = vector.shape_cast %139 : vector<1x32x64xbf16> to vector<32x64xbf16>
    %cst_57 = arith.constant dense<0.000000e+00> : vector<6x64xf32>
    %141 = tpu.matmul %6, %140, %cst_57 {dimension_numbers = #tpu.dot_dimension_numbers<[1], [0], [0], [1], [0, 0, 1, 1], [], []>} : vector<6x32xbf16>, vector<32x64xbf16>, vector<6x64xf32> -> vector<6x64xf32>
    %c0_58 = arith.constant 0 : index
    %c0_59 = arith.constant 0 : index
    %c0_60 = arith.constant 0 : index
    %142 = vector.load %arg11[%c0_58, %c0_59, %c0_60] : memref<1x1x64xf32, #tpu.memory_space<vmem>>, vector<1x1x64xf32>
    %143 = vector.shape_cast %142 : vector<1x1x64xf32> to vector<1x64xf32>
    %144 = vector.broadcast %143 : vector<1x64xf32> to vector<6x64xf32>
    %145 = arith.addf %141, %144 : vector<6x64xf32>
    %146 = vector.extract_strided_slice %145 {offsets = [0, 0], sizes = [6, 32], strides = [1, 1]} : vector<6x64xf32> to vector<6x32xf32>
    %147 = vector.extract_strided_slice %145 {offsets = [0, 32], sizes = [6, 32], strides = [1, 1]} : vector<6x64xf32> to vector<6x32xf32>
    %c0_61 = arith.constant 0 : index
    %c0_62 = arith.constant 0 : index
    %c0_63 = arith.constant 0 : index
    %148 = vector.load %arg12[%c0_61, %c0_62, %c0_63] : memref<1x32x32xbf16, #tpu.memory_space<vmem>>, vector<1x32x32xbf16>
    %149 = vector.shape_cast %148 : vector<1x32x32xbf16> to vector<32x32xbf16>
    %c0_64 = arith.constant 0 : index
    %c0_65 = arith.constant 0 : index
    %c0_66 = arith.constant 0 : index
    %150 = vector.load %arg13[%c0_64, %c0_65, %c0_66] : memref<1x1x32xf32, #tpu.memory_space<vmem>>, vector<1x1x32xf32>
    %151 = vector.shape_cast %150 : vector<1x1x32xf32> to vector<1x32xf32>
    %152 = arith.truncf %138 : vector<7x32xf32> to vector<7x32xbf16>
    %153 = arith.truncf %146 : vector<6x32xf32> to vector<6x32xbf16>
    %154 = arith.truncf %147 : vector<6x32xf32> to vector<6x32xbf16>
    %155 = vector.extract_strided_slice %152 {offsets = [0, 0], sizes = [7, 8], strides = [1, 1]} : vector<7x32xbf16> to vector<7x8xbf16>
    %156 = vector.extract_strided_slice %153 {offsets = [0, 0], sizes = [6, 8], strides = [1, 1]} : vector<6x32xbf16> to vector<6x8xbf16>
    %157 = vector.extract_strided_slice %154 {offsets = [0, 0], sizes = [6, 8], strides = [1, 1]} : vector<6x32xbf16> to vector<6x8xbf16>
    %cst_67 = arith.constant dense<0.000000e+00> : vector<7x6xf32>
    %158 = tpu.matmul %155, %156, %cst_67 {dimension_numbers = #tpu.dot_dimension_numbers<[1], [1], [0], [0], [0, 0, 1, 0], [], []>} : vector<7x8xbf16>, vector<6x8xbf16>, vector<7x6xf32> -> vector<7x6xf32>
    %cst_68 = arith.constant dense<0xFF800000> : vector<7xf32>
    %159 = vector.multi_reduction <maximumf>, %158, %cst_68 [1] : vector<7x6xf32> to vector<7xf32>
    %160 = vector.shape_cast %159 : vector<7xf32> to vector<7x1xf32>
    %161 = vector.broadcast %160 : vector<7x1xf32> to vector<7x6xf32>
    %162 = arith.subf %158, %161 : vector<7x6xf32>
    %163 = math.exp %162 : vector<7x6xf32>
    %cst_69 = arith.constant dense<0.000000e+00> : vector<7xf32>
    %164 = vector.multi_reduction <add>, %163, %cst_69 [1] : vector<7x6xf32> to vector<7xf32>
    %165 = vector.shape_cast %164 : vector<7xf32> to vector<7x1xf32>
    %166 = tpu.reciprocal %165 {approx = true} : vector<7x1xf32> -> vector<7x1xf32>
    %167 = vector.broadcast %166 : vector<7x1xf32> to vector<7x6xf32>
    %168 = arith.mulf %163, %167 : vector<7x6xf32>
    %169 = arith.truncf %168 : vector<7x6xf32> to vector<7x6xbf16>
    %cst_70 = arith.constant dense<0.000000e+00> : vector<7x8xf32>
    %170 = tpu.matmul %169, %157, %cst_70 {dimension_numbers = #tpu.dot_dimension_numbers<[1], [0], [0], [1], [0, 0, 1, 1], [], []>} : vector<7x6xbf16>, vector<6x8xbf16>, vector<7x8xf32> -> vector<7x8xf32>
    %171 = vector.extract_strided_slice %152 {offsets = [0, 8], sizes = [7, 8], strides = [1, 1]} : vector<7x32xbf16> to vector<7x8xbf16>
    %172 = vector.extract_strided_slice %153 {offsets = [0, 8], sizes = [6, 8], strides = [1, 1]} : vector<6x32xbf16> to vector<6x8xbf16>
    %173 = vector.extract_strided_slice %154 {offsets = [0, 8], sizes = [6, 8], strides = [1, 1]} : vector<6x32xbf16> to vector<6x8xbf16>
    %cst_71 = arith.constant dense<0.000000e+00> : vector<7x6xf32>
    %174 = tpu.matmul %171, %172, %cst_71 {dimension_numbers = #tpu.dot_dimension_numbers<[1], [1], [0], [0], [0, 0, 1, 0], [], []>} : vector<7x8xbf16>, vector<6x8xbf16>, vector<7x6xf32> -> vector<7x6xf32>
    %cst_72 = arith.constant dense<0xFF800000> : vector<7xf32>
    %175 = vector.multi_reduction <maximumf>, %174, %cst_72 [1] : vector<7x6xf32> to vector<7xf32>
    %176 = vector.shape_cast %175 : vector<7xf32> to vector<7x1xf32>
    %177 = vector.broadcast %176 : vector<7x1xf32> to vector<7x6xf32>
    %178 = arith.subf %174, %177 : vector<7x6xf32>
    %179 = math.exp %178 : vector<7x6xf32>
    %cst_73 = arith.constant dense<0.000000e+00> : vector<7xf32>
    %180 = vector.multi_reduction <add>, %179, %cst_73 [1] : vector<7x6xf32> to vector<7xf32>
    %181 = vector.shape_cast %180 : vector<7xf32> to vector<7x1xf32>
    %182 = tpu.reciprocal %181 {approx = true} : vector<7x1xf32> -> vector<7x1xf32>
    %183 = vector.broadcast %182 : vector<7x1xf32> to vector<7x6xf32>
    %184 = arith.mulf %179, %183 : vector<7x6xf32>
    %185 = arith.truncf %184 : vector<7x6xf32> to vector<7x6xbf16>
    %cst_74 = arith.constant dense<0.000000e+00> : vector<7x8xf32>
    %186 = tpu.matmul %185, %173, %cst_74 {dimension_numbers = #tpu.dot_dimension_numbers<[1], [0], [0], [1], [0, 0, 1, 1], [], []>} : vector<7x6xbf16>, vector<6x8xbf16>, vector<7x8xf32> -> vector<7x8xf32>
    %187 = vector.extract_strided_slice %152 {offsets = [0, 16], sizes = [7, 8], strides = [1, 1]} : vector<7x32xbf16> to vector<7x8xbf16>
    %188 = vector.extract_strided_slice %153 {offsets = [0, 16], sizes = [6, 8], strides = [1, 1]} : vector<6x32xbf16> to vector<6x8xbf16>
    %189 = vector.extract_strided_slice %154 {offsets = [0, 16], sizes = [6, 8], strides = [1, 1]} : vector<6x32xbf16> to vector<6x8xbf16>
    %cst_75 = arith.constant dense<0.000000e+00> : vector<7x6xf32>
    %190 = tpu.matmul %187, %188, %cst_75 {dimension_numbers = #tpu.dot_dimension_numbers<[1], [1], [0], [0], [0, 0, 1, 0], [], []>} : vector<7x8xbf16>, vector<6x8xbf16>, vector<7x6xf32> -> vector<7x6xf32>
    %cst_76 = arith.constant dense<0xFF800000> : vector<7xf32>
    %191 = vector.multi_reduction <maximumf>, %190, %cst_76 [1] : vector<7x6xf32> to vector<7xf32>
    %192 = vector.shape_cast %191 : vector<7xf32> to vector<7x1xf32>
    %193 = vector.broadcast %192 : vector<7x1xf32> to vector<7x6xf32>
    %194 = arith.subf %190, %193 : vector<7x6xf32>
    %195 = math.exp %194 : vector<7x6xf32>
    %cst_77 = arith.constant dense<0.000000e+00> : vector<7xf32>
    %196 = vector.multi_reduction <add>, %195, %cst_77 [1] : vector<7x6xf32> to vector<7xf32>
    %197 = vector.shape_cast %196 : vector<7xf32> to vector<7x1xf32>
    %198 = tpu.reciprocal %197 {approx = true} : vector<7x1xf32> -> vector<7x1xf32>
    %199 = vector.broadcast %198 : vector<7x1xf32> to vector<7x6xf32>
    %200 = arith.mulf %195, %199 : vector<7x6xf32>
    %201 = arith.truncf %200 : vector<7x6xf32> to vector<7x6xbf16>
    %cst_78 = arith.constant dense<0.000000e+00> : vector<7x8xf32>
    %202 = tpu.matmul %201, %189, %cst_78 {dimension_numbers = #tpu.dot_dimension_numbers<[1], [0], [0], [1], [0, 0, 1, 1], [], []>} : vector<7x6xbf16>, vector<6x8xbf16>, vector<7x8xf32> -> vector<7x8xf32>
    %203 = vector.extract_strided_slice %152 {offsets = [0, 24], sizes = [7, 8], strides = [1, 1]} : vector<7x32xbf16> to vector<7x8xbf16>
    %204 = vector.extract_strided_slice %153 {offsets = [0, 24], sizes = [6, 8], strides = [1, 1]} : vector<6x32xbf16> to vector<6x8xbf16>
    %205 = vector.extract_strided_slice %154 {offsets = [0, 24], sizes = [6, 8], strides = [1, 1]} : vector<6x32xbf16> to vector<6x8xbf16>
    %cst_79 = arith.constant dense<0.000000e+00> : vector<7x6xf32>
    %206 = tpu.matmul %203, %204, %cst_79 {dimension_numbers = #tpu.dot_dimension_numbers<[1], [1], [0], [0], [0, 0, 1, 0], [], []>} : vector<7x8xbf16>, vector<6x8xbf16>, vector<7x6xf32> -> vector<7x6xf32>
    %cst_80 = arith.constant dense<0xFF800000> : vector<7xf32>
    %207 = vector.multi_reduction <maximumf>, %206, %cst_80 [1] : vector<7x6xf32> to vector<7xf32>
    %208 = vector.shape_cast %207 : vector<7xf32> to vector<7x1xf32>
    %209 = vector.broadcast %208 : vector<7x1xf32> to vector<7x6xf32>
    %210 = arith.subf %206, %209 : vector<7x6xf32>
    %211 = math.exp %210 : vector<7x6xf32>
    %cst_81 = arith.constant dense<0.000000e+00> : vector<7xf32>
    %212 = vector.multi_reduction <add>, %211, %cst_81 [1] : vector<7x6xf32> to vector<7xf32>
    %213 = vector.shape_cast %212 : vector<7xf32> to vector<7x1xf32>
    %214 = tpu.reciprocal %213 {approx = true} : vector<7x1xf32> -> vector<7x1xf32>
    %215 = vector.broadcast %214 : vector<7x1xf32> to vector<7x6xf32>
    %216 = arith.mulf %211, %215 : vector<7x6xf32>
    %217 = arith.truncf %216 : vector<7x6xf32> to vector<7x6xbf16>
    %cst_82 = arith.constant dense<0.000000e+00> : vector<7x8xf32>
    %218 = tpu.matmul %217, %205, %cst_82 {dimension_numbers = #tpu.dot_dimension_numbers<[1], [0], [0], [1], [0, 0, 1, 1], [], []>} : vector<7x6xbf16>, vector<6x8xbf16>, vector<7x8xf32> -> vector<7x8xf32>
    %219 = tpu.concatenate %170, %186, %202, %218 in 1 : vector<7x8xf32>, vector<7x8xf32>, vector<7x8xf32>, vector<7x8xf32> -> vector<7x32xf32>
    %220 = arith.truncf %219 : vector<7x32xf32> to vector<7x32xbf16>
    %cst_83 = arith.constant dense<0.000000e+00> : vector<7x32xf32>
    %221 = tpu.matmul %220, %149, %cst_83 {dimension_numbers = #tpu.dot_dimension_numbers<[1], [0], [0], [1], [0, 0, 1, 1], [], []>} : vector<7x32xbf16>, vector<32x32xbf16>, vector<7x32xf32> -> vector<7x32xf32>
    %222 = vector.broadcast %151 : vector<1x32xf32> to vector<7x32xf32>
    %223 = arith.addf %221, %222 : vector<7x32xf32>
    %224 = arith.addf %130, %223 : vector<7x32xf32>
    %c0_84 = arith.constant 0 : index
    %c0_85 = arith.constant 0 : index
    %c0_86 = arith.constant 0 : index
    %225 = vector.load %arg16[%c0_84, %c0_85, %c0_86] : memref<1x1x32xf32, #tpu.memory_space<vmem>>, vector<1x1x32xf32>
    %226 = vector.shape_cast %225 : vector<1x1x32xf32> to vector<1x32xf32>
    %c0_87 = arith.constant 0 : index
    %c0_88 = arith.constant 0 : index
    %c0_89 = arith.constant 0 : index
    %227 = vector.load %arg17[%c0_87, %c0_88, %c0_89] : memref<1x1x32xf32, #tpu.memory_space<vmem>>, vector<1x1x32xf32>
    %228 = vector.shape_cast %227 : vector<1x1x32xf32> to vector<1x32xf32>
    %cst_90 = arith.constant dense<0.000000e+00> : vector<7xf32>
    %229 = vector.multi_reduction <add>, %224, %cst_90 [1] : vector<7x32xf32> to vector<7xf32>
    %230 = vector.shape_cast %229 : vector<7xf32> to vector<7x1xf32>
    %cst_91 = arith.constant 3.200000e+01 : f32
    %231 = vector.broadcast %cst_91 : f32 to vector<7x1xf32>
    %232 = arith.divf %230, %231 : vector<7x1xf32>
    %233 = vector.broadcast %232 : vector<7x1xf32> to vector<7x32xf32>
    %234 = arith.subf %224, %233 : vector<7x32xf32>
    %235 = arith.mulf %234, %234 : vector<7x32xf32>
    %cst_92 = arith.constant dense<0.000000e+00> : vector<7xf32>
    %236 = vector.multi_reduction <add>, %235, %cst_92 [1] : vector<7x32xf32> to vector<7xf32>
    %237 = vector.shape_cast %236 : vector<7xf32> to vector<7x1xf32>
    %cst_93 = arith.constant 3.200000e+01 : f32
    %238 = vector.broadcast %cst_93 : f32 to vector<7x1xf32>
    %239 = arith.divf %237, %238 : vector<7x1xf32>
    %240 = vector.broadcast %232 : vector<7x1xf32> to vector<7x32xf32>
    %241 = arith.subf %224, %240 : vector<7x32xf32>
    %cst_94 = arith.constant 9.99999974E-6 : f32
    %242 = vector.broadcast %cst_94 : f32 to vector<7x1xf32>
    %243 = arith.addf %239, %242 : vector<7x1xf32>
    %244 = math.rsqrt %243 : vector<7x1xf32>
    %245 = vector.broadcast %244 : vector<7x1xf32> to vector<7x32xf32>
    %246 = arith.mulf %241, %245 : vector<7x32xf32>
    %247 = vector.broadcast %226 : vector<1x32xf32> to vector<7x32xf32>
    %248 = arith.mulf %246, %247 : vector<7x32xf32>
    %249 = vector.broadcast %228 : vector<1x32xf32> to vector<7x32xf32>
    %250 = arith.addf %248, %249 : vector<7x32xf32>
    %251 = arith.truncf %250 : vector<7x32xf32> to vector<7x32xbf16>
    %c0_95 = arith.constant 0 : index
    %c0_96 = arith.constant 0 : index
    %c0_97 = arith.constant 0 : index
    %252 = vector.load %arg20[%c0_95, %c0_96, %c0_97] : memref<1x32x64xf32, #tpu.memory_space<vmem>>, vector<1x32x64xf32>
    %253 = vector.shape_cast %252 : vector<1x32x64xf32> to vector<32x64xf32>
    %cst_98 = arith.constant dense<0.000000e+00> : vector<7x64xf32>
    %254 = tpu.matmul %251, %253, %cst_98 {dimension_numbers = #tpu.dot_dimension_numbers<[1], [0], [0], [1], [0, 0, 1, 1], [], []>} : vector<7x32xbf16>, vector<32x64xf32>, vector<7x64xf32> -> vector<7x64xf32>
    %c0_99 = arith.constant 0 : index
    %c0_100 = arith.constant 0 : index
    %c0_101 = arith.constant 0 : index
    %255 = vector.load %arg21[%c0_99, %c0_100, %c0_101] : memref<1x1x64xf32, #tpu.memory_space<vmem>>, vector<1x1x64xf32>
    %256 = vector.shape_cast %255 : vector<1x1x64xf32> to vector<1x64xf32>
    %257 = vector.broadcast %256 : vector<1x64xf32> to vector<7x64xf32>
    %258 = arith.addf %254, %257 : vector<7x64xf32>
    %cst_102 = arith.constant 0.000000e+00 : f32
    %259 = vector.broadcast %cst_102 : f32 to vector<7x64xf32>
    %260 = arith.maximumf %258, %259 : vector<7x64xf32>
    %261 = arith.truncf %260 : vector<7x64xf32> to vector<7x64xbf16>
    %c0_103 = arith.constant 0 : index
    %c0_104 = arith.constant 0 : index
    %c0_105 = arith.constant 0 : index
    %262 = vector.load %arg22[%c0_103, %c0_104, %c0_105] : memref<1x64x32xf32, #tpu.memory_space<vmem>>, vector<1x64x32xf32>
    %263 = vector.shape_cast %262 : vector<1x64x32xf32> to vector<64x32xf32>
    %cst_106 = arith.constant dense<0.000000e+00> : vector<7x32xf32>
    %264 = tpu.matmul %261, %263, %cst_106 {dimension_numbers = #tpu.dot_dimension_numbers<[1], [0], [0], [1], [0, 0, 1, 1], [], []>} : vector<7x64xbf16>, vector<64x32xf32>, vector<7x32xf32> -> vector<7x32xf32>
    %c0_107 = arith.constant 0 : index
    %c0_108 = arith.constant 0 : index
    %c0_109 = arith.constant 0 : index
    %265 = vector.load %arg23[%c0_107, %c0_108, %c0_109] : memref<1x1x32xf32, #tpu.memory_space<vmem>>, vector<1x1x32xf32>
    %266 = vector.shape_cast %265 : vector<1x1x32xf32> to vector<1x32xf32>
    %267 = vector.broadcast %266 : vector<1x32xf32> to vector<7x32xf32>
    %268 = arith.addf %264, %267 : vector<7x32xf32>
    %269 = arith.addf %250, %268 : vector<7x32xf32>
    %c0_110 = arith.constant 0 : index
    %c0_111 = arith.constant 0 : index
    %c0_112 = arith.constant 0 : index
    %270 = vector.load %arg18[%c0_110, %c0_111, %c0_112] : memref<1x1x32xf32, #tpu.memory_space<vmem>>, vector<1x1x32xf32>
    %271 = vector.shape_cast %270 : vector<1x1x32xf32> to vector<1x32xf32>
    %c0_113 = arith.constant 0 : index
    %c0_114 = arith.constant 0 : index
    %c0_115 = arith.constant 0 : index
    %272 = vector.load %arg19[%c0_113, %c0_114, %c0_115] : memref<1x1x32xf32, #tpu.memory_space<vmem>>, vector<1x1x32xf32>
    %273 = vector.shape_cast %272 : vector<1x1x32xf32> to vector<1x32xf32>
    %cst_116 = arith.constant dense<0.000000e+00> : vector<7xf32>
    %274 = vector.multi_reduction <add>, %269, %cst_116 [1] : vector<7x32xf32> to vector<7xf32>
    %275 = vector.shape_cast %274 : vector<7xf32> to vector<7x1xf32>
    %cst_117 = arith.constant 3.200000e+01 : f32
    %276 = vector.broadcast %cst_117 : f32 to vector<7x1xf32>
    %277 = arith.divf %275, %276 : vector<7x1xf32>
    %278 = vector.broadcast %277 : vector<7x1xf32> to vector<7x32xf32>
    %279 = arith.subf %269, %278 : vector<7x32xf32>
    %280 = arith.mulf %279, %279 : vector<7x32xf32>
    %cst_118 = arith.constant dense<0.000000e+00> : vector<7xf32>
    %281 = vector.multi_reduction <add>, %280, %cst_118 [1] : vector<7x32xf32> to vector<7xf32>
    %282 = vector.shape_cast %281 : vector<7xf32> to vector<7x1xf32>
    %cst_119 = arith.constant 3.200000e+01 : f32
    %283 = vector.broadcast %cst_119 : f32 to vector<7x1xf32>
    %284 = arith.divf %282, %283 : vector<7x1xf32>
    %285 = vector.broadcast %277 : vector<7x1xf32> to vector<7x32xf32>
    %286 = arith.subf %269, %285 : vector<7x32xf32>
    %cst_120 = arith.constant 9.99999974E-6 : f32
    %287 = vector.broadcast %cst_120 : f32 to vector<7x1xf32>
    %288 = arith.addf %284, %287 : vector<7x1xf32>
    %289 = math.rsqrt %288 : vector<7x1xf32>
    %290 = vector.broadcast %289 : vector<7x1xf32> to vector<7x32xf32>
    %291 = arith.mulf %286, %290 : vector<7x32xf32>
    %292 = vector.broadcast %271 : vector<1x32xf32> to vector<7x32xf32>
    %293 = arith.mulf %291, %292 : vector<7x32xf32>
    %294 = vector.broadcast %273 : vector<1x32xf32> to vector<7x32xf32>
    %295 = arith.addf %293, %294 : vector<7x32xf32>
    %c0_121 = arith.constant 0 : index
    %c0_122 = arith.constant 0 : index
    %296 = vector.load %arg27[%c0_121, %c0_122] : memref<7x32xf32, #tpu.memory_space<vmem>>, vector<7x32xf32>
    tpu.vector_store %arg27[%c0_121, %c0_122], %295 {strides = array<i32>} : memref<7x32xf32, #tpu.memory_space<vmem>>, vector<7x32xf32>,
    %c1_i32 = arith.constant 1 : i32
    %297 = arith.cmpi eq, %arg1, %c1_i32 : i32
    %298 = arith.extui %297 : i1 to i32
    %c0_i32_123 = arith.constant 0 : i32
    %299 = arith.cmpi ne, %298, %c0_i32_123 : i32
    scf.if %299 {
      %300 = arith.truncf %295 : vector<7x32xf32> to vector<7x32xbf16>
      %c0_124 = arith.constant 0 : index
      %c0_125 = arith.constant 0 : index
      %301 = vector.load %arg24[%c0_124, %c0_125] : memref<32x128xbf16, #tpu.memory_space<vmem>>, vector<32x128xbf16>
      %cst_126 = arith.constant dense<0.000000e+00> : vector<7x128xf32>
      %302 = tpu.matmul %300, %301, %cst_126 {dimension_numbers = #tpu.dot_dimension_numbers<[1], [0], [0], [1], [0, 0, 1, 1], [], []>} : vector<7x32xbf16>, vector<32x128xbf16>, vector<7x128xf32> -> vector<7x128xf32>
      %c0_127 = arith.constant 0 : index
      %c0_128 = arith.constant 0 : index
      %303 = vector.load %arg25[%c0_127, %c0_128] : memref<1x128xf32, #tpu.memory_space<vmem>>, vector<1x128xf32>
      %304 = vector.broadcast %303 : vector<1x128xf32> to vector<7x128xf32>
      %305 = arith.addf %302, %304 : vector<7x128xf32>
      %c0_129 = arith.constant 0 : index
      %c0_130 = arith.constant 0 : index
      %c0_131 = arith.constant 0 : index
      %306 = vector.load %arg26[%c0_129, %c0_130, %c0_131] : memref<1x7x128xf32, #tpu.memory_space<vmem>>, vector<1x7x128xf32>
      %307 = vector.shape_cast %306 : vector<1x7x128xf32> to vector<7x128xf32>
      %308 = vector.shape_cast %305 : vector<7x128xf32> to vector<1x7x128xf32>
      tpu.vector_store %arg26[%c0_129, %c0_130, %c0_131], %308 {strides = array<i32>} : memref<1x7x128xf32, #tpu.memory_space<vmem>>, vector<1x7x128xf32>,
    } else {
    }
    return
  }
  func.func @transform_0(%arg0: i32, %arg1: i32) -> (i32, i32, i32) {
    %c0_i32 = arith.constant 0 : i32
    %c0_i32_0 = arith.constant 0 : i32
    %c0_i32_1 = arith.constant 0 : i32
    return %arg0, %c0_i32, %c0_i32_0 : i32, i32, i32
  }
  func.func @transform_1(%arg0: i32, %arg1: i32) -> (i32, i32, i32) {
    %c0_i32 = arith.constant 0 : i32
    %c0_i32_0 = arith.constant 0 : i32
    %c0_i32_1 = arith.constant 0 : i32
    return %arg0, %c0_i32, %c0_i32_0 : i32, i32, i32
  }
  func.func @transform_2(%arg0: i32, %arg1: i32) -> (i32, i32, i32) {
    %c0_i32 = arith.constant 0 : i32
    %c0_i32_0 = arith.constant 0 : i32
    %c0_i32_1 = arith.constant 0 : i32
    return %arg1, %c0_i32, %c0_i32_0 : i32, i32, i32
  }
  func.func @transform_3(%arg0: i32, %arg1: i32) -> (i32, i32, i32) {
    %c0_i32 = arith.constant 0 : i32
    %c0_i32_0 = arith.constant 0 : i32
    %c0_i32_1 = arith.constant 0 : i32
    return %arg1, %c0_i32, %c0_i32_0 : i32, i32, i32
  }
  func.func @transform_4(%arg0: i32, %arg1: i32) -> (i32, i32, i32) {
    %c0_i32 = arith.constant 0 : i32
    %c0_i32_0 = arith.constant 0 : i32
    %c0_i32_1 = arith.constant 0 : i32
    return %arg1, %c0_i32, %c0_i32_0 : i32, i32, i32
  }
  func.func @transform_5(%arg0: i32, %arg1: i32) -> (i32, i32, i32) {
    %c0_i32 = arith.constant 0 : i32
    %c0_i32_0 = arith.constant 0 : i32
    %c0_i32_1 = arith.constant 0 : i32
    return %arg1, %c0_i32, %c0_i32_0 : i32, i32, i32
  }
  func.func @transform_6(%arg0: i32, %arg1: i32) -> (i32, i32, i32) {
    %c0_i32 = arith.constant 0 : i32
    %c0_i32_0 = arith.constant 0 : i32
    %c0_i32_1 = arith.constant 0 : i32
    return %arg1, %c0_i32, %c0_i32_0 : i32, i32, i32
  }
  func.func @transform_7(%arg0: i32, %arg1: i32) -> (i32, i32, i32) {
    %c0_i32 = arith.constant 0 : i32
    %c0_i32_0 = arith.constant 0 : i32
    %c0_i32_1 = arith.constant 0 : i32
    return %arg1, %c0_i32, %c0_i32_0 : i32, i32, i32
  }
  func.func @transform_8(%arg0: i32, %arg1: i32) -> (i32, i32, i32) {
    %c0_i32 = arith.constant 0 : i32
    %c0_i32_0 = arith.constant 0 : i32
    %c0_i32_1 = arith.constant 0 : i32
    return %arg1, %c0_i32, %c0_i32_0 : i32, i32, i32
  }
  func.func @transform_9(%arg0: i32, %arg1: i32) -> (i32, i32, i32) {
    %c0_i32 = arith.constant 0 : i32
    %c0_i32_0 = arith.constant 0 : i32
    %c0_i32_1 = arith.constant 0 : i32
    return %arg1, %c0_i32, %c0_i32_0 : i32, i32, i32
  }
  func.func @transform_10(%arg0: i32, %arg1: i32) -> (i32, i32, i32) {
    %c0_i32 = arith.constant 0 : i32
    %c0_i32_0 = arith.constant 0 : i32
    %c0_i32_1 = arith.constant 0 : i32
    return %arg1, %c0_i32, %c0_i32_0 : i32, i32, i32
  }
  func.func @transform_11(%arg0: i32, %arg1: i32) -> (i32, i32, i32) {
    %c0_i32 = arith.constant 0 : i32
    %c0_i32_0 = arith.constant 0 : i32
    %c0_i32_1 = arith.constant 0 : i32
    return %arg1, %c0_i32, %c0_i32_0 : i32, i32, i32
  }
  func.func @transform_12(%arg0: i32, %arg1: i32) -> (i32, i32, i32) {
    %c0_i32 = arith.constant 0 : i32
    %c0_i32_0 = arith.constant 0 : i32
    %c0_i32_1 = arith.constant 0 : i32
    return %arg1, %c0_i32, %c0_i32_0 : i32, i32, i32
  }
  func.func @transform_13(%arg0: i32, %arg1: i32) -> (i32, i32, i32) {
    %c0_i32 = arith.constant 0 : i32
    %c0_i32_0 = arith.constant 0 : i32
    %c0_i32_1 = arith.constant 0 : i32
    return %arg1, %c0_i32, %c0_i32_0 : i32, i32, i32
  }
  func.func @transform_14(%arg0: i32, %arg1: i32) -> (i32, i32, i32) {
    %c0_i32 = arith.constant 0 : i32
    %c0_i32_0 = arith.constant 0 : i32
    %c0_i32_1 = arith.constant 0 : i32
    return %arg1, %c0_i32, %c0_i32_0 : i32, i32, i32
  }
  func.func @transform_15(%arg0: i32, %arg1: i32) -> (i32, i32, i32) {
    %c0_i32 = arith.constant 0 : i32
    %c0_i32_0 = arith.constant 0 : i32
    %c0_i32_1 = arith.constant 0 : i32
    return %arg1, %c0_i32, %c0_i32_0 : i32, i32, i32
  }
  func.func @transform_16(%arg0: i32, %arg1: i32) -> (i32, i32, i32) {
    %c0_i32 = arith.constant 0 : i32
    %c0_i32_0 = arith.constant 0 : i32
    %c0_i32_1 = arith.constant 0 : i32
    return %arg1, %c0_i32, %c0_i32_0 : i32, i32, i32
  }
  func.func @transform_17(%arg0: i32, %arg1: i32) -> (i32, i32, i32) {
    %c0_i32 = arith.constant 0 : i32
    %c0_i32_0 = arith.constant 0 : i32
    %c0_i32_1 = arith.constant 0 : i32
    return %arg1, %c0_i32, %c0_i32_0 : i32, i32, i32
  }
  func.func @transform_18(%arg0: i32, %arg1: i32) -> (i32, i32, i32) {
    %c0_i32 = arith.constant 0 : i32
    %c0_i32_0 = arith.constant 0 : i32
    %c0_i32_1 = arith.constant 0 : i32
    return %arg1, %c0_i32, %c0_i32_0 : i32, i32, i32
  }
  func.func @transform_19(%arg0: i32, %arg1: i32) -> (i32, i32, i32) {
    %c0_i32 = arith.constant 0 : i32
    %c0_i32_0 = arith.constant 0 : i32
    %c0_i32_1 = arith.constant 0 : i32
    return %arg1, %c0_i32, %c0_i32_0 : i32, i32, i32
  }
  func.func @transform_20(%arg0: i32, %arg1: i32) -> (i32, i32, i32) {
    %c0_i32 = arith.constant 0 : i32
    %c0_i32_0 = arith.constant 0 : i32
    %c0_i32_1 = arith.constant 0 : i32
    return %arg1, %c0_i32, %c0_i32_0 : i32, i32, i32
  }
  func.func @transform_21(%arg0: i32, %arg1: i32) -> (i32, i32, i32) {
    %c0_i32 = arith.constant 0 : i32
    %c0_i32_0 = arith.constant 0 : i32
    %c0_i32_1 = arith.constant 0 : i32
    return %arg1, %c0_i32, %c0_i32_0 : i32, i32, i32
  }
  func.func @transform_22(%arg0: i32, %arg1: i32) -> (i32, i32) {
    %c0_i32 = arith.constant 0 : i32
    %c0_i32_0 = arith.constant 0 : i32
    %c0_i32_1 = arith.constant 0 : i32
    return %c0_i32, %c0_i32_0 : i32, i32
  }
  func.func @transform_23(%arg0: i32, %arg1: i32) -> (i32, i32) {
    %c0_i32 = arith.constant 0 : i32
    %c0_i32_0 = arith.constant 0 : i32
    %c0_i32_1 = arith.constant 0 : i32
    return %c0_i32, %c0_i32_0 : i32, i32
  }
  func.func @transform_24(%arg0: i32, %arg1: i32) -> (i32, i32, i32) {
    %c0_i32 = arith.constant 0 : i32
    %c0_i32_0 = arith.constant 0 : i32
    %c0_i32_1 = arith.constant 0 : i32
    return %arg0, %c0_i32, %c0_i32_0 : i32, i32, i32
  }
}

</mosaic_0001>

<llo_original>
// kernel: tpu_custom_call.1
$region0: #{tpu_custom_call.1}
  #allocation0 [shape = 'u32[]', space=smem, size = 0x4, offset = 0x4, fixed_abs, tag = 'smem constant byte address 0x4 - core index']
  #allocation1 [shape = 'u32[144,128]{1,0:T(1,128)}', space=vmem, size = 0x12000, scoped, tag = 'internal scratch']
  #allocation2 [shape = 'f32[7,32]{1,0:T(8,128)}', space=vmem, size = 0x1000, scoped, tag = 'scratch operand']
  %s0 = inlined_call_operand.vmem [shape: f32[2,7,32], index: 0, kind: input, shape index: {}]
  %s1 = inlined_call_operand.vmem [shape: f32[2,6,32], index: 1, kind: input, shape index: {}]
  %s2 = inlined_call_operand.vmem [shape: bf16[2,32,96], index: 2, kind: input, shape index: {}]
  %s3 = inlined_call_operand.vmem [shape: f32[2,1,96], index: 3, kind: input, shape index: {}]
  %s4 = inlined_call_operand.vmem [shape: bf16[2,32,32], index: 4, kind: input, shape index: {}]
  %s5 = inlined_call_operand.vmem [shape: f32[2,1,32], index: 5, kind: input, shape index: {}]
  %s6 = inlined_call_operand.vmem [shape: bf16[2,32,32], index: 6, kind: input, shape index: {}]
  %s7 = inlined_call_operand.vmem [shape: f32[2,1,32], index: 7, kind: input, shape index: {}]
  %s8 = inlined_call_operand.vmem [shape: bf16[2,32,64], index: 8, kind: input, shape index: {}]
  %s9 = inlined_call_operand.vmem [shape: f32[2,1,64], index: 9, kind: input, shape index: {}]
  %s10 = inlined_call_operand.hbm [shape: bf16[2,32,32], index: 10, kind: input, shape index: {}]
  %s11 = inlined_call_operand.vmem [shape: f32[2,1,32], index: 11, kind: input, shape index: {}]
  %s12 = inlined_call_operand.vmem [shape: f32[2,1,32], index: 12, kind: input, shape index: {}]
  %s13 = inlined_call_operand.vmem [shape: f32[2,1,32], index: 13, kind: input, shape index: {}]
  %s14 = inlined_call_operand.hbm [shape: f32[2,1,32], index: 14, kind: input, shape index: {}]
  %s15 = inlined_call_operand.hbm [shape: f32[2,1,32], index: 15, kind: input, shape index: {}]
  %s16 = inlined_call_operand.hbm [shape: f32[2,1,32], index: 16, kind: input, shape index: {}]
  %s17 = inlined_call_operand.hbm [shape: f32[2,1,32], index: 17, kind: input, shape index: {}]
  %s18 = inlined_call_operand.vmem [shape: f32[2,32,64], index: 18, kind: input, shape index: {}]
  %s19 = inlined_call_operand.hbm [shape: f32[2,1,64], index: 19, kind: input, shape index: {}]
  %s20 = inlined_call_operand.vmem [shape: f32[2,64,32], index: 20, kind: input, shape index: {}]
  %s21 = inlined_call_operand.hbm [shape: f32[2,1,32], index: 21, kind: input, shape index: {}]
  %s22 = inlined_call_operand.vmem [shape: bf16[32,128], index: 22, kind: input, shape index: {}]
  %s23 = inlined_call_operand.vmem [shape: f32[1,128], index: 23, kind: input, shape index: {}]
  %s24 = inlined_call_operand.vmem [shape: f32[2,7,128], index: 24, kind: output, shape index: {}]
  %s25 = sld [smem:[#allocation0]]
  $region165: #{tpu_custom_call.1} parent=0
    _
  %s27 = ssub.s32 1, %s25
  %s28 = scalar_select 0, %s27, %s25
  $region1: #{tpu_custom_call.1} parent=0
    #allocation3 [shape = 'u8[16384]{0}', space=vmem, size = 0x4000, scoped, tag = 'input window, operand 10']
    #allocation4 [shape = 's32[2]{0}', space=sflag, size = 0x8, scoped, tag = 'scoped memory for tpu_custom_call.1']
    #allocation5 [shape = 'u8[1024]{0}', space=vmem, size = 0x400, scoped, tag = 'input window, operand 14']
    #allocation6 [shape = 's32[2]{0}', space=sflag, size = 0x8, scoped, tag = 'scoped memory for tpu_custom_call.1']
    #allocation7 [shape = 'u8[1024]{0}', space=vmem, size = 0x400, scoped, tag = 'input window, operand 15']
    #allocation8 [shape = 'u8[1024]{0}', space=vmem, size = 0x400, scoped, tag = 'input window, operand 16']
    #allocation9 [shape = 's32[2]{0}', space=sflag, size = 0x8, scoped, tag = 'scoped memory for tpu_custom_call.1']
    #allocation10 [shape = 'u8[1024]{0}', space=vmem, size = 0x400, scoped, tag = 'input window, operand 17']
    #allocation11 [shape = 'u8[1024]{0}', space=vmem, size = 0x400, scoped, tag = 'input window, operand 19']
    #allocation12 [shape = 's32[2]{0}', space=sflag, size = 0x8, scoped, tag = 'scoped memory for tpu_custom_call.1']
    #allocation13 [shape = 'u8[1024]{0}', space=vmem, size = 0x400, scoped, tag = 'input window, operand 21']
    %29 = vsyncpa [#allocation4], 0
    %s30 = scalar_lea.sflag [#allocation4], 1
    %31 = vsyncpa %s30, 0
    %32 = vsyncpa [#allocation6], 0
    %s33 = scalar_lea.sflag [#allocation6], 1
    %34 = vsyncpa %s33, 0
    %35 = vsyncpa [#allocation9], 0
    %s36 = scalar_lea.sflag [#allocation9], 1
    %37 = vsyncpa %s36, 0
    %38 = vsyncpa [#allocation12], 0
    %s39 = scalar_lea.sflag [#allocation12], 1
    %40 = vsyncpa %s39, 0
    loop: start=0, step=1, limit=6
    $region2: #{tpu_custom_call.1} parent=1 // loop_pre_header
      _
    $region3: #{tpu_custom_call.1} parent=1 // loop_header
      %s42 = sphi 0, %s46
      %p43 = scmp.ge.s32.totalorder %s42, 6
      %s49 = sphi 0, %s61
      %s50 = sphi 0, %s57
      %s51 = sphi 0, %s49
      %s52 = sphi 0, %s50
      %s53 = sphi 0, %s51
      %s54 = sphi 0, %s52
      %s64 = sphi 0, %s66
      %s67 = sphi 0, %s64
      %s68 = sphi 0, %s67
      %s84 = sphi 0, %s68
      %s90 = sphi 0, %s92
      %s93 = sphi 0, %s90
      %s94 = sphi 0, %s93
      %s110 = sphi 0, %s94
      %s116 = sphi 0, %s118
      %s119 = sphi 0, %s116
      %s120 = sphi 0, %s119
      %s136 = sphi 0, %s120
      %s142 = sphi 0, %s144
      %s145 = sphi 0, %s142
      %s146 = sphi 0, %s145
      %s162 = sphi 0, %s146
      %s168 = sphi 0, %s170
      %s171 = sphi 0, %s168
      %s172 = sphi 0, %s171
      %s188 = sphi 0, %s172
      %s194 = sphi 0, %s196
      %s197 = sphi 0, %s194
      %s198 = sphi 0, %s197
      %s214 = sphi 0, %s198
      %s220 = sphi 0, %s222
      %s223 = sphi 0, %s220
      %s224 = sphi 0, %s223
      %s240 = sphi 0, %s224
      %s246 = sphi 0, %s248
      %s249 = sphi 0, %s246
      %s250 = sphi 0, %s249
      %s266 = sphi 0, %s250
      %s272 = sphi 0, %s274
      %s275 = sphi 0, %s272
      %s276 = sphi 0, %s275
      %s292 = sphi 0, %s276
      %s298 = sphi 0, %s300
      %s301 = sphi 0, %s298
      %s302 = sphi 0, %s301
      %s318 = sphi 0, %s302
      %s324 = sphi 0, %s326
      %s327 = sphi 0, %s324
      %s328 = sphi 0, %s327
      %s344 = sphi 0, %s328
      %s350 = sphi 0, %s352
      %s353 = sphi 0, %s350
      %s354 = sphi 0, %s353
      %s370 = sphi 0, %s354
      %s376 = sphi 0, %s378
      %s379 = sphi 0, %s376
      %s380 = sphi 0, %s379
      %s396 = sphi 0, %s380
      %s402 = sphi 0, %s404
      %s405 = sphi 0, %s402
      %s406 = sphi 0, %s405
      %s422 = sphi 0, %s406
      %s428 = sphi 0, %s430
      %s431 = sphi 0, %s428
      %s432 = sphi 0, %s431
      %s448 = sphi 0, %s432
      %s454 = sphi 0, %s456
      %s457 = sphi 0, %s454
      %s458 = sphi 0, %s457
      %s474 = sphi 0, %s458
      %s480 = sphi 0, %s482
      %s483 = sphi 0, %s480
      %s484 = sphi 0, %s483
      %s500 = sphi 0, %s484
      %s506 = sphi 0, %s508
      %s509 = sphi 0, %s506
      %s510 = sphi 0, %s509
      %s526 = sphi 0, %s510
      %s532 = sphi 0, %s534
      %s535 = sphi 0, %s532
      %s536 = sphi 0, %s535
      %s552 = sphi 0, %s536
      %s558 = sphi 0, %s560
      %s561 = sphi 0, %s558
      %s562 = sphi 0, %s561
      %s578 = sphi 0, %s562
      %s584 = sphi 0, %s586
      %s587 = sphi 0, %s584
      %s588 = sphi 0, %s587
      %s604 = sphi 0, %s588
      %s610 = sphi 0, %s612
      %s613 = sphi 0, %s610
      %s614 = sphi 0, %s613
      %s630 = sphi 0, %s614
      %s634 = sphi 0, %s634
      %s636 = sphi 0, %s634
      %s637 = sphi 0, %s636
      %s651 = sphi 0, %s637
      %s655 = sphi 0, %s655
      %s657 = sphi 0, %s655
      %s658 = sphi 0, %s657
      %s672 = sphi 0, %s658
      %s678 = sphi 0, %s680
      %s681 = sphi 0, %s678
      %s682 = sphi 0, %s681
      %s698 = sphi 0, %s682
    $region4: #{tpu_custom_call.1} parent=1 // loop_header_branch
      %45 = sbr.rel (%p43) target = $region8
    $region5: #{tpu_custom_call.1} parent=1 // loop_body
      %s47 = ssub.s32 %s42, 1
      %s48 = ssub.s32 %s42, 2
      %s55 = sadd.s32 1, %s50
      %p56 = scmp.ge.s32.totalorder %s55, 2
      %s57 = scalar_select %p56, 0, %s55
      %s58 = sadd.s32 1, %s49
      %s59 = scalar_select %p56, %s58, %s49
      %p60 = scmp.ge.s32.totalorder %s59, 2
      %s61 = scalar_select %p60, 0, %s59
      %s62 = ssub.s32 %s49, %s61
      %p63 = scmp.eq.s32.totalorder %s62, 0
      %s65 = sadd.s32 %s64, 1
      %s66 = scalar_select %p63, %s64, %s65
      %p69 = pneg %p63
      %p70 = scmp.eq.s32.totalorder %s42, 3
      %p71 = por %p69, %p70
      %p72 = scmp.ne.s32.totalorder %s64, %s67
      %p73 = scmp.eq.s32.totalorder %s42, 0
      %p74 = por %p72, %p73
      %p75 = scmp.ne.s32.totalorder %s64, %s67
      %p76 = scmp.eq.s32.totalorder %s47, 3
      %p77 = por %p75, %p76
      %p78 = scmp.ne.s32.totalorder %s67, %s68
      %p79 = scmp.eq.s32.totalorder %s47, 0
      %p80 = por %p78, %p79
      %p81 = scmp.ne.s32.totalorder %s67, %s68
      %p82 = scmp.eq.s32.totalorder %s48, 3
      %p83 = por %p81, %p82
      %p85 = scmp.ne.s32.totalorder %s68, %s84
      %p86 = scmp.eq.s32.totalorder %s48, 0
      %p87 = por %p85, %p86
      %s88 = ssub.s32 %s49, %s61
      %p89 = scmp.eq.s32.totalorder %s88, 0
      %s91 = sadd.s32 %s90, 1
      %s92 = scalar_select %p89, %s90, %s91
      %p95 = pneg %p89
      %p96 = scmp.eq.s32.totalorder %s42, 3
      %p97 = por %p95, %p96
      %p98 = scmp.ne.s32.totalorder %s90, %s93
      %p99 = scmp.eq.s32.totalorder %s42, 0
      %p100 = por %p98, %p99
      %p101 = scmp.ne.s32.totalorder %s90, %s93
      %p102 = scmp.eq.s32.totalorder %s47, 3
      %p103 = por %p101, %p102
      %p104 = scmp.ne.s32.totalorder %s93, %s94
      %p105 = scmp.eq.s32.totalorder %s47, 0
      %p106 = por %p104, %p105
      %p107 = scmp.ne.s32.totalorder %s93, %s94
      %p108 = scmp.eq.s32.totalorder %s48, 3
      %p109 = por %p107, %p108
      %p111 = scmp.ne.s32.totalorder %s94, %s110
      %p112 = scmp.eq.s32.totalorder %s48, 0
      %p113 = por %p111, %p112
      %s114 = ssub.s32 %s50, %s57
      %p115 = scmp.eq.s32.totalorder %s114, 0
      %s117 = sadd.s32 %s116, 1
      %s118 = scalar_select %p115, %s116, %s117
      %p121 = pneg %p115
      %p122 = scmp.eq.s32.totalorder %s42, 3
      %p123 = por %p121, %p122
      %p124 = scmp.ne.s32.totalorder %s116, %s119
      %p125 = scmp.eq.s32.totalorder %s42, 0
      %p126 = por %p124, %p125
      %p127 = scmp.ne.s32.totalorder %s116, %s119
      %p128 = scmp.eq.s32.totalorder %s47, 3
      %p129 = por %p127, %p128
      %p130 = scmp.ne.s32.totalorder %s119, %s120
      %p131 = scmp.eq.s32.totalorder %s47, 0
      %p132 = por %p130, %p131
      %p133 = scmp.ne.s32.totalorder %s119, %s120
      %p134 = scmp.eq.s32.totalorder %s48, 3
      %p135 = por %p133, %p134
      %p137 = scmp.ne.s32.totalorder %s120, %s136
      %p138 = scmp.eq.s32.totalorder %s48, 0
      %p139 = por %p137, %p138
      %s140 = ssub.s32 %s50, %s57
      %p141 = scmp.eq.s32.totalorder %s140, 0
      %s143 = sadd.s32 %s142, 1
      %s144 = scalar_select %p141, %s142, %s143
      %p147 = pneg %p141
      %p148 = scmp.eq.s32.totalorder %s42, 3
      %p149 = por %p147, %p148
      %p150 = scmp.ne.s32.totalorder %s142, %s145
      %p151 = scmp.eq.s32.totalorder %s42, 0
      %p152 = por %p150, %p151
      %p153 = scmp.ne.s32.totalorder %s142, %s145
      %p154 = scmp.eq.s32.totalorder %s47, 3
      %p155 = por %p153, %p154
      %p156 = scmp.ne.s32.totalorder %s145, %s146
      %p157 = scmp.eq.s32.totalorder %s47, 0
      %p158 = por %p156, %p157
      %p159 = scmp.ne.s32.totalorder %s145, %s146
      %p160 = scmp.eq.s32.totalorder %s48, 3
      %p161 = por %p159, %p160
      %p163 = scmp.ne.s32.totalorder %s146, %s162
      %p164 = scmp.eq.s32.totalorder %s48, 0
      %p165 = por %p163, %p164
      %s166 = ssub.s32 %s50, %s57
      %p167 = scmp.eq.s32.totalorder %s166, 0
      %s169 = sadd.s32 %s168, 1
      %s170 = scalar_select %p167, %s168, %s169
      %p173 = pneg %p167
      %p174 = scmp.eq.s32.totalorder %s42, 3
      %p175 = por %p173, %p174
      %p176 = scmp.ne.s32.totalorder %s168, %s171
      %p177 = scmp.eq.s32.totalorder %s42, 0
      %p178 = por %p176, %p177
      %p179 = scmp.ne.s32.totalorder %s168, %s171
      %p180 = scmp.eq.s32.totalorder %s47, 3
      %p181 = por %p179, %p180
      %p182 = scmp.ne.s32.totalorder %s171, %s172
      %p183 = scmp.eq.s32.totalorder %s47, 0
      %p184 = por %p182, %p183
      %p185 = scmp.ne.s32.totalorder %s171, %s172
      %p186 = scmp.eq.s32.totalorder %s48, 3
      %p187 = por %p185, %p186
      %p189 = scmp.ne.s32.totalorder %s172, %s188
      %p190 = scmp.eq.s32.totalorder %s48, 0
      %p191 = por %p189, %p190
      %s192 = ssub.s32 %s50, %s57
      %p193 = scmp.eq.s32.totalorder %s192, 0
      %s195 = sadd.s32 %s194, 1
      %s196 = scalar_select %p193, %s194, %s195
      %p199 = pneg %p193
      %p200 = scmp.eq.s32.totalorder %s42, 3
      %p201 = por %p199, %p200
      %p202 = scmp.ne.s32.totalorder %s194, %s197
      %p203 = scmp.eq.s32.totalorder %s42, 0
      %p204 = por %p202, %p203
      %p205 = scmp.ne.s32.totalorder %s194, %s197
      %p206 = scmp.eq.s32.totalorder %s47, 3
      %p207 = por %p205, %p206
      %p208 = scmp.ne.s32.totalorder %s197, %s198
      %p209 = scmp.eq.s32.totalorder %s47, 0
      %p210 = por %p208, %p209
      %p211 = scmp.ne.s32.totalorder %s197, %s198
      %p212 = scmp.eq.s32.totalorder %s48, 3
      %p213 = por %p211, %p212
      %p215 = scmp.ne.s32.totalorder %s198, %s214
      %p216 = scmp.eq.s32.totalorder %s48, 0
      %p217 = por %p215, %p216
      %s218 = ssub.s32 %s50, %s57
      %p219 = scmp.eq.s32.totalorder %s218, 0
      %s221 = sadd.s32 %s220, 1
      %s222 = scalar_select %p219, %s220, %s221
      %p225 = pneg %p219
      %p226 = scmp.eq.s32.totalorder %s42, 3
      %p227 = por %p225, %p226
      %p228 = scmp.ne.s32.totalorder %s220, %s223
      %p229 = scmp.eq.s32.totalorder %s42, 0
      %p230 = por %p228, %p229
      %p231 = scmp.ne.s32.totalorder %s220, %s223
      %p232 = scmp.eq.s32.totalorder %s47, 3
      %p233 = por %p231, %p232
      %p234 = scmp.ne.s32.totalorder %s223, %s224
      %p235 = scmp.eq.s32.totalorder %s47, 0
      %p236 = por %p234, %p235
      %p237 = scmp.ne.s32.totalorder %s223, %s224
      %p238 = scmp.eq.s32.totalorder %s48, 3
      %p239 = por %p237, %p238
      %p241 = scmp.ne.s32.totalorder %s224, %s240
      %p242 = scmp.eq.s32.totalorder %s48, 0
      %p243 = por %p241, %p242
      %s244 = ssub.s32 %s50, %s57
      %p245 = scmp.eq.s32.totalorder %s244, 0
      %s247 = sadd.s32 %s246, 1
      %s248 = scalar_select %p245, %s246, %s247
      %p251 = pneg %p245
      %p252 = scmp.eq.s32.totalorder %s42, 3
      %p253 = por %p251, %p252
      %p254 = scmp.ne.s32.totalorder %s246, %s249
      %p255 = scmp.eq.s32.totalorder %s42, 0
      %p256 = por %p254, %p255
      %p257 = scmp.ne.s32.totalorder %s246, %s249
      %p258 = scmp.eq.s32.totalorder %s47, 3
      %p259 = por %p257, %p258
      %p260 = scmp.ne.s32.totalorder %s249, %s250
      %p261 = scmp.eq.s32.totalorder %s47, 0
      %p262 = por %p260, %p261
      %p263 = scmp.ne.s32.totalorder %s249, %s250
      %p264 = scmp.eq.s32.totalorder %s48, 3
      %p265 = por %p263, %p264
      %p267 = scmp.ne.s32.totalorder %s250, %s266
      %p268 = scmp.eq.s32.totalorder %s48, 0
      %p269 = por %p267, %p268
      %s270 = ssub.s32 %s50, %s57
      %p271 = scmp.eq.s32.totalorder %s270, 0
      %s273 = sadd.s32 %s272, 1
      %s274 = scalar_select %p271, %s272, %s273
      %p277 = pneg %p271
      %p278 = scmp.eq.s32.totalorder %s42, 3
      %p279 = por %p277, %p278
      %p280 = scmp.ne.s32.totalorder %s272, %s275
      %p281 = scmp.eq.s32.totalorder %s42, 0
      %p282 = por %p280, %p281
      %p283 = scmp.ne.s32.totalorder %s272, %s275
      %p284 = scmp.eq.s32.totalorder %s47, 3
      %p285 = por %p283, %p284
      %p286 = scmp.ne.s32.totalorder %s275, %s276
      %p287 = scmp.eq.s32.totalorder %s47, 0
      %p288 = por %p286, %p287
      %p289 = scmp.ne.s32.totalorder %s275, %s276
      %p290 = scmp.eq.s32.totalorder %s48, 3
      %p291 = por %p289, %p290
      %p293 = scmp.ne.s32.totalorder %s276, %s292
      %p294 = scmp.eq.s32.totalorder %s48, 0
      %p295 = por %p293, %p294
      %s296 = ssub.s32 %s50, %s57
      %p297 = scmp.eq.s32.totalorder %s296, 0
      %s299 = sadd.s32 %s298, 1
      %s300 = scalar_select %p297, %s298, %s299
      %p303 = pneg %p297
      %p304 = scmp.eq.s32.totalorder %s42, 3
      %p305 = por %p303, %p304
      %p306 = scmp.ne.s32.totalorder %s298, %s301
      %p307 = scmp.eq.s32.totalorder %s42, 0
      %p308 = por %p306, %p307
      %p309 = scmp.ne.s32.totalorder %s298, %s301
      %p310 = scmp.eq.s32.totalorder %s47, 3
      %p311 = por %p309, %p310
      %p312 = scmp.ne.s32.totalorder %s301, %s302
      %p313 = scmp.eq.s32.totalorder %s47, 0
      %p314 = por %p312, %p313
      %p315 = scmp.ne.s32.totalorder %s301, %s302
      %p316 = scmp.eq.s32.totalorder %s48, 3
      %p317 = por %p315, %p316
      %p319 = scmp.ne.s32.totalorder %s302, %s318
      %p320 = scmp.eq.s32.totalorder %s48, 0
      %p321 = por %p319, %p320
      %s322 = ssub.s32 %s50, %s57
      %p323 = scmp.eq.s32.totalorder %s322, 0
      %s325 = sadd.s32 %s324, 1
      %s326 = scalar_select %p323, %s324, %s325
      %p329 = pneg %p323
      %p330 = scmp.eq.s32.totalorder %s42, 3
      %p331 = por %p329, %p330
      %p332 = scmp.ne.s32.totalorder %s324, %s327
      %p333 = scmp.eq.s32.totalorder %s42, 0
      %p334 = por %p332, %p333
      %p335 = scmp.ne.s32.totalorder %s324, %s327
      %p336 = scmp.eq.s32.totalorder %s47, 3
      %p337 = por %p335, %p336
      %p338 = scmp.ne.s32.totalorder %s327, %s328
      %p339 = scmp.eq.s32.totalorder %s47, 0
      %p340 = por %p338, %p339
      %p341 = scmp.ne.s32.totalorder %s327, %s328
      %p342 = scmp.eq.s32.totalorder %s48, 3
      %p343 = por %p341, %p342
      %p345 = scmp.ne.s32.totalorder %s328, %s344
      %p346 = scmp.eq.s32.totalorder %s48, 0
      %p347 = por %p345, %p346
      %s348 = ssub.s32 %s50, %s57
      %p349 = scmp.eq.s32.totalorder %s348, 0
      %s351 = sadd.s32 %s350, 1
      %s352 = scalar_select %p349, %s350, %s351
      %p355 = pneg %p349
      %p356 = scmp.eq.s32.totalorder %s42, 3
      %p357 = por %p355, %p356
      %p358 = scmp.ne.s32.totalorder %s350, %s353
      %p359 = scmp.eq.s32.totalorder %s42, 0
      %p360 = por %p358, %p359
      %p361 = scmp.ne.s32.totalorder %s350, %s353
      %p362 = scmp.eq.s32.totalorder %s47, 3
      %p363 = por %p361, %p362
      %p364 = scmp.ne.s32.totalorder %s353, %s354
      %p365 = scmp.eq.s32.totalorder %s47, 0
      %p366 = por %p364, %p365
      %p367 = scmp.ne.s32.totalorder %s353, %s354
      %p368 = scmp.eq.s32.totalorder %s48, 3
      %p369 = por %p367, %p368
      %p371 = scmp.ne.s32.totalorder %s354, %s370
      %p372 = scmp.eq.s32.totalorder %s48, 0
      %p373 = por %p371, %p372
      %s374 = ssub.s32 %s50, %s57
      %p375 = scmp.eq.s32.totalorder %s374, 0
      %s377 = sadd.s32 %s376, 1
      %s378 = scalar_select %p375, %s376, %s377
      %p381 = pneg %p375
      %p382 = scmp.eq.s32.totalorder %s42, 3
      %p383 = por %p381, %p382
      %p384 = scmp.ne.s32.totalorder %s376, %s379
      %p385 = scmp.eq.s32.totalorder %s42, 0
      %p386 = por %p384, %p385
      %p387 = scmp.ne.s32.totalorder %s376, %s379
      %p388 = scmp.eq.s32.totalorder %s47, 3
      %p389 = por %p387, %p388
      %p390 = scmp.ne.s32.totalorder %s379, %s380
      %p391 = scmp.eq.s32.totalorder %s47, 0
      %p392 = por %p390, %p391
      %p393 = scmp.ne.s32.totalorder %s379, %s380
      %p394 = scmp.eq.s32.totalorder %s48, 3
      %p395 = por %p393, %p394
      %p397 = scmp.ne.s32.totalorder %s380, %s396
      %p398 = scmp.eq.s32.totalorder %s48, 0
      %p399 = por %p397, %p398
      %s400 = ssub.s32 %s50, %s57
      %p401 = scmp.eq.s32.totalorder %s400, 0
      %s403 = sadd.s32 %s402, 1
      %s404 = scalar_select %p401, %s402, %s403
      %p407 = pneg %p401
      %p408 = scmp.eq.s32.totalorder %s42, 3
      %p409 = por %p407, %p408
      %p410 = scmp.ne.s32.totalorder %s402, %s405
      %p411 = scmp.eq.s32.totalorder %s42, 0
      %p412 = por %p410, %p411
      %p413 = scmp.ne.s32.totalorder %s402, %s405
      %p414 = scmp.eq.s32.totalorder %s47, 3
      %p415 = por %p413, %p414
      %p416 = scmp.ne.s32.totalorder %s405, %s406
      %p417 = scmp.eq.s32.totalorder %s47, 0
      %p418 = por %p416, %p417
      %p419 = scmp.ne.s32.totalorder %s405, %s406
      %p420 = scmp.eq.s32.totalorder %s48, 3
      %p421 = por %p419, %p420
      %p423 = scmp.ne.s32.totalorder %s406, %s422
      %p424 = scmp.eq.s32.totalorder %s48, 0
      %p425 = por %p423, %p424
      %s426 = ssub.s32 %s50, %s57
      %p427 = scmp.eq.s32.totalorder %s426, 0
      %s429 = sadd.s32 %s428, 1
      %s430 = scalar_select %p427, %s428, %s429
      %p433 = pneg %p427
      %p434 = scmp.eq.s32.totalorder %s42, 3
      %p435 = por %p433, %p434
      %p436 = scmp.ne.s32.totalorder %s428, %s431
      %p437 = scmp.eq.s32.totalorder %s42, 0
      %p438 = por %p436, %p437
      %p439 = scmp.ne.s32.totalorder %s428, %s431
      %p440 = scmp.eq.s32.totalorder %s47, 3
      %p441 = por %p439, %p440
      %p442 = scmp.ne.s32.totalorder %s431, %s432
      %p443 = scmp.eq.s32.totalorder %s47, 0
      %p444 = por %p442, %p443
      %p445 = scmp.ne.s32.totalorder %s431, %s432
      %p446 = scmp.eq.s32.totalorder %s48, 3
      %p447 = por %p445, %p446
      %p449 = scmp.ne.s32.totalorder %s432, %s448
      %p450 = scmp.eq.s32.totalorder %s48, 0
      %p451 = por %p449, %p450
      %s452 = ssub.s32 %s50, %s57
      %p453 = scmp.eq.s32.totalorder %s452, 0
      %s455 = sadd.s32 %s454, 1
      %s456 = scalar_select %p453, %s454, %s455
      %p459 = pneg %p453
      %p460 = scmp.eq.s32.totalorder %s42, 3
      %p461 = por %p459, %p460
      %p462 = scmp.ne.s32.totalorder %s454, %s457
      %p463 = scmp.eq.s32.totalorder %s42, 0
      %p464 = por %p462, %p463
      %p465 = scmp.ne.s32.totalorder %s454, %s457
      %p466 = scmp.eq.s32.totalorder %s47, 3
      %p467 = por %p465, %p466
      %p468 = scmp.ne.s32.totalorder %s457, %s458
      %p469 = scmp.eq.s32.totalorder %s47, 0
      %p470 = por %p468, %p469
      %p471 = scmp.ne.s32.totalorder %s457, %s458
      %p472 = scmp.eq.s32.totalorder %s48, 3
      %p473 = por %p471, %p472
      %p475 = scmp.ne.s32.totalorder %s458, %s474
      %p476 = scmp.eq.s32.totalorder %s48, 0
      %p477 = por %p475, %p476
      %s478 = ssub.s32 %s50, %s57
      %p479 = scmp.eq.s32.totalorder %s478, 0
      %s481 = sadd.s32 %s480, 1
      %s482 = scalar_select %p479, %s480, %s481
      %p485 = pneg %p479
      %p486 = scmp.eq.s32.totalorder %s42, 3
      %p487 = por %p485, %p486
      %p488 = scmp.ne.s32.totalorder %s480, %s483
      %p489 = scmp.eq.s32.totalorder %s42, 0
      %p490 = por %p488, %p489
      %p491 = scmp.ne.s32.totalorder %s480, %s483
      %p492 = scmp.eq.s32.totalorder %s47, 3
      %p493 = por %p491, %p492
      %p494 = scmp.ne.s32.totalorder %s483, %s484
      %p495 = scmp.eq.s32.totalorder %s47, 0
      %p496 = por %p494, %p495
      %p497 = scmp.ne.s32.totalorder %s483, %s484
      %p498 = scmp.eq.s32.totalorder %s48, 3
      %p499 = por %p497, %p498
      %p501 = scmp.ne.s32.totalorder %s484, %s500
      %p502 = scmp.eq.s32.totalorder %s48, 0
      %p503 = por %p501, %p502
      %s504 = ssub.s32 %s50, %s57
      %p505 = scmp.eq.s32.totalorder %s504, 0
      %s507 = sadd.s32 %s506, 1
      %s508 = scalar_select %p505, %s506, %s507
      %p511 = pneg %p505
      %p512 = scmp.eq.s32.totalorder %s42, 3
      %p513 = por %p511, %p512
      %p514 = scmp.ne.s32.totalorder %s506, %s509
      %p515 = scmp.eq.s32.totalorder %s42, 0
      %p516 = por %p514, %p515
      %p517 = scmp.ne.s32.totalorder %s506, %s509
      %p518 = scmp.eq.s32.totalorder %s47, 3
      %p519 = por %p517, %p518
      %p520 = scmp.ne.s32.totalorder %s509, %s510
      %p521 = scmp.eq.s32.totalorder %s47, 0
      %p522 = por %p520, %p521
      %p523 = scmp.ne.s32.totalorder %s509, %s510
      %p524 = scmp.eq.s32.totalorder %s48, 3
      %p525 = por %p523, %p524
      %p527 = scmp.ne.s32.totalorder %s510, %s526
      %p528 = scmp.eq.s32.totalorder %s48, 0
      %p529 = por %p527, %p528
      %s530 = ssub.s32 %s50, %s57
      %p531 = scmp.eq.s32.totalorder %s530, 0
      %s533 = sadd.s32 %s532, 1
      %s534 = scalar_select %p531, %s532, %s533
      %p537 = pneg %p531
      %p538 = scmp.eq.s32.totalorder %s42, 3
      %p539 = por %p537, %p538
      %p540 = scmp.ne.s32.totalorder %s532, %s535
      %p541 = scmp.eq.s32.totalorder %s42, 0
      %p542 = por %p540, %p541
      %p543 = scmp.ne.s32.totalorder %s532, %s535
      %p544 = scmp.eq.s32.totalorder %s47, 3
      %p545 = por %p543, %p544
      %p546 = scmp.ne.s32.totalorder %s535, %s536
      %p547 = scmp.eq.s32.totalorder %s47, 0
      %p548 = por %p546, %p547
      %p549 = scmp.ne.s32.totalorder %s535, %s536
      %p550 = scmp.eq.s32.totalorder %s48, 3
      %p551 = por %p549, %p550
      %p553 = scmp.ne.s32.totalorder %s536, %s552
      %p554 = scmp.eq.s32.totalorder %s48, 0
      %p555 = por %p553, %p554
      %s556 = ssub.s32 %s50, %s57
      %p557 = scmp.eq.s32.totalorder %s556, 0
      %s559 = sadd.s32 %s558, 1
      %s560 = scalar_select %p557, %s558, %s559
      %p563 = pneg %p557
      %p564 = scmp.eq.s32.totalorder %s42, 3
      %p565 = por %p563, %p564
      %p566 = scmp.ne.s32.totalorder %s558, %s561
      %p567 = scmp.eq.s32.totalorder %s42, 0
      %p568 = por %p566, %p567
      %p569 = scmp.ne.s32.totalorder %s558, %s561
      %p570 = scmp.eq.s32.totalorder %s47, 3
      %p571 = por %p569, %p570
      %p572 = scmp.ne.s32.totalorder %s561, %s562
      %p573 = scmp.eq.s32.totalorder %s47, 0
      %p574 = por %p572, %p573
      %p575 = scmp.ne.s32.totalorder %s561, %s562
      %p576 = scmp.eq.s32.totalorder %s48, 3
      %p577 = por %p575, %p576
      %p579 = scmp.ne.s32.totalorder %s562, %s578
      %p580 = scmp.eq.s32.totalorder %s48, 0
      %p581 = por %p579, %p580
      %s582 = ssub.s32 %s50, %s57
      %p583 = scmp.eq.s32.totalorder %s582, 0
      %s585 = sadd.s32 %s584, 1
      %s586 = scalar_select %p583, %s584, %s585
      %p589 = pneg %p583
      %p590 = scmp.eq.s32.totalorder %s42, 3
      %p591 = por %p589, %p590
      %p592 = scmp.ne.s32.totalorder %s584, %s587
      %p593 = scmp.eq.s32.totalorder %s42, 0
      %p594 = por %p592, %p593
      %p595 = scmp.ne.s32.totalorder %s584, %s587
      %p596 = scmp.eq.s32.totalorder %s47, 3
      %p597 = por %p595, %p596
      %p598 = scmp.ne.s32.totalorder %s587, %s588
      %p599 = scmp.eq.s32.totalorder %s47, 0
      %p600 = por %p598, %p599
      %p601 = scmp.ne.s32.totalorder %s587, %s588
      %p602 = scmp.eq.s32.totalorder %s48, 3
      %p603 = por %p601, %p602
      %p605 = scmp.ne.s32.totalorder %s588, %s604
      %p606 = scmp.eq.s32.totalorder %s48, 0
      %p607 = por %p605, %p606
      %s608 = ssub.s32 %s50, %s57
      %p609 = scmp.eq.s32.totalorder %s608, 0
      %s611 = sadd.s32 %s610, 1
      %s612 = scalar_select %p609, %s610, %s611
      %p615 = pneg %p609
      %p616 = scmp.eq.s32.totalorder %s42, 3
      %p617 = por %p615, %p616
      %p618 = scmp.ne.s32.totalorder %s610, %s613
      %p619 = scmp.eq.s32.totalorder %s42, 0
      %p620 = por %p618, %p619
      %p621 = scmp.ne.s32.totalorder %s610, %s613
      %p622 = scmp.eq.s32.totalorder %s47, 3
      %p623 = por %p621, %p622
      %p624 = scmp.ne.s32.totalorder %s613, %s614
      %p625 = scmp.eq.s32.totalorder %s47, 0
      %p626 = por %p624, %p625
      %p627 = scmp.ne.s32.totalorder %s613, %s614
      %p628 = scmp.eq.s32.totalorder %s48, 3
      %p629 = por %p627, %p628
      %p631 = scmp.ne.s32.totalorder %s614, %s630
      %p632 = scmp.eq.s32.totalorder %s48, 0
      %p633 = por %p631, %p632
      %s635 = sadd.s32 %s634, 1
      %p638 = scmp.eq.s32.totalorder %s42, 3
      %p639 = scmp.ne.s32.totalorder %s634, %s636
      %p640 = scmp.eq.s32.totalorder %s42, 0
      %p641 = por %p639, %p640
      %p642 = scmp.ne.s32.totalorder %s634, %s636
      %p643 = scmp.eq.s32.totalorder %s47, 3
      %p644 = por %p642, %p643
      %p645 = scmp.ne.s32.totalorder %s636, %s637
      %p646 = scmp.eq.s32.totalorder %s47, 0
      %p647 = por %p645, %p646
      %p648 = scmp.ne.s32.totalorder %s636, %s637
      %p649 = scmp.eq.s32.totalorder %s48, 3
      %p650 = por %p648, %p649
      %p652 = scmp.ne.s32.totalorder %s637, %s651
      %p653 = scmp.eq.s32.totalorder %s48, 0
      %p654 = por %p652, %p653
      %s656 = sadd.s32 %s655, 1
      %p659 = scmp.eq.s32.totalorder %s42, 3
      %p660 = scmp.ne.s32.totalorder %s655, %s657
      %p661 = scmp.eq.s32.totalorder %s42, 0
      %p662 = por %p660, %p661
      %p663 = scmp.ne.s32.totalorder %s655, %s657
      %p664 = scmp.eq.s32.totalorder %s47, 3
      %p665 = por %p663, %p664
      %p666 = scmp.ne.s32.totalorder %s657, %s658
      %p667 = scmp.eq.s32.totalorder %s47, 0
      %p668 = por %p666, %p667
      %p669 = scmp.ne.s32.totalorder %s657, %s658
      %p670 = scmp.eq.s32.totalorder %s48, 3
      %p671 = por %p669, %p670
      %p673 = scmp.ne.s32.totalorder %s658, %s672
      %p674 = scmp.eq.s32.totalorder %s48, 0
      %p675 = por %p673, %p674
      %s676 = ssub.s32 %s49, %s61
      %p677 = scmp.eq.s32.totalorder %s676, 0
      %s679 = sadd.s32 %s678, 1
      %s680 = scalar_select %p677, %s678, %s679
      %p683 = pneg %p677
      %p684 = scmp.eq.s32.totalorder %s42, 3
      %p685 = por %p683, %p684
      %p686 = scmp.ne.s32.totalorder %s678, %s681
      %p687 = scmp.eq.s32.totalorder %s42, 0
      %p688 = por %p686, %p687
      %p689 = scmp.ne.s32.totalorder %s678, %s681
      %p690 = scmp.eq.s32.totalorder %s47, 3
      %p691 = por %p689, %p690
      %p692 = scmp.ne.s32.totalorder %s681, %s682
      %p693 = scmp.eq.s32.totalorder %s47, 0
      %p694 = por %p692, %p693
      %p695 = scmp.ne.s32.totalorder %s681, %s682
      %p696 = scmp.eq.s32.totalorder %s48, 3
      %p697 = por %p695, %p696
      %p699 = scmp.ne.s32.totalorder %s682, %s698
      %p700 = scmp.eq.s32.totalorder %s48, 0
      %p701 = por %p699, %p700
      %p702 = scmp.le.s32.totalorder 1, %s42
      %p703 = scmp.lt.s32.totalorder %s42, 5
      %p704 = pnand %p702, %p703
      %p705 = pneg %p704
      // Predicated region
      $region9: #{tpu_custom_call.1} parent=5 // pred_check
        _
      $region10: #{tpu_custom_call.1} parent=5 // pred_check_branch
        %707 = sbr.rel (%p704) target = $region12
      $region11: #{tpu_custom_call.1} parent=5 // pred_region
        %s708 = ssub.s32 %s42, 1
        // Predicated region
        $region13: #{tpu_custom_call.1} parent=11 // pred_check
          %p709 = pneg %p647
        $region14: #{tpu_custom_call.1} parent=11 // pred_check_branch
          %711 = sbr.rel (%p709) target = $region16
        $region15: #{tpu_custom_call.1} parent=11 // pred_region
          _
        $region16: #{tpu_custom_call.1} parent=11 // pred_fallthru
          _
        // Predicated region
        $region17: #{tpu_custom_call.1} parent=11 // pred_check
          %p712 = pneg %p668
        $region18: #{tpu_custom_call.1} parent=11 // pred_check_branch
          %714 = sbr.rel (%p712) target = $region20
        $region19: #{tpu_custom_call.1} parent=11 // pred_region
          _
        $region20: #{tpu_custom_call.1} parent=11 // pred_fallthru
          _
      $region12: #{tpu_custom_call.1} parent=5 // pred_fallthru
        _
      %p715 = scmp.lt.s32.totalorder %s42, 4
      // Predicated region
      $region21: #{tpu_custom_call.1} parent=5 // pred_check
        %p716 = pneg %p715
      $region22: #{tpu_custom_call.1} parent=5 // pred_check_branch
        %718 = sbr.rel (%p716) target = $region24
      $region23: #{tpu_custom_call.1} parent=5 // pred_region
        // Predicated region
        $region25: #{tpu_custom_call.1} parent=23 // pred_check
          %p719 = pneg %p74
        $region26: #{tpu_custom_call.1} parent=23 // pred_check_branch
          %721 = sbr.rel (%p719) target = $region28
        $region27: #{tpu_custom_call.1} parent=23 // pred_region
          %p722 = scmp.lt.s32.totalorder %s49, 1
          %s723 = scalar_select %p722, %s49, 1
          %s724 = smul.addr %s723, 8
          %s725 = scalar_lea.vmem %s0, %s724
        $region28: #{tpu_custom_call.1} parent=23 // pred_fallthru
          _
        // Predicated region
        $region29: #{tpu_custom_call.1} parent=23 // pred_check
          %p726 = pneg %p100
        $region30: #{tpu_custom_call.1} parent=23 // pred_check_branch
          %728 = sbr.rel (%p726) target = $region32
        $region31: #{tpu_custom_call.1} parent=23 // pred_region
          %p729 = scmp.lt.s32.totalorder %s49, 1
          %s730 = scalar_select %p729, %s49, 1
          %s731 = smul.addr %s730, 8
          %s732 = scalar_lea.vmem %s1, %s731
        $region32: #{tpu_custom_call.1} parent=23 // pred_fallthru
          _
        // Predicated region
        $region33: #{tpu_custom_call.1} parent=23 // pred_check
          %p733 = pneg %p126
        $region34: #{tpu_custom_call.1} parent=23 // pred_check_branch
          %735 = sbr.rel (%p733) target = $region36
        $region35: #{tpu_custom_call.1} parent=23 // pred_region
          %p736 = scmp.lt.s32.totalorder %s50, 1
          %s737 = scalar_select %p736, %s50, 1
          %s738 = smul.addr %s737, 4
          %s739 = smul.addr %s738, 4
          %s740 = scalar_lea.vmem %s2, %s739
        $region36: #{tpu_custom_call.1} parent=23 // pred_fallthru
          _
        // Predicated region
        $region37: #{tpu_custom_call.1} parent=23 // pred_check
          %p741 = pneg %p152
        $region38: #{tpu_custom_call.1} parent=23 // pred_check_branch
          %743 = sbr.rel (%p741) target = $region40
        $region39: #{tpu_custom_call.1} parent=23 // pred_region
          %p744 = scmp.lt.s32.totalorder %s50, 1
          %s745 = scalar_select %p744, %s50, 1
          %s746 = scalar_lea.vmem %s3, %s745
        $region40: #{tpu_custom_call.1} parent=23 // pred_fallthru
          _
        // Predicated region
        $region41: #{tpu_custom_call.1} parent=23 // pred_check
          %p747 = pneg %p178
        $region42: #{tpu_custom_call.1} parent=23 // pred_check_branch
          %749 = sbr.rel (%p747) target = $region44
        $region43: #{tpu_custom_call.1} parent=23 // pred_region
          %p750 = scmp.lt.s32.totalorder %s50, 1
          %s751 = scalar_select %p750, %s50, 1
          %s752 = smul.addr %s751, 4
          %s753 = smul.addr %s752, 4
          %s754 = scalar_lea.vmem %s4, %s753
        $region44: #{tpu_custom_call.1} parent=23 // pred_fallthru
          _
        // Predicated region
        $region45: #{tpu_custom_call.1} parent=23 // pred_check
          %p755 = pneg %p204
        $region46: #{tpu_custom_call.1} parent=23 // pred_check_branch
          %757 = sbr.rel (%p755) target = $region48
        $region47: #{tpu_custom_call.1} parent=23 // pred_region
          %p758 = scmp.lt.s32.totalorder %s50, 1
          %s759 = scalar_select %p758, %s50, 1
          %s760 = scalar_lea.vmem %s5, %s759
        $region48: #{tpu_custom_call.1} parent=23 // pred_fallthru
          _
        // Predicated region
        $region49: #{tpu_custom_call.1} parent=23 // pred_check
          %p761 = pneg %p230
        $region50: #{tpu_custom_call.1} parent=23 // pred_check_branch
          %763 = sbr.rel (%p761) target = $region52
        $region51: #{tpu_custom_call.1} parent=23 // pred_region
          %p764 = scmp.lt.s32.totalorder %s50, 1
          %s765 = scalar_select %p764, %s50, 1
          %s766 = smul.addr %s765, 4
          %s767 = smul.addr %s766, 4
          %s768 = scalar_lea.vmem %s6, %s767
        $region52: #{tpu_custom_call.1} parent=23 // pred_fallthru
          _
        // Predicated region
        $region53: #{tpu_custom_call.1} parent=23 // pred_check
          %p769 = pneg %p256
        $region54: #{tpu_custom_call.1} parent=23 // pred_check_branch
          %771 = sbr.rel (%p769) target = $region56
        $region55: #{tpu_custom_call.1} parent=23 // pred_region
          %p772 = scmp.lt.s32.totalorder %s50, 1
          %s773 = scalar_select %p772, %s50, 1
          %s774 = scalar_lea.vmem %s7, %s773
        $region56: #{tpu_custom_call.1} parent=23 // pred_fallthru
          _
        // Predicated region
        $region57: #{tpu_custom_call.1} parent=23 // pred_check
          %p775 = pneg %p282
        $region58: #{tpu_custom_call.1} parent=23 // pred_check_branch
          %777 = sbr.rel (%p775) target = $region60
        $region59: #{tpu_custom_call.1} parent=23 // pred_region
          %p778 = scmp.lt.s32.totalorder %s50, 1
          %s779 = scalar_select %p778, %s50, 1
          %s780 = smul.addr %s779, 4
          %s781 = smul.addr %s780, 4
          %s782 = scalar_lea.vmem %s8, %s781
        $region60: #{tpu_custom_call.1} parent=23 // pred_fallthru
          _
        // Predicated region
        $region61: #{tpu_custom_call.1} parent=23 // pred_check
          %p783 = pneg %p308
        $region62: #{tpu_custom_call.1} parent=23 // pred_check_branch
          %785 = sbr.rel (%p783) target = $region64
        $region63: #{tpu_custom_call.1} parent=23 // pred_region
          %p786 = scmp.lt.s32.totalorder %s50, 1
          %s787 = scalar_select %p786, %s50, 1
          %s788 = scalar_lea.vmem %s9, %s787
        $region64: #{tpu_custom_call.1} parent=23 // pred_fallthru
          _
        // Predicated region
        $region65: #{tpu_custom_call.1} parent=23 // pred_check
          %p789 = pneg %p334
        $region66: #{tpu_custom_call.1} parent=23 // pred_check_branch
          %791 = sbr.rel (%p789) target = $region68
        $region67: #{tpu_custom_call.1} parent=23 // pred_region
          %s792 = sand.u32 %s324, 1
          %s793 = scalar_lea.sflag [#allocation4], %s792
          %s794 = sand.u32 %s324, 1
          %s795 = smul.addr %s794, 16
          %s796 = scalar_lea.vmem [#allocation3], %s795
          %s798 = ssub.s32 256, 256
          %799 = vsyncadd %s793, %s798
          %s800 = smul.addr %s50, 4
          %s801 = smul.addr %s800, 64
          %s802 = scalar_lea.hbm %s10, %s801
          %s803 = sshll.u32 %s796, 4
          %s804 = int_to_ptr.vmem [resolvable:$true] %s803
          %809 = dma.hbm_to_vmem [thread:$0]  %s802, 256, %s804, %s793, 64, 64, 4
        $region68: #{tpu_custom_call.1} parent=23 // pred_fallthru
          _
        // Predicated region
        $region69: #{tpu_custom_call.1} parent=23 // pred_check
          %p810 = pneg %p360
        $region70: #{tpu_custom_call.1} parent=23 // pred_check_branch
          %812 = sbr.rel (%p810) target = $region72
        $region71: #{tpu_custom_call.1} parent=23 // pred_region
          %p813 = scmp.lt.s32.totalorder %s50, 1
          %s814 = scalar_select %p813, %s50, 1
          %s815 = scalar_lea.vmem %s11, %s814
        $region72: #{tpu_custom_call.1} parent=23 // pred_fallthru
          _
        // Predicated region
        $region73: #{tpu_custom_call.1} parent=23 // pred_check
          %p816 = pneg %p386
        $region74: #{tpu_custom_call.1} parent=23 // pred_check_branch
          %818 = sbr.rel (%p816) target = $region76
        $region75: #{tpu_custom_call.1} parent=23 // pred_region
          %p819 = scmp.lt.s32.totalorder %s50, 1
          %s820 = scalar_select %p819, %s50, 1
          %s821 = scalar_lea.vmem %s12, %s820
        $region76: #{tpu_custom_call.1} parent=23 // pred_fallthru
          _
        // Predicated region
        $region77: #{tpu_custom_call.1} parent=23 // pred_check
          %p822 = pneg %p412
        $region78: #{tpu_custom_call.1} parent=23 // pred_check_branch
          %824 = sbr.rel (%p822) target = $region80
        $region79: #{tpu_custom_call.1} parent=23 // pred_region
          %p825 = scmp.lt.s32.totalorder %s50, 1
          %s826 = scalar_select %p825, %s50, 1
          %s827 = scalar_lea.vmem %s13, %s826
        $region80: #{tpu_custom_call.1} parent=23 // pred_fallthru
          _
        // Predicated region
        $region81: #{tpu_custom_call.1} parent=23 // pred_check
          %p828 = pneg %p438
        $region82: #{tpu_custom_call.1} parent=23 // pred_check_branch
          %830 = sbr.rel (%p828) target = $region84
        $region83: #{tpu_custom_call.1} parent=23 // pred_region
          %s831 = sand.u32 %s42, 1
          %s832 = scalar_lea.sflag [#allocation6], %s831
          %s833 = sand.u32 %s428, 1
          %s834 = scalar_lea.vmem [#allocation5], %s833
          %s836 = ssub.s32 16, 16
          %837 = vsyncadd %s832, %s836
          %s838 = smul.addr %s50, 16
          %s839 = scalar_lea.hbm %s14, %s838
          %s841 = sshll.u32 %s834, 4
          %s842 = int_to_ptr.vmem [resolvable:$true] %s841
          %844 = dma.hbm_to_vmem [thread:$0]  %s839, 16, %s842, %s832
        $region84: #{tpu_custom_call.1} parent=23 // pred_fallthru
          _
        // Predicated region
        $region85: #{tpu_custom_call.1} parent=23 // pred_check
          %p845 = pneg %p464
        $region86: #{tpu_custom_call.1} parent=23 // pred_check_branch
          %847 = sbr.rel (%p845) target = $region88
        $region87: #{tpu_custom_call.1} parent=23 // pred_region
          %s848 = sand.u32 %s42, 1
          %s849 = scalar_lea.sflag [#allocation6], %s848
          %s850 = sand.u32 %s454, 1
          %s851 = scalar_lea.vmem [#allocation7], %s850
          %s853 = ssub.s32 16, 16
          %854 = vsyncadd %s849, %s853
          %s855 = smul.addr %s50, 16
          %s856 = scalar_lea.hbm %s15, %s855
          %s858 = sshll.u32 %s851, 4
          %s859 = int_to_ptr.vmem [resolvable:$true] %s858
          %861 = dma.hbm_to_vmem [thread:$0]  %s856, 16, %s859, %s849
        $region88: #{tpu_custom_call.1} parent=23 // pred_fallthru
          _
        // Predicated region
        $region89: #{tpu_custom_call.1} parent=23 // pred_check
          %p862 = pneg %p490
        $region90: #{tpu_custom_call.1} parent=23 // pred_check_branch
          %864 = sbr.rel (%p862) target = $region92
        $region91: #{tpu_custom_call.1} parent=23 // pred_region
          %s865 = sand.u32 %s42, 1
          %s866 = scalar_lea.sflag [#allocation9], %s865
          %s867 = sand.u32 %s480, 1
          %s868 = scalar_lea.vmem [#allocation8], %s867
          %s870 = ssub.s32 16, 16
          %871 = vsyncadd %s866, %s870
          %s872 = smul.addr %s50, 16
          %s873 = scalar_lea.hbm %s16, %s872
          %s875 = sshll.u32 %s868, 4
          %s876 = int_to_ptr.vmem [resolvable:$true] %s875
          %878 = dma.hbm_to_vmem [thread:$0]  %s873, 16, %s876, %s866
        $region92: #{tpu_custom_call.1} parent=23 // pred_fallthru
          _
        // Predicated region
        $region93: #{tpu_custom_call.1} parent=23 // pred_check
          %p879 = pneg %p516
        $region94: #{tpu_custom_call.1} parent=23 // pred_check_branch
          %881 = sbr.rel (%p879) target = $region96
        $region95: #{tpu_custom_call.1} parent=23 // pred_region
          %s882 = sand.u32 %s42, 1
          %s883 = scalar_lea.sflag [#allocation9], %s882
          %s884 = sand.u32 %s506, 1
          %s885 = scalar_lea.vmem [#allocation10], %s884
          %s887 = ssub.s32 16, 16
          %888 = vsyncadd %s883, %s887
          %s889 = smul.addr %s50, 16
          %s890 = scalar_lea.hbm %s17, %s889
          %s892 = sshll.u32 %s885, 4
          %s893 = int_to_ptr.vmem [resolvable:$true] %s892
          %895 = dma.hbm_to_vmem [thread:$0]  %s890, 16, %s893, %s883
        $region96: #{tpu_custom_call.1} parent=23 // pred_fallthru
          _
        // Predicated region
        $region97: #{tpu_custom_call.1} parent=23 // pred_check
          %p896 = pneg %p542
        $region98: #{tpu_custom_call.1} parent=23 // pred_check_branch
          %898 = sbr.rel (%p896) target = $region100
        $region99: #{tpu_custom_call.1} parent=23 // pred_region
          %p899 = scmp.lt.s32.totalorder %s50, 1
          %s900 = scalar_select %p899, %s50, 1
          %s901 = smul.addr %s900, 4
          %s902 = smul.addr %s901, 8
          %s903 = scalar_lea.vmem %s18, %s902
        $region100: #{tpu_custom_call.1} parent=23 // pred_fallthru
          _
        // Predicated region
        $region101: #{tpu_custom_call.1} parent=23 // pred_check
          %p904 = pneg %p568
        $region102: #{tpu_custom_call.1} parent=23 // pred_check_branch
          %906 = sbr.rel (%p904) target = $region104
        $region103: #{tpu_custom_call.1} parent=23 // pred_region
          %s907 = sand.u32 %s42, 1
          %s908 = scalar_lea.sflag [#allocation12], %s907
          %s909 = sand.u32 %s558, 1
          %s910 = scalar_lea.vmem [#allocation11], %s909
          %s912 = ssub.s32 16, 16
          %913 = vsyncadd %s908, %s912
          %s914 = smul.addr %s50, 16
          %s915 = scalar_lea.hbm %s19, %s914
          %s917 = sshll.u32 %s910, 4
          %s918 = int_to_ptr.vmem [resolvable:$true] %s917
          %920 = dma.hbm_to_vmem [thread:$0]  %s915, 16, %s918, %s908
        $region104: #{tpu_custom_call.1} parent=23 // pred_fallthru
          _
        // Predicated region
        $region105: #{tpu_custom_call.1} parent=23 // pred_check
          %p921 = pneg %p594
        $region106: #{tpu_custom_call.1} parent=23 // pred_check_branch
          %923 = sbr.rel (%p921) target = $region108
        $region107: #{tpu_custom_call.1} parent=23 // pred_region
          %p924 = scmp.lt.s32.totalorder %s50, 1
          %s925 = scalar_select %p924, %s50, 1
          %s926 = smul.addr %s925, 8
          %s927 = smul.addr %s926, 8
          %s928 = scalar_lea.vmem %s20, %s927
        $region108: #{tpu_custom_call.1} parent=23 // pred_fallthru
          _
        // Predicated region
        $region109: #{tpu_custom_call.1} parent=23 // pred_check
          %p929 = pneg %p620
        $region110: #{tpu_custom_call.1} parent=23 // pred_check_branch
          %931 = sbr.rel (%p929) target = $region112
        $region111: #{tpu_custom_call.1} parent=23 // pred_region
          %s932 = sand.u32 %s42, 1
          %s933 = scalar_lea.sflag [#allocation12], %s932
          %s934 = sand.u32 %s610, 1
          %s935 = scalar_lea.vmem [#allocation13], %s934
          %s937 = ssub.s32 16, 16
          %938 = vsyncadd %s933, %s937
          %s939 = smul.addr %s50, 16
          %s940 = scalar_lea.hbm %s21, %s939
          %s942 = sshll.u32 %s935, 4
          %s943 = int_to_ptr.vmem [resolvable:$true] %s942
          %945 = dma.hbm_to_vmem [thread:$0]  %s940, 16, %s943, %s933
        $region112: #{tpu_custom_call.1} parent=23 // pred_fallthru
          _
      $region24: #{tpu_custom_call.1} parent=5 // pred_fallthru
        _
      %p946 = scmp.le.s32.totalorder 1, %s42
      %p947 = scmp.lt.s32.totalorder %s42, 5
      %p948 = pnand %p946, %p947
      %p949 = pneg %p948
      // Predicated region
      $region113: #{tpu_custom_call.1} parent=5 // pred_check
        _
      $region114: #{tpu_custom_call.1} parent=5 // pred_check_branch
        %951 = sbr.rel (%p948) target = $region116
      $region115: #{tpu_custom_call.1} parent=5 // pred_region
        %s952 = ssub.s32 %s42, 1
        %s953 = sand.u32 %s327, 1
        %s954 = scalar_lea.sflag [#allocation4], %s953
        %s955 = sand.u32 %s327, 1
        %s956 = smul.addr %s955, 16
        %s957 = scalar_lea.vmem [#allocation3], %s956
        // Predicated region
        $region117: #{tpu_custom_call.1} parent=115 // pred_check
          %p958 = pneg %p340
        $region118: #{tpu_custom_call.1} parent=115 // pred_check_branch
          %960 = sbr.rel (%p958) target = $region120
        $region119: #{tpu_custom_call.1} parent=115 // pred_region
          %961 = dma.done %s954, 256
        $region120: #{tpu_custom_call.1} parent=115 // pred_fallthru
          _
        %s962 = sand.u32 %s47, 1
        %s963 = scalar_lea.sflag [#allocation6], %s962
        %s964 = sand.u32 %s431, 1
        %s965 = scalar_lea.vmem [#allocation5], %s964
        // Predicated region
        $region121: #{tpu_custom_call.1} parent=115 // pred_check
          %p966 = pneg %p444
        $region122: #{tpu_custom_call.1} parent=115 // pred_check_branch
          %968 = sbr.rel (%p966) target = $region124
        $region123: #{tpu_custom_call.1} parent=115 // pred_region
          %969 = dma.done %s963, 16
        $region124: #{tpu_custom_call.1} parent=115 // pred_fallthru
          _
        %s970 = sand.u32 %s47, 1
        %s971 = scalar_lea.sflag [#allocation6], %s970
        %s972 = sand.u32 %s457, 1
        %s973 = scalar_lea.vmem [#allocation7], %s972
        // Predicated region
        $region125: #{tpu_custom_call.1} parent=115 // pred_check
          %p974 = pneg %p470
        $region126: #{tpu_custom_call.1} parent=115 // pred_check_branch
          %976 = sbr.rel (%p974) target = $region128
        $region127: #{tpu_custom_call.1} parent=115 // pred_region
          %977 = dma.done %s971, 16
        $region128: #{tpu_custom_call.1} parent=115 // pred_fallthru
          _
        %s978 = sand.u32 %s47, 1
        %s979 = scalar_lea.sflag [#allocation9], %s978
        %s980 = sand.u32 %s483, 1
        %s981 = scalar_lea.vmem [#allocation8], %s980
        // Predicated region
        $region129: #{tpu_custom_call.1} parent=115 // pred_check
          %p982 = pneg %p496
        $region130: #{tpu_custom_call.1} parent=115 // pred_check_branch
          %984 = sbr.rel (%p982) target = $region132
        $region131: #{tpu_custom_call.1} parent=115 // pred_region
          %985 = dma.done %s979, 16
        $region132: #{tpu_custom_call.1} parent=115 // pred_fallthru
          _
        %s986 = sand.u32 %s47, 1
        %s987 = scalar_lea.sflag [#allocation9], %s986
        %s988 = sand.u32 %s509, 1
        %s989 = scalar_lea.vmem [#allocation10], %s988
        // Predicated region
        $region133: #{tpu_custom_call.1} parent=115 // pred_check
          %p990 = pneg %p522
        $region134: #{tpu_custom_call.1} parent=115 // pred_check_branch
          %992 = sbr.rel (%p990) target = $region136
        $region135: #{tpu_custom_call.1} parent=115 // pred_region
          %993 = dma.done %s987, 16
        $region136: #{tpu_custom_call.1} parent=115 // pred_fallthru
          _
        %s994 = sand.u32 %s47, 1
        %s995 = scalar_lea.sflag [#allocation12], %s994
        %s996 = sand.u32 %s561, 1
        %s997 = scalar_lea.vmem [#allocation11], %s996
        // Predicated region
        $region137: #{tpu_custom_call.1} parent=115 // pred_check
          %p998 = pneg %p574
        $region138: #{tpu_custom_call.1} parent=115 // pred_check_branch
          %1000 = sbr.rel (%p998) target = $region140
        $region139: #{tpu_custom_call.1} parent=115 // pred_region
          %1001 = dma.done %s995, 16
        $region140: #{tpu_custom_call.1} parent=115 // pred_fallthru
          _
        %s1002 = sand.u32 %s47, 1
        %s1003 = scalar_lea.sflag [#allocation12], %s1002
        %s1004 = sand.u32 %s613, 1
        %s1005 = scalar_lea.vmem [#allocation13], %s1004
        // Predicated region
        $region141: #{tpu_custom_call.1} parent=115 // pred_check
          %p1006 = pneg %p626
        $region142: #{tpu_custom_call.1} parent=115 // pred_check_branch
          %1008 = sbr.rel (%p1006) target = $region144
        $region143: #{tpu_custom_call.1} parent=115 // pred_region
          %1009 = dma.done %s1003, 16
        $region144: #{tpu_custom_call.1} parent=115 // pred_fallthru
          _
        %p1010 = scmp.lt.s32.totalorder %s51, 1
        %s1011 = scalar_select %p1010, %s51, 1
        %s1012 = smul.addr %s1011, 8
        %s1013 = scalar_lea.vmem %s0, %s1012
        %p1014 = pneg %p80
        %p1015 = pneg %p77
        %p1016 = scmp.lt.s32.totalorder %s51, 1
        %s1017 = scalar_select %p1016, %s51, 1
        %s1018 = smul.addr %s1017, 8
        %s1019 = scalar_lea.vmem %s1, %s1018
        %p1020 = pneg %p106
        %p1021 = pneg %p103
        %p1022 = scmp.lt.s32.totalorder %s52, 1
        %s1023 = scalar_select %p1022, %s52, 1
        %s1024 = smul.addr %s1023, 4
        %s1025 = smul.addr %s1024, 4
        %s1026 = scalar_lea.vmem %s2, %s1025
        %p1027 = pneg %p132
        %p1028 = pneg %p129
        %p1029 = scmp.lt.s32.totalorder %s52, 1
        %s1030 = scalar_select %p1029, %s52, 1
        %s1031 = scalar_lea.vmem %s3, %s1030
        %p1032 = pneg %p158
        %p1033 = pneg %p155
        %p1034 = scmp.lt.s32.totalorder %s52, 1
        %s1035 = scalar_select %p1034, %s52, 1
        %s1036 = smul.addr %s1035, 4
        %s1037 = smul.addr %s1036, 4
        %s1038 = scalar_lea.vmem %s4, %s1037
        %p1039 = pneg %p184
        %p1040 = pneg %p181
        %p1041 = scmp.lt.s32.totalorder %s52, 1
        %s1042 = scalar_select %p1041, %s52, 1
        %s1043 = scalar_lea.vmem %s5, %s1042
        %p1044 = pneg %p210
        %p1045 = pneg %p207
        %p1046 = scmp.lt.s32.totalorder %s52, 1
        %s1047 = scalar_select %p1046, %s52, 1
        %s1048 = smul.addr %s1047, 4
        %s1049 = smul.addr %s1048, 4
        %s1050 = scalar_lea.vmem %s6, %s1049
        %p1051 = pneg %p236
        %p1052 = pneg %p233
        %p1053 = scmp.lt.s32.totalorder %s52, 1
        %s1054 = scalar_select %p1053, %s52, 1
        %s1055 = scalar_lea.vmem %s7, %s1054
        %p1056 = pneg %p262
        %p1057 = pneg %p259
        %p1058 = scmp.lt.s32.totalorder %s52, 1
        %s1059 = scalar_select %p1058, %s52, 1
        %s1060 = smul.addr %s1059, 4
        %s1061 = smul.addr %s1060, 4
        %s1062 = scalar_lea.vmem %s8, %s1061
        %p1063 = pneg %p288
        %p1064 = pneg %p285
        %p1065 = scmp.lt.s32.totalorder %s52, 1
        %s1066 = scalar_select %p1065, %s52, 1
        %s1067 = scalar_lea.vmem %s9, %s1066
        %p1068 = pneg %p314
        %p1069 = pneg %p311
        %s1070 = sand.u32 %s327, 1
        %s1071 = scalar_lea.sflag [#allocation4], %s1070
        %s1072 = sand.u32 %s327, 1
        %s1073 = smul.addr %s1072, 16
        %s1074 = scalar_lea.vmem [#allocation3], %s1073
        %p1075 = pneg %p340
        %p1076 = pneg %p337
        %p1077 = scmp.lt.s32.totalorder %s52, 1
        %s1078 = scalar_select %p1077, %s52, 1
        %s1079 = scalar_lea.vmem %s11, %s1078
        %p1080 = pneg %p366
        %p1081 = pneg %p363
        %p1082 = scmp.lt.s32.totalorder %s52, 1
        %s1083 = scalar_select %p1082, %s52, 1
        %s1084 = scalar_lea.vmem %s12, %s1083
        %p1085 = pneg %p392
        %p1086 = pneg %p389
        %p1087 = scmp.lt.s32.totalorder %s52, 1
        %s1088 = scalar_select %p1087, %s52, 1
        %s1089 = scalar_lea.vmem %s13, %s1088
        %p1090 = pneg %p418
        %p1091 = pneg %p415
        %s1092 = sand.u32 %s47, 1
        %s1093 = scalar_lea.sflag [#allocation6], %s1092
        %s1094 = sand.u32 %s431, 1
        %s1095 = scalar_lea.vmem [#allocation5], %s1094
        %p1096 = pneg %p444
        %p1097 = pneg %p441
        %s1098 = sand.u32 %s47, 1
        %s1099 = scalar_lea.sflag [#allocation6], %s1098
        %s1100 = sand.u32 %s457, 1
        %s1101 = scalar_lea.vmem [#allocation7], %s1100
        %p1102 = pneg %p470
        %p1103 = pneg %p467
        %s1104 = sand.u32 %s47, 1
        %s1105 = scalar_lea.sflag [#allocation9], %s1104
        %s1106 = sand.u32 %s483, 1
        %s1107 = scalar_lea.vmem [#allocation8], %s1106
        %p1108 = pneg %p496
        %p1109 = pneg %p493
        %s1110 = sand.u32 %s47, 1
        %s1111 = scalar_lea.sflag [#allocation9], %s1110
        %s1112 = sand.u32 %s509, 1
        %s1113 = scalar_lea.vmem [#allocation10], %s1112
        %p1114 = pneg %p522
        %p1115 = pneg %p519
        %p1116 = scmp.lt.s32.totalorder %s52, 1
        %s1117 = scalar_select %p1116, %s52, 1
        %s1118 = smul.addr %s1117, 4
        %s1119 = smul.addr %s1118, 8
        %s1120 = scalar_lea.vmem %s18, %s1119
        %p1121 = pneg %p548
        %p1122 = pneg %p545
        %s1123 = sand.u32 %s47, 1
        %s1124 = scalar_lea.sflag [#allocation12], %s1123
        %s1125 = sand.u32 %s561, 1
        %s1126 = scalar_lea.vmem [#allocation11], %s1125
        %p1127 = pneg %p574
        %p1128 = pneg %p571
        %p1129 = scmp.lt.s32.totalorder %s52, 1
        %s1130 = scalar_select %p1129, %s52, 1
        %s1131 = smul.addr %s1130, 8
        %s1132 = smul.addr %s1131, 8
        %s1133 = scalar_lea.vmem %s20, %s1132
        %p1134 = pneg %p600
        %p1135 = pneg %p597
        %s1136 = sand.u32 %s47, 1
        %s1137 = scalar_lea.sflag [#allocation12], %s1136
        %s1138 = sand.u32 %s613, 1
        %s1139 = scalar_lea.vmem [#allocation13], %s1138
        %p1140 = pneg %p626
        %p1141 = pneg %p623
        %p1142 = pneg %p647
        %p1143 = pneg %p644
        %p1144 = pneg %p668
        %p1145 = pneg %p665
        %p1146 = pneg %p694
        %p1147 = pneg %p691
        %p1148 = scmp.lt.s32.totalorder %s51, 1
        %s1149 = scalar_select %p1148, %s51, 1
        %s1150 = smul.addr %s1149, 8
        %s1151 = scalar_lea.vmem %s24, %s1150
        %p1152 = scmp.lt.s32.totalorder %s51, 1
        %s1153 = scalar_select %p1152, %s51, 1
        %s1154 = smul.addr %s1153, 8
        %s1155 = scalar_lea.vmem %s0, %s1154
        %p1156 = scmp.lt.s32.totalorder %s51, 1
        %s1157 = scalar_select %p1156, %s51, 1
        %s1158 = smul.addr %s1157, 8
        %s1159 = scalar_lea.vmem %s1, %s1158
        %p1160 = scmp.lt.s32.totalorder %s52, 1
        %s1161 = scalar_select %p1160, %s52, 1
        %s1162 = smul.addr %s1161, 4
        %s1163 = smul.addr %s1162, 4
        %s1164 = scalar_lea.vmem %s2, %s1163
        %p1165 = scmp.lt.s32.totalorder %s52, 1
        %s1166 = scalar_select %p1165, %s52, 1
        %s1167 = scalar_lea.vmem %s3, %s1166
        %p1168 = scmp.lt.s32.totalorder %s52, 1
        %s1169 = scalar_select %p1168, %s52, 1
        %s1170 = smul.addr %s1169, 4
        %s1171 = smul.addr %s1170, 4
        %s1172 = scalar_lea.vmem %s4, %s1171
        %p1173 = scmp.lt.s32.totalorder %s52, 1
        %s1174 = scalar_select %p1173, %s52, 1
        %s1175 = scalar_lea.vmem %s5, %s1174
        %p1176 = scmp.lt.s32.totalorder %s52, 1
        %s1177 = scalar_select %p1176, %s52, 1
        %s1178 = smul.addr %s1177, 4
        %s1179 = smul.addr %s1178, 4
        %s1180 = scalar_lea.vmem %s6, %s1179
        %p1181 = scmp.lt.s32.totalorder %s52, 1
        %s1182 = scalar_select %p1181, %s52, 1
        %s1183 = scalar_lea.vmem %s7, %s1182
        %p1184 = scmp.lt.s32.totalorder %s52, 1
        %s1185 = scalar_select %p1184, %s52, 1
        %s1186 = smul.addr %s1185, 4
        %s1187 = smul.addr %s1186, 4
        %s1188 = scalar_lea.vmem %s8, %s1187
        %p1189 = scmp.lt.s32.totalorder %s52, 1
        %s1190 = scalar_select %p1189, %s52, 1
        %s1191 = scalar_lea.vmem %s9, %s1190
        %p1192 = scmp.lt.s32.totalorder %s52, 1
        %s1193 = scalar_select %p1192, %s52, 1
        %s1194 = scalar_lea.vmem %s11, %s1193
        %p1195 = scmp.lt.s32.totalorder %s52, 1
        %s1196 = scalar_select %p1195, %s52, 1
        %s1197 = scalar_lea.vmem %s12, %s1196
        %p1198 = scmp.lt.s32.totalorder %s52, 1
        %s1199 = scalar_select %p1198, %s52, 1
        %s1200 = scalar_lea.vmem %s13, %s1199
        %p1201 = scmp.lt.s32.totalorder %s52, 1
        %s1202 = scalar_select %p1201, %s52, 1
        %s1203 = smul.addr %s1202, 4
        %s1204 = smul.addr %s1203, 8
        %s1205 = scalar_lea.vmem %s18, %s1204
        %p1206 = scmp.lt.s32.totalorder %s52, 1
        %s1207 = scalar_select %p1206, %s52, 1
        %s1208 = smul.addr %s1207, 8
        %s1209 = smul.addr %s1208, 8
        %s1210 = scalar_lea.vmem %s20, %s1209
        %p1211 = scmp.lt.s32.totalorder %s51, 1
        %s1212 = scalar_select %p1211, %s51, 1
        %s1213 = smul.addr %s1212, 8
        %s1214 = scalar_lea.vmem %s24, %s1213
        %p1216 = scmp.eq.s32.totalorder %s52, 0
        // Predicated region
        $region145: #{tpu_custom_call.1} parent=115 // pred_check
          %p1217 = pneg %p1216
        $region146: #{tpu_custom_call.1} parent=115 // pred_check_branch
          %1219 = sbr.rel (%p1217) target = $region148
        $region147: #{tpu_custom_call.1} parent=115 // pred_region
          %v1220 = vld [vmem:[%s1155] sm:$0x7f]
          %vm1221 = vcmask 260096
          %1222 = vst.msk [vmem:[#allocation2] sm:$0x7f] %vm1221, %v1220
        $region148: #{tpu_custom_call.1} parent=115 // pred_fallthru
          _
        %v1223 = vld [vmem:[#allocation2] sm:$0x7f]
        %v1224 = vld [vmem:[%s1159] sm:$0x3f]
        %v1225 = vpack.c.bf16 %v1224, %v1224
        %v1226 = vlaneseq
        %v1227 = vshrl.u32 %v1226, 7
        %v1228 = vlaneseq
        %v1229 = vand.u32 %v1228, 127
        %vm1230 = vcmp.gt.s32.totalorder %v1229, %v1227
        %v1231 = vsel %vm1230, -1e+30, 0.0
        %v1232 = vpack.c.bf16 %v1223, %v1223
        %v1233 = vld [vmem:[%s1164] sm:$0xf]
        %v1234 = vld [vmem:[%s1164 + $0x4] sm:$0xf]
        %v1235 = vld [vmem:[%s1164 + $0x8] sm:$0xf]
        %v1236 = vld [vmem:[%s1164 + $0xc] sm:$0xf]
        %v1237 = vld [vmem:[%s1167] sm:$0x1]
        %v1239 = vlaneseq
        %v1240 = vshrl.u32 %v1239, 7
        %v1241 = vsub.s32 0, %v1240
        %v1242 = vrot.slane %v1237, %v1241
        %v1248 = vunpack.c.l.b16 %v1233
        %v1249 = vunpack.c.l.b16 %v1234
        %v1250 = vunpack.c.l.b16 %v1235
        %v1251 = vunpack.c.l.b16 %v1236
        %v1252 = vpack.c.b16 %v1249, %v1248
        %v1253 = vpack.c.b16 %v1251, %v1250
        %vm1256 = vcmask 261120
        %v1258 = vsel %vm1256, %v1232, 0
        %1260 = vmatprep.subr.bf16.mxu0 0
        %1261 = vmatpush1.bf16.msra.mxu0 0
        %1262 = vmatprep.subr.bf16.mxu0 0
        %1263 = vmatpush1.bf16.msra.mxu0 0
        %1264 = vmatprep.subr.bf16.mxu0 0
        %1265 = vmatpush1.bf16.msra.mxu0 0
        %1266 = vmatprep.subr.bf16.mxu0 0
        %1267 = vmatpush1.bf16.msra.mxu0 0
        %1268 = vmatprep.subr.bf16.mxu0 0
        %1269 = vmatpush1.bf16.msra.mxu0 0
        %1270 = vmatprep.subr.bf16.mxu0 0
        %1271 = vmatpush1.bf16.msra.mxu0 0
        %1272 = vmatprep.subr.bf16.mxu0 0
        %1273 = vmatpush1.bf16.msra.mxu0 %v1253
        %1274 = vmatprep.subr.bf16.mxu0 0
        %1275 = vmatpush1.bf16.msra.mxu0 %v1252
        %1276 = vmatprep.subr.bf16.mxu0 0
        %1277 = vmatpush2.bf16.msra.mxu0 0
        %1278 = vmatprep.subr.bf16.mxu0 0
        %1279 = vmatpush2.bf16.msra.mxu0 0
        %1280 = vmatprep.subr.bf16.mxu0 0
        %1281 = vmatpush2.bf16.msra.mxu0 0
        %1282 = vmatprep.subr.bf16.mxu0 0
        %1283 = vmatpush2.bf16.msra.mxu0 0
        %1284 = vmatprep.subr.bf16.mxu0 0
        %1285 = vmatpush2.bf16.msra.mxu0 0
        %1286 = vmatprep.subr.bf16.mxu0 0
        %1287 = vmatpush2.bf16.msra.mxu0 0
        %1288 = vmatprep.subr.bf16.mxu0 0
        %1289 = vmatpush2.bf16.msra.mxu0 0
        %1290 = vmatprep.subr.bf16.mxu0 0
        %1291 = vmatpush2.bf16.msra.mxu0 0
        %1292 = vmatprep.mubr.bf16.mxu0 0
        %1293 = vmatmul.mubr.bf16.gmra.mxu0 %v1258
        %v1294 = vpop.f32.mrf.mxu0
        %v1295 = vadd.f32 %v1242, %v1294
        %v1296 = vpop.f32.mrf.mxu0
        %v1297 = vpop.f32.mrf.mxu0
        %v1298 = vpop.f32.mrf.mxu0
        %1299 = vdwg.mxu0
        %v1300 = vld [vmem:[%s1172] sm:$0xf]
        %v1301 = vld [vmem:[%s1172 + $0x4] sm:$0xf]
        %v1302 = vld [vmem:[%s1172 + $0x8] sm:$0xf]
        %v1303 = vld [vmem:[%s1172 + $0xc] sm:$0xf]
        %v1304 = vld [vmem:[%s1175] sm:$0x1]
        %v1305 = vpack.c.bf16 %v1295, %v1295
        %1307 = vrot.lane.b32.xlu0 %v1305, 96
        %v1308 = vpop.permute.xlu0 %1307
        %vm1309 = vcmask 64512
        %v1311 = vsel %vm1309, %v1305, 0
        %v1314 = vsel %vm1309, %v1308, 0
        %1316 = vmatprep.subr.bf16.mxu0 0
        %1317 = vmatpush1.bf16.xpose.msra.mxu0 0
        %1318 = vmatprep.subr.bf16.mxu0 0
        %1319 = vmatpush1.bf16.xpose.msra.mxu0 0
        %1320 = vmatprep.subr.bf16.mxu0 0
        %1321 = vmatpush1.bf16.xpose.msra.mxu0 0
        %1322 = vmatprep.subr.bf16.mxu0 0
        %1323 = vmatpush1.bf16.xpose.msra.mxu0 0
        %1324 = vmatprep.subr.bf16.mxu0 0
        %1325 = vmatpush1.bf16.xpose.msra.mxu0 0
        %1326 = vmatprep.subr.bf16.mxu0 0
        %1327 = vmatpush1.bf16.xpose.msra.mxu0 0
        %1328 = vmatprep.subr.bf16.mxu0 0
        %1329 = vmatpush1.bf16.xpose.msra.mxu0 0
        %1330 = vmatprep.subr.bf16.mxu0 0
        %1331 = vmatpush1.bf16.xpose.msra.mxu0 %v1314
        %1332 = vmatprep.subr.bf16.mxu0 0
        %1333 = vmatpush2.bf16.xpose.msra.mxu0 0
        %1334 = vmatprep.subr.bf16.mxu0 0
        %1335 = vmatpush2.bf16.xpose.msra.mxu0 0
        %1336 = vmatprep.subr.bf16.mxu0 0
        %1337 = vmatpush2.bf16.xpose.msra.mxu0 0
        %1338 = vmatprep.subr.bf16.mxu0 0
        %1339 = vmatpush2.bf16.xpose.msra.mxu0 0
        %1340 = vmatprep.subr.bf16.mxu0 0
        %1341 = vmatpush2.bf16.xpose.msra.mxu0 0
        %1342 = vmatprep.subr.bf16.mxu0 0
        %1343 = vmatpush2.bf16.xpose.msra.mxu0 0
        %1344 = vmatprep.subr.bf16.mxu0 0
        %1345 = vmatpush2.bf16.xpose.msra.mxu0 0
        %1346 = vmatprep.subr.bf16.mxu0 0
        %1347 = vmatpush2.bf16.xpose.msra.mxu0 0
        %1348 = vmatprep.mubr.bf16.mxu0 0
        %1349 = vmatmul.mubr.bf16.gmra.mxu0 %v1311
        %v1350 = vpop.f32.mrf.mxu0
        %v1351 = vadd.f32 %v1231, %v1350
        %v1352 = vpop.f32.mrf.mxu0
        %v1353 = vpop.f32.mrf.mxu0
        %v1354 = vpop.f32.mrf.mxu0
        %1355 = vdwg.mxu0
        %vm1356 = vcmask 55296
        %v1357 = vsel %vm1356, %v1351, -inf
        %1358 = vmax.xlane.f32.xlu0 %v1357
        %v1359 = vpop.xlane.xlu0 %1358
        %v1360 = vsub.f32 %v1351, %v1359
        %v1361 = vmul.f32 %v1360, 1.442695
        %v1362 = vpow.pop %v1361
        %v1363 = vsel %vm1356, %v1362, 0.0
        %1364 = vadd.xlane.f32.xlu0 %v1363
        %v1365 = vpop.xlane.xlu0 %1364
        %v1366 = vrcp.pop %v1365
        %v1367 = vmul.f32 %v1362, %v1366
        %v1368 = vpack.c.bf16 %v1367, %v1367
        %1369 = vrot.lane.b32.xlu0 %v1305, 64
        %v1370 = vpop.permute.xlu0 %1369
        %vm1371 = vcmask 56320
        %v1373 = vsel %vm1371, %v1368, 0
        %vm1375 = vcmask 1042432
        %vm1376 = vcmask 1043456
        %v1377 = vsel %vm1375, 4294967295, 65535
        %v1378 = vsel %vm1376, %v1377, 0
        %v1380 = vand.u32 %v1370, %v1378
        %1382 = vmatprep.subr.bf16.mxu0 0
        %1383 = vmatpush1.bf16.msra.mxu0 0
        %1384 = vmatprep.subr.bf16.mxu0 0
        %1385 = vmatpush1.bf16.msra.mxu0 0
        %1386 = vmatprep.subr.bf16.mxu0 0
        %1387 = vmatpush1.bf16.msra.mxu0 0
        %1388 = vmatprep.subr.bf16.mxu0 0
        %1389 = vmatpush1.bf16.msra.mxu0 0
        %1390 = vmatprep.subr.bf16.mxu0 0
        %1391 = vmatpush1.bf16.msra.mxu0 0
        %1392 = vmatprep.subr.bf16.mxu0 0
        %1393 = vmatpush1.bf16.msra.mxu0 0
        %1394 = vmatprep.subr.bf16.mxu0 0
        %1395 = vmatpush1.bf16.msra.mxu0 0
        %1396 = vmatprep.subr.bf16.mxu0 0
        %1397 = vmatpush1.bf16.msra.mxu0 %v1380
        %1398 = vmatprep.subr.bf16.mxu0 0
        %1399 = vmatpush2.bf16.msra.mxu0 0
        %1400 = vmatprep.subr.bf16.mxu0 0
        %1401 = vmatpush2.bf16.msra.mxu0 0
        %1402 = vmatprep.subr.bf16.mxu0 0
        %1403 = vmatpush2.bf16.msra.mxu0 0
        %1404 = vmatprep.subr.bf16.mxu0 0
        %1405 = vmatpush2.bf16.msra.mxu0 0
        %1406 = vmatprep.subr.bf16.mxu0 0
        %1407 = vmatpush2.bf16.msra.mxu0 0
        %1408 = vmatprep.subr.bf16.mxu0 0
        %1409 = vmatpush2.bf16.msra.mxu0 0
        %1410 = vmatprep.subr.bf16.mxu0 0
        %1411 = vmatpush2.bf16.msra.mxu0 0
        %1412 = vmatprep.subr.bf16.mxu0 0
        %1413 = vmatpush2.bf16.msra.mxu0 0
        %1414 = vmatprep.mubr.bf16.mxu0 0
        %1415 = vmatmul.mubr.bf16.gmra.mxu0 %v1373
        %v1416 = vpop.f32.mrf.mxu0
        %v1417 = vadd.f32 0.0, %v1416
        %v1418 = vpop.f32.mrf.mxu0
        %v1419 = vpop.f32.mrf.mxu0
        %v1420 = vpop.f32.mrf.mxu0
        %1421 = vdwg.mxu0
        %1422 = vrot.lane.b32.xlu0 %v1305, 120
        %v1423 = vpop.permute.xlu0 %1422
        %1424 = vrot.lane.b32.xlu0 %v1305, 88
        %v1425 = vpop.permute.xlu0 %1424
        %v1427 = vsel %vm1309, %v1423, 0
        %v1430 = vsel %vm1309, %v1425, 0
        %1432 = vmatprep.subr.bf16.mxu0 0
        %1433 = vmatpush1.bf16.xpose.msra.mxu0 0
        %1434 = vmatprep.subr.bf16.mxu0 0
        %1435 = vmatpush1.bf16.xpose.msra.mxu0 0
        %1436 = vmatprep.subr.bf16.mxu0 0
        %1437 = vmatpush1.bf16.xpose.msra.mxu0 0
        %1438 = vmatprep.subr.bf16.mxu0 0
        %1439 = vmatpush1.bf16.xpose.msra.mxu0 0
        %1440 = vmatprep.subr.bf16.mxu0 0
        %1441 = vmatpush1.bf16.xpose.msra.mxu0 0
        %1442 = vmatprep.subr.bf16.mxu0 0
        %1443 = vmatpush1.bf16.xpose.msra.mxu0 0
        %1444 = vmatprep.subr.bf16.mxu0 0
        %1445 = vmatpush1.bf16.xpose.msra.mxu0 0
        %1446 = vmatprep.subr.bf16.mxu0 0
        %1447 = vmatpush1.bf16.xpose.msra.mxu0 %v1430
        %1448 = vmatprep.subr.bf16.mxu0 0
        %1449 = vmatpush2.bf16.xpose.msra.mxu0 0
        %1450 = vmatprep.subr.bf16.mxu0 0
        %1451 = vmatpush2.bf16.xpose.msra.mxu0 0
        %1452 = vmatprep.subr.bf16.mxu0 0
        %1453 = vmatpush2.bf16.xpose.msra.mxu0 0
        %1454 = vmatprep.subr.bf16.mxu0 0
        %1455 = vmatpush2.bf16.xpose.msra.mxu0 0
        %1456 = vmatprep.subr.bf16.mxu0 0
        %1457 = vmatpush2.bf16.xpose.msra.mxu0 0
        %1458 = vmatprep.subr.bf16.mxu0 0
        %1459 = vmatpush2.bf16.xpose.msra.mxu0 0
        %1460 = vmatprep.subr.bf16.mxu0 0
        %1461 = vmatpush2.bf16.xpose.msra.mxu0 0
        %1462 = vmatprep.subr.bf16.mxu0 0
        %1463 = vmatpush2.bf16.xpose.msra.mxu0 0
        %1464 = vmatprep.mubr.bf16.mxu0 0
        %1465 = vmatmul.mubr.bf16.gmra.mxu0 %v1427
        %v1466 = vpop.f32.mrf.mxu0
        %v1467 = vadd.f32 %v1231, %v1466
        %v1468 = vpop.f32.mrf.mxu0
        %v1469 = vpop.f32.mrf.mxu0
        %v1470 = vpop.f32.mrf.mxu0
        %1471 = vdwg.mxu0
        %v1472 = vsel %vm1356, %v1467, -inf
        %1473 = vmax.xlane.f32.xlu0 %v1472
        %v1474 = vpop.xlane.xlu0 %1473
        %v1475 = vsub.f32 %v1467, %v1474
        %v1476 = vmul.f32 %v1475, 1.442695
        %v1477 = vpow.pop %v1476
        %v1478 = vsel %vm1356, %v1477, 0.0
        %1479 = vadd.xlane.f32.xlu0 %v1478
        %v1480 = vpop.xlane.xlu0 %1479
        %v1481 = vrcp.pop %v1480
        %v1482 = vmul.f32 %v1477, %v1481
        %v1483 = vpack.c.bf16 %v1482, %v1482
        %1484 = vrot.lane.b32.xlu0 %v1305, 56
        %v1485 = vpop.permute.xlu0 %1484
        %v1487 = vsel %vm1371, %v1483, 0
        %v1490 = vand.u32 %v1485, %v1378
        %1492 = vmatprep.subr.bf16.mxu0 0
        %1493 = vmatpush1.bf16.msra.mxu0 0
        %1494 = vmatprep.subr.bf16.mxu0 0
        %1495 = vmatpush1.bf16.msra.mxu0 0
        %1496 = vmatprep.subr.bf16.mxu0 0
        %1497 = vmatpush1.bf16.msra.mxu0 0
        %1498 = vmatprep.subr.bf16.mxu0 0
        %1499 = vmatpush1.bf16.msra.mxu0 0
        %1500 = vmatprep.subr.bf16.mxu0 0
        %1501 = vmatpush1.bf16.msra.mxu0 0
        %1502 = vmatprep.subr.bf16.mxu0 0
        %1503 = vmatpush1.bf16.msra.mxu0 0
        %1504 = vmatprep.subr.bf16.mxu0 0
        %1505 = vmatpush1.bf16.msra.mxu0 0
        %1506 = vmatprep.subr.bf16.mxu0 0
        %1507 = vmatpush1.bf16.msra.mxu0 %v1490
        %1508 = vmatprep.subr.bf16.mxu0 0
        %1509 = vmatpush2.bf16.msra.mxu0 0
        %1510 = vmatprep.subr.bf16.mxu0 0
        %1511 = vmatpush2.bf16.msra.mxu0 0
        %1512 = vmatprep.subr.bf16.mxu0 0
        %1513 = vmatpush2.bf16.msra.mxu0 0
        %1514 = vmatprep.subr.bf16.mxu0 0
        %1515 = vmatpush2.bf16.msra.mxu0 0
        %1516 = vmatprep.subr.bf16.mxu0 0
        %1517 = vmatpush2.bf16.msra.mxu0 0
        %1518 = vmatprep.subr.bf16.mxu0 0
        %1519 = vmatpush2.bf16.msra.mxu0 0
        %1520 = vmatprep.subr.bf16.mxu0 0
        %1521 = vmatpush2.bf16.msra.mxu0 0
        %1522 = vmatprep.subr.bf16.mxu0 0
        %1523 = vmatpush2.bf16.msra.mxu0 0
        %1524 = vmatprep.mubr.bf16.mxu0 0
        %1525 = vmatmul.mubr.bf16.gmra.mxu0 %v1487
        %v1526 = vpop.f32.mrf.mxu0
        %v1527 = vadd.f32 0.0, %v1526
        %v1528 = vpop.f32.mrf.mxu0
        %v1529 = vpop.f32.mrf.mxu0
        %v1530 = vpop.f32.mrf.mxu0
        %1531 = vdwg.mxu0
        %1532 = vrot.lane.b32.xlu0 %v1305, 112
        %v1533 = vpop.permute.xlu0 %1532
        %1534 = vrot.lane.b32.xlu0 %v1305, 80
        %v1535 = vpop.permute.xlu0 %1534
        %v1537 = vsel %vm1309, %v1533, 0
        %v1540 = vsel %vm1309, %v1535, 0
        %1542 = vmatprep.subr.bf16.mxu0 0
        %1543 = vmatpush1.bf16.xpose.msra.mxu0 0
        %1544 = vmatprep.subr.bf16.mxu0 0
        %1545 = vmatpush1.bf16.xpose.msra.mxu0 0
        %1546 = vmatprep.subr.bf16.mxu0 0
        %1547 = vmatpush1.bf16.xpose.msra.mxu0 0
        %1548 = vmatprep.subr.bf16.mxu0 0
        %1549 = vmatpush1.bf16.xpose.msra.mxu0 0
        %1550 = vmatprep.subr.bf16.mxu0 0
        %1551 = vmatpush1.bf16.xpose.msra.mxu0 0
        %1552 = vmatprep.subr.bf16.mxu0 0
        %1553 = vmatpush1.bf16.xpose.msra.mxu0 0
        %1554 = vmatprep.subr.bf16.mxu0 0
        %1555 = vmatpush1.bf16.xpose.msra.mxu0 0
        %1556 = vmatprep.subr.bf16.mxu0 0
        %1557 = vmatpush1.bf16.xpose.msra.mxu0 %v1540
        %1558 = vmatprep.subr.bf16.mxu0 0
        %1559 = vmatpush2.bf16.xpose.msra.mxu0 0
        %1560 = vmatprep.subr.bf16.mxu0 0
        %1561 = vmatpush2.bf16.xpose.msra.mxu0 0
        %1562 = vmatprep.subr.bf16.mxu0 0
        %1563 = vmatpush2.bf16.xpose.msra.mxu0 0
        %1564 = vmatprep.subr.bf16.mxu0 0
        %1565 = vmatpush2.bf16.xpose.msra.mxu0 0
        %1566 = vmatprep.subr.bf16.mxu0 0
        %1567 = vmatpush2.bf16.xpose.msra.mxu0 0
        %1568 = vmatprep.subr.bf16.mxu0 0
        %1569 = vmatpush2.bf16.xpose.msra.mxu0 0
        %1570 = vmatprep.subr.bf16.mxu0 0
        %1571 = vmatpush2.bf16.xpose.msra.mxu0 0
        %1572 = vmatprep.subr.bf16.mxu0 0
        %1573 = vmatpush2.bf16.xpose.msra.mxu0 0
        %1574 = vmatprep.mubr.bf16.mxu0 0
        %1575 = vmatmul.mubr.bf16.gmra.mxu0 %v1537
        %v1576 = vpop.f32.mrf.mxu0
        %v1577 = vadd.f32 %v1231, %v1576
        %v1578 = vpop.f32.mrf.mxu0
        %v1579 = vpop.f32.mrf.mxu0
        %v1580 = vpop.f32.mrf.mxu0
        %1581 = vdwg.mxu0
        %v1582 = vsel %vm1356, %v1577, -inf
        %1583 = vmax.xlane.f32.xlu0 %v1582
        %v1584 = vpop.xlane.xlu0 %1583
        %v1585 = vsub.f32 %v1577, %v1584
        %v1586 = vmul.f32 %v1585, 1.442695
        %v1587 = vpow.pop %v1586
        %v1588 = vsel %vm1356, %v1587, 0.0
        %1589 = vadd.xlane.f32.xlu0 %v1588
        %v1590 = vpop.xlane.xlu0 %1589
        %v1591 = vrcp.pop %v1590
        %v1592 = vmul.f32 %v1587, %v1591
        %v1593 = vpack.c.bf16 %v1592, %v1592
        %1594 = vrot.lane.b32.xlu0 %v1305, 48
        %v1595 = vpop.permute.xlu0 %1594
        %v1597 = vsel %vm1371, %v1593, 0
        %v1600 = vand.u32 %v1595, %v1378
        %1602 = vmatprep.subr.bf16.mxu0 0
        %1603 = vmatpush1.bf16.msra.mxu0 0
        %1604 = vmatprep.subr.bf16.mxu0 0
        %1605 = vmatpush1.bf16.msra.mxu0 0
        %1606 = vmatprep.subr.bf16.mxu0 0
        %1607 = vmatpush1.bf16.msra.mxu0 0
        %1608 = vmatprep.subr.bf16.mxu0 0
        %1609 = vmatpush1.bf16.msra.mxu0 0
        %1610 = vmatprep.subr.bf16.mxu0 0
        %1611 = vmatpush1.bf16.msra.mxu0 0
        %1612 = vmatprep.subr.bf16.mxu0 0
        %1613 = vmatpush1.bf16.msra.mxu0 0
        %1614 = vmatprep.subr.bf16.mxu0 0
        %1615 = vmatpush1.bf16.msra.mxu0 0
        %1616 = vmatprep.subr.bf16.mxu0 0
        %1617 = vmatpush1.bf16.msra.mxu0 %v1600
        %1618 = vmatprep.subr.bf16.mxu0 0
        %1619 = vmatpush2.bf16.msra.mxu0 0
        %1620 = vmatprep.subr.bf16.mxu0 0
        %1621 = vmatpush2.bf16.msra.mxu0 0
        %1622 = vmatprep.subr.bf16.mxu0 0
        %1623 = vmatpush2.bf16.msra.mxu0 0
        %1624 = vmatprep.subr.bf16.mxu0 0
        %1625 = vmatpush2.bf16.msra.mxu0 0
        %1626 = vmatprep.subr.bf16.mxu0 0
        %1627 = vmatpush2.bf16.msra.mxu0 0
        %1628 = vmatprep.subr.bf16.mxu0 0
        %1629 = vmatpush2.bf16.msra.mxu0 0
        %1630 = vmatprep.subr.bf16.mxu0 0
        %1631 = vmatpush2.bf16.msra.mxu0 0
        %1632 = vmatprep.subr.bf16.mxu0 0
        %1633 = vmatpush2.bf16.msra.mxu0 0
        %1634 = vmatprep.mubr.bf16.mxu0 0
        %1635 = vmatmul.mubr.bf16.gmra.mxu0 %v1597
        %v1636 = vpop.f32.mrf.mxu0
        %v1637 = vadd.f32 0.0, %v1636
        %v1638 = vpop.f32.mrf.mxu0
        %v1639 = vpop.f32.mrf.mxu0
        %v1640 = vpop.f32.mrf.mxu0
        %1641 = vdwg.mxu0
        %1642 = vrot.lane.b32.xlu0 %v1305, 104
        %v1643 = vpop.permute.xlu0 %1642
        %1644 = vrot.lane.b32.xlu0 %v1305, 72
        %v1645 = vpop.permute.xlu0 %1644
        %v1647 = vsel %vm1309, %v1643, 0
        %v1650 = vsel %vm1309, %v1645, 0
        %1652 = vmatprep.subr.bf16.mxu0 0
        %1653 = vmatpush1.bf16.xpose.msra.mxu0 0
        %1654 = vmatprep.subr.bf16.mxu0 0
        %1655 = vmatpush1.bf16.xpose.msra.mxu0 0
        %1656 = vmatprep.subr.bf16.mxu0 0
        %1657 = vmatpush1.bf16.xpose.msra.mxu0 0
        %1658 = vmatprep.subr.bf16.mxu0 0
        %1659 = vmatpush1.bf16.xpose.msra.mxu0 0
        %1660 = vmatprep.subr.bf16.mxu0 0
        %1661 = vmatpush1.bf16.xpose.msra.mxu0 0
        %1662 = vmatprep.subr.bf16.mxu0 0
        %1663 = vmatpush1.bf16.xpose.msra.mxu0 0
        %1664 = vmatprep.subr.bf16.mxu0 0
        %1665 = vmatpush1.bf16.xpose.msra.mxu0 0
        %1666 = vmatprep.subr.bf16.mxu0 0
        %1667 = vmatpush1.bf16.xpose.msra.mxu0 %v1650
        %1668 = vmatprep.subr.bf16.mxu0 0
        %1669 = vmatpush2.bf16.xpose.msra.mxu0 0
        %1670 = vmatprep.subr.bf16.mxu0 0
        %1671 = vmatpush2.bf16.xpose.msra.mxu0 0
        %1672 = vmatprep.subr.bf16.mxu0 0
        %1673 = vmatpush2.bf16.xpose.msra.mxu0 0
        %1674 = vmatprep.subr.bf16.mxu0 0
        %1675 = vmatpush2.bf16.xpose.msra.mxu0 0
        %1676 = vmatprep.subr.bf16.mxu0 0
        %1677 = vmatpush2.bf16.xpose.msra.mxu0 0
        %1678 = vmatprep.subr.bf16.mxu0 0
        %1679 = vmatpush2.bf16.xpose.msra.mxu0 0
        %1680 = vmatprep.subr.bf16.mxu0 0
        %1681 = vmatpush2.bf16.xpose.msra.mxu0 0
        %1682 = vmatprep.subr.bf16.mxu0 0
        %1683 = vmatpush2.bf16.xpose.msra.mxu0 0
        %1684 = vmatprep.mubr.bf16.mxu0 0
        %1685 = vmatmul.mubr.bf16.gmra.mxu0 %v1647
        %v1686 = vpop.f32.mrf.mxu0
        %v1687 = vadd.f32 %v1231, %v1686
        %v1688 = vpop.f32.mrf.mxu0
        %v1689 = vpop.f32.mrf.mxu0
        %v1690 = vpop.f32.mrf.mxu0
        %1691 = vdwg.mxu0
        %v1692 = vsel %vm1356, %v1687, -inf
        %1693 = vmax.xlane.f32.xlu0 %v1692
        %v1694 = vpop.xlane.xlu0 %1693
        %v1695 = vsub.f32 %v1687, %v1694
        %v1696 = vmul.f32 %v1695, 1.442695
        %v1697 = vpow.pop %v1696
        %v1698 = vsel %vm1356, %v1697, 0.0
        %1699 = vadd.xlane.f32.xlu0 %v1698
        %v1700 = vpop.xlane.xlu0 %1699
        %v1701 = vrcp.pop %v1700
        %v1702 = vmul.f32 %v1697, %v1701
        %v1703 = vpack.c.bf16 %v1702, %v1702
        %1704 = vrot.lane.b32.xlu0 %v1305, 40
        %v1705 = vpop.permute.xlu0 %1704
        %v1707 = vsel %vm1371, %v1703, 0
        %v1710 = vand.u32 %v1705, %v1378
        %1712 = vmatprep.subr.bf16.mxu0 0
        %1713 = vmatpush1.bf16.msra.mxu0 0
        %1714 = vmatprep.subr.bf16.mxu0 0
        %1715 = vmatpush1.bf16.msra.mxu0 0
        %1716 = vmatprep.subr.bf16.mxu0 0
        %1717 = vmatpush1.bf16.msra.mxu0 0
        %1718 = vmatprep.subr.bf16.mxu0 0
        %1719 = vmatpush1.bf16.msra.mxu0 0
        %1720 = vmatprep.subr.bf16.mxu0 0
        %1721 = vmatpush1.bf16.msra.mxu0 0
        %1722 = vmatprep.subr.bf16.mxu0 0
        %1723 = vmatpush1.bf16.msra.mxu0 0
        %1724 = vmatprep.subr.bf16.mxu0 0
        %1725 = vmatpush1.bf16.msra.mxu0 0
        %1726 = vmatprep.subr.bf16.mxu0 0
        %1727 = vmatpush1.bf16.msra.mxu0 %v1710
        %1728 = vmatprep.subr.bf16.mxu0 0
        %1729 = vmatpush2.bf16.msra.mxu0 0
        %1730 = vmatprep.subr.bf16.mxu0 0
        %1731 = vmatpush2.bf16.msra.mxu0 0
        %1732 = vmatprep.subr.bf16.mxu0 0
        %1733 = vmatpush2.bf16.msra.mxu0 0
        %1734 = vmatprep.subr.bf16.mxu0 0
        %1735 = vmatpush2.bf16.msra.mxu0 0
        %1736 = vmatprep.subr.bf16.mxu0 0
        %1737 = vmatpush2.bf16.msra.mxu0 0
        %1738 = vmatprep.subr.bf16.mxu0 0
        %1739 = vmatpush2.bf16.msra.mxu0 0
        %1740 = vmatprep.subr.bf16.mxu0 0
        %1741 = vmatpush2.bf16.msra.mxu0 0
        %1742 = vmatprep.subr.bf16.mxu0 0
        %1743 = vmatpush2.bf16.msra.mxu0 0
        %1744 = vmatprep.mubr.bf16.mxu0 0
        %1745 = vmatmul.mubr.bf16.gmra.mxu0 %v1707
        %v1746 = vpop.f32.mrf.mxu0
        %v1747 = vadd.f32 0.0, %v1746
        %v1748 = vpop.f32.mrf.mxu0
        %v1749 = vpop.f32.mrf.mxu0
        %v1750 = vpop.f32.mrf.mxu0
        %1751 = vdwg.mxu0
        %1753 = vrot.lane.b32.xlu0 %v1527, 8
        %v1754 = vpop.permute.xlu0 %1753
        %1757 = vrot.lane.b32.xlu0 %v1637, 16
        %v1758 = vpop.permute.xlu0 %1757
        %1761 = vrot.lane.b32.xlu0 %v1747, 24
        %v1762 = vpop.permute.xlu0 %1761
        %v1764 = vsel %vm1309, %v1417, %v1754
        %vm1765 = vcmask 130048
        %v1766 = vsel %vm1765, %v1764, %v1758
        %vm1767 = vcmask 195584
        %v1768 = vsel %vm1767, %v1766, %v1762
        %v1769 = vpack.c.bf16 %v1768, %v1768
        %v1771 = vlaneseq
        %v1772 = vshrl.u32 %v1771, 7
        %v1773 = vsub.s32 0, %v1772
        %v1774 = vrot.slane %v1304, %v1773
        %v1780 = vunpack.c.l.b16 %v1300
        %v1781 = vunpack.c.l.b16 %v1301
        %v1782 = vunpack.c.l.b16 %v1302
        %v1783 = vunpack.c.l.b16 %v1303
        %v1784 = vpack.c.b16 %v1781, %v1780
        %v1785 = vpack.c.b16 %v1783, %v1782
        %v1789 = vsel %vm1256, %v1769, 0
        %1791 = vmatprep.subr.bf16.mxu0 0
        %1792 = vmatpush1.bf16.msra.mxu0 0
        %1793 = vmatprep.subr.bf16.mxu0 0
        %1794 = vmatpush1.bf16.msra.mxu0 0
        %1795 = vmatprep.subr.bf16.mxu0 0
        %1796 = vmatpush1.bf16.msra.mxu0 0
        %1797 = vmatprep.subr.bf16.mxu0 0
        %1798 = vmatpush1.bf16.msra.mxu0 0
        %1799 = vmatprep.subr.bf16.mxu0 0
        %1800 = vmatpush1.bf16.msra.mxu0 0
        %1801 = vmatprep.subr.bf16.mxu0 0
        %1802 = vmatpush1.bf16.msra.mxu0 0
        %1803 = vmatprep.subr.bf16.mxu0 0
        %1804 = vmatpush1.bf16.msra.mxu0 %v1785
        %1805 = vmatprep.subr.bf16.mxu0 0
        %1806 = vmatpush1.bf16.msra.mxu0 %v1784
        %1807 = vmatprep.subr.bf16.mxu0 0
        %1808 = vmatpush2.bf16.msra.mxu0 0
        %1809 = vmatprep.subr.bf16.mxu0 0
        %1810 = vmatpush2.bf16.msra.mxu0 0
        %1811 = vmatprep.subr.bf16.mxu0 0
        %1812 = vmatpush2.bf16.msra.mxu0 0
        %1813 = vmatprep.subr.bf16.mxu0 0
        %1814 = vmatpush2.bf16.msra.mxu0 0
        %1815 = vmatprep.subr.bf16.mxu0 0
        %1816 = vmatpush2.bf16.msra.mxu0 0
        %1817 = vmatprep.subr.bf16.mxu0 0
        %1818 = vmatpush2.bf16.msra.mxu0 0
        %1819 = vmatprep.subr.bf16.mxu0 0
        %1820 = vmatpush2.bf16.msra.mxu0 0
        %1821 = vmatprep.subr.bf16.mxu0 0
        %1822 = vmatpush2.bf16.msra.mxu0 0
        %1823 = vmatprep.mubr.bf16.mxu0 0
        %1824 = vmatmul.mubr.bf16.gmra.mxu0 %v1789
        %v1825 = vpop.f32.mrf.mxu0
        %v1826 = vadd.f32 %v1774, %v1825
        %v1827 = vpop.f32.mrf.mxu0
        %v1828 = vpop.f32.mrf.mxu0
        %v1829 = vpop.f32.mrf.mxu0
        %1830 = vdwg.mxu0
        %v1831 = vadd.f32 %v1223, %v1826
        %v1832 = vld [vmem:[%s1197] sm:$0x1]
        %v1833 = vld [vmem:[%s1200] sm:$0x1]
        %vm1834 = vcmask 260096
        %v1835 = vsel %vm1834, %v1831, 0.0
        %1836 = vadd.xlane.f32.xlu0 %v1835
        %v1837 = vpop.xlane.xlu0 %1836
        %v1838 = vrcp.pop 32.0
        %v1839 = vmul.f32 %v1837, %v1838
        %v1840 = vsub.f32 %v1831, %v1839
        %v1841 = vmul.f32 %v1840, %v1840
        %v1842 = vsel %vm1834, %v1841, 0.0
        %1843 = vadd.xlane.f32.xlu0 %v1842
        %v1844 = vpop.xlane.xlu0 %1843
        %v1845 = vmul.f32 %v1844, %v1838
        %v1846 = vadd.f32 %v1845, 1e-05
        %v1847 = vrsqrt.pop %v1846
        %v1848 = vmul.f32 %v1840, %v1847
        %v1850 = vlaneseq
        %v1851 = vshrl.u32 %v1850, 7
        %v1852 = vsub.s32 0, %v1851
        %v1853 = vrot.slane %v1832, %v1852
        %v1855 = vmul.f32 %v1848, %v1853
        %v1857 = vlaneseq
        %v1858 = vshrl.u32 %v1857, 7
        %v1859 = vsub.s32 0, %v1858
        %v1860 = vrot.slane %v1833, %v1859
        %v1862 = vadd.f32 %v1855, %v1860
        %v1863 = vpack.c.bf16 %v1862, %v1862
        %v1864 = vld [vmem:[%s1180] sm:$0xf]
        %v1865 = vld [vmem:[%s1180 + $0x4] sm:$0xf]
        %v1866 = vld [vmem:[%s1180 + $0x8] sm:$0xf]
        %v1867 = vld [vmem:[%s1180 + $0xc] sm:$0xf]
        %v1868 = vld [vmem:[%s1183] sm:$0x1]
        %v1870 = vlaneseq
        %v1871 = vshrl.u32 %v1870, 7
        %v1872 = vsub.s32 0, %v1871
        %v1873 = vrot.slane %v1868, %v1872
        %v1879 = vunpack.c.l.b16 %v1864
        %v1880 = vunpack.c.l.b16 %v1865
        %v1881 = vunpack.c.l.b16 %v1866
        %v1882 = vunpack.c.l.b16 %v1867
        %v1883 = vpack.c.b16 %v1880, %v1879
        %v1884 = vpack.c.b16 %v1882, %v1881
        %v1888 = vsel %vm1256, %v1863, 0
        %1890 = vmatprep.subr.bf16.mxu0 0
        %1891 = vmatpush1.bf16.msra.mxu0 0
        %1892 = vmatprep.subr.bf16.mxu0 0
        %1893 = vmatpush1.bf16.msra.mxu0 0
        %1894 = vmatprep.subr.bf16.mxu0 0
        %1895 = vmatpush1.bf16.msra.mxu0 0
        %1896 = vmatprep.subr.bf16.mxu0 0
        %1897 = vmatpush1.bf16.msra.mxu0 0
        %1898 = vmatprep.subr.bf16.mxu0 0
        %1899 = vmatpush1.bf16.msra.mxu0 0
        %1900 = vmatprep.subr.bf16.mxu0 0
        %1901 = vmatpush1.bf16.msra.mxu0 0
        %1902 = vmatprep.subr.bf16.mxu0 0
        %1903 = vmatpush1.bf16.msra.mxu0 %v1884
        %1904 = vmatprep.subr.bf16.mxu0 0
        %1905 = vmatpush1.bf16.msra.mxu0 %v1883
        %1906 = vmatprep.subr.bf16.mxu0 0
        %1907 = vmatpush2.bf16.msra.mxu0 0
        %1908 = vmatprep.subr.bf16.mxu0 0
        %1909 = vmatpush2.bf16.msra.mxu0 0
        %1910 = vmatprep.subr.bf16.mxu0 0
        %1911 = vmatpush2.bf16.msra.mxu0 0
        %1912 = vmatprep.subr.bf16.mxu0 0
        %1913 = vmatpush2.bf16.msra.mxu0 0
        %1914 = vmatprep.subr.bf16.mxu0 0
        %1915 = vmatpush2.bf16.msra.mxu0 0
        %1916 = vmatprep.subr.bf16.mxu0 0
        %1917 = vmatpush2.bf16.msra.mxu0 0
        %1918 = vmatprep.subr.bf16.mxu0 0
        %1919 = vmatpush2.bf16.msra.mxu0 0
        %1920 = vmatprep.subr.bf16.mxu0 0
        %1921 = vmatpush2.bf16.msra.mxu0 0
        %1922 = vmatprep.mubr.bf16.mxu0 0
        %1923 = vmatmul.mubr.bf16.gmra.mxu0 %v1888
        %v1924 = vpop.f32.mrf.mxu0
        %v1925 = vadd.f32 %v1873, %v1924
        %v1926 = vpop.f32.mrf.mxu0
        %v1927 = vpop.f32.mrf.mxu0
        %v1928 = vpop.f32.mrf.mxu0
        %1929 = vdwg.mxu0
        %v1930 = vld [vmem:[%s1188] sm:$0xf]
        %v1931 = vld [vmem:[%s1188 + $0x4] sm:$0xf]
        %v1932 = vld [vmem:[%s1188 + $0x8] sm:$0xf]
        %v1933 = vld [vmem:[%s1188 + $0xc] sm:$0xf]
        %v1934 = vld [vmem:[%s1191] sm:$0x1]
        %v1936 = vlaneseq
        %v1937 = vshrl.u32 %v1936, 7
        %v1938 = vsub.s32 0, %v1937
        %v1939 = vrot.slane %v1934, %v1938
        %v1945 = vunpack.c.l.b16 %v1930
        %v1946 = vunpack.c.l.b16 %v1931
        %v1947 = vunpack.c.l.b16 %v1932
        %v1948 = vunpack.c.l.b16 %v1933
        %v1949 = vpack.c.b16 %v1946, %v1945
        %v1950 = vpack.c.b16 %v1948, %v1947
        %v1954 = vsel %vm1256, %v1225, 0
        %1956 = vmatprep.subr.bf16.mxu0 0
        %1957 = vmatpush1.bf16.msra.mxu0 0
        %1958 = vmatprep.subr.bf16.mxu0 0
        %1959 = vmatpush1.bf16.msra.mxu0 0
        %1960 = vmatprep.subr.bf16.mxu0 0
        %1961 = vmatpush1.bf16.msra.mxu0 0
        %1962 = vmatprep.subr.bf16.mxu0 0
        %1963 = vmatpush1.bf16.msra.mxu0 0
        %1964 = vmatprep.subr.bf16.mxu0 0
        %1965 = vmatpush1.bf16.msra.mxu0 0
        %1966 = vmatprep.subr.bf16.mxu0 0
        %1967 = vmatpush1.bf16.msra.mxu0 0
        %1968 = vmatprep.subr.bf16.mxu0 0
        %1969 = vmatpush1.bf16.msra.mxu0 %v1950
        %1970 = vmatprep.subr.bf16.mxu0 0
        %1971 = vmatpush1.bf16.msra.mxu0 %v1949
        %1972 = vmatprep.subr.bf16.mxu0 0
        %1973 = vmatpush2.bf16.msra.mxu0 0
        %1974 = vmatprep.subr.bf16.mxu0 0
        %1975 = vmatpush2.bf16.msra.mxu0 0
        %1976 = vmatprep.subr.bf16.mxu0 0
        %1977 = vmatpush2.bf16.msra.mxu0 0
        %1978 = vmatprep.subr.bf16.mxu0 0
        %1979 = vmatpush2.bf16.msra.mxu0 0
        %1980 = vmatprep.subr.bf16.mxu0 0
        %1981 = vmatpush2.bf16.msra.mxu0 0
        %1982 = vmatprep.subr.bf16.mxu0 0
        %1983 = vmatpush2.bf16.msra.mxu0 0
        %1984 = vmatprep.subr.bf16.mxu0 0
        %1985 = vmatpush2.bf16.msra.mxu0 0
        %1986 = vmatprep.subr.bf16.mxu0 0
        %1987 = vmatpush2.bf16.msra.mxu0 0
        %1988 = vmatprep.mubr.bf16.mxu0 0
        %1989 = vmatmul.mubr.bf16.gmra.mxu0 %v1954
        %v1990 = vpop.f32.mrf.mxu0
        %v1991 = vadd.f32 %v1939, %v1990
        %v1992 = vpop.f32.mrf.mxu0
        %v1993 = vpop.f32.mrf.mxu0
        %v1994 = vpop.f32.mrf.mxu0
        %1995 = vdwg.mxu0
        %v1996 = vld [vmem:[%s957] sm:$0xf]
        %v1997 = vld [vmem:[%s957 + $0x4] sm:$0xf]
        %v1998 = vld [vmem:[%s957 + $0x8] sm:$0xf]
        %v1999 = vld [vmem:[%s957 + $0xc] sm:$0xf]
        %v2000 = vld [vmem:[%s1194] sm:$0x1]
        %v2001 = vpack.c.bf16 %v1925, %v1925
        %v2002 = vpack.c.bf16 %v1991, %v1991
        %v2004 = vsel %vm1309, %v2001, 0
        %v2007 = vsel %vm1309, %v2002, 0
        %2009 = vmatprep.subr.bf16.mxu0 0
        %2010 = vmatpush1.bf16.xpose.msra.mxu0 0
        %2011 = vmatprep.subr.bf16.mxu0 0
        %2012 = vmatpush1.bf16.xpose.msra.mxu0 0
        %2013 = vmatprep.subr.bf16.mxu0 0
        %2014 = vmatpush1.bf16.xpose.msra.mxu0 0
        %2015 = vmatprep.subr.bf16.mxu0 0
        %2016 = vmatpush1.bf16.xpose.msra.mxu0 0
        %2017 = vmatprep.subr.bf16.mxu0 0
        %2018 = vmatpush1.bf16.xpose.msra.mxu0 0
        %2019 = vmatprep.subr.bf16.mxu0 0
        %2020 = vmatpush1.bf16.xpose.msra.mxu0 0
        %2021 = vmatprep.subr.bf16.mxu0 0
        %2022 = vmatpush1.bf16.xpose.msra.mxu0 0
        %2023 = vmatprep.subr.bf16.mxu0 0
        %2024 = vmatpush1.bf16.xpose.msra.mxu0 %v2007
        %2025 = vmatprep.subr.bf16.mxu0 0
        %2026 = vmatpush2.bf16.xpose.msra.mxu0 0
        %2027 = vmatprep.subr.bf16.mxu0 0
        %2028 = vmatpush2.bf16.xpose.msra.mxu0 0
        %2029 = vmatprep.subr.bf16.mxu0 0
        %2030 = vmatpush2.bf16.xpose.msra.mxu0 0
        %2031 = vmatprep.subr.bf16.mxu0 0
        %2032 = vmatpush2.bf16.xpose.msra.mxu0 0
        %2033 = vmatprep.subr.bf16.mxu0 0
        %2034 = vmatpush2.bf16.xpose.msra.mxu0 0
        %2035 = vmatprep.subr.bf16.mxu0 0
        %2036 = vmatpush2.bf16.xpose.msra.mxu0 0
        %2037 = vmatprep.subr.bf16.mxu0 0
        %2038 = vmatpush2.bf16.xpose.msra.mxu0 0
        %2039 = vmatprep.subr.bf16.mxu0 0
        %2040 = vmatpush2.bf16.xpose.msra.mxu0 0
        %2041 = vmatprep.mubr.bf16.mxu0 0
        %2042 = vmatmul.mubr.bf16.gmra.mxu0 %v2004
        %v2043 = vpop.f32.mrf.mxu0
        %v2044 = vadd.f32 0.0, %v2043
        %v2045 = vpop.f32.mrf.mxu0
        %v2046 = vpop.f32.mrf.mxu0
        %v2047 = vpop.f32.mrf.mxu0
        %2048 = vdwg.mxu0
        %vm2049 = vcmask 47104
        %v2050 = vsel %vm2049, %v2044, -inf
        %2051 = vmax.xlane.f32.xlu0 %v2050
        %v2052 = vpop.xlane.xlu0 %2051
        %v2053 = vsub.f32 %v2044, %v2052
        %v2054 = vmul.f32 %v2053, 1.442695
        %v2055 = vpow.pop %v2054
        %v2056 = vsel %vm2049, %v2055, 0.0
        %2057 = vadd.xlane.f32.xlu0 %v2056
        %v2058 = vpop.xlane.xlu0 %2057
        %v2059 = vrcp.pop %v2058
        %v2060 = vmul.f32 %v2055, %v2059
        %v2061 = vpack.c.bf16 %v2060, %v2060
        %2063 = vrot.lane.b32.xlu0 %v2002, 96
        %v2064 = vpop.permute.xlu0 %2063
        %vm2065 = vcmask 48128
        %v2067 = vsel %vm2065, %v2061, 0
        %v2070 = vsel %vm1375, %v2064, 0
        %2072 = vmatprep.subr.bf16.mxu0 0
        %2073 = vmatpush1.bf16.msra.mxu0 0
        %2074 = vmatprep.subr.bf16.mxu0 0
        %2075 = vmatpush1.bf16.msra.mxu0 0
        %2076 = vmatprep.subr.bf16.mxu0 0
        %2077 = vmatpush1.bf16.msra.mxu0 0
        %2078 = vmatprep.subr.bf16.mxu0 0
        %2079 = vmatpush1.bf16.msra.mxu0 0
        %2080 = vmatprep.subr.bf16.mxu0 0
        %2081 = vmatpush1.bf16.msra.mxu0 0
        %2082 = vmatprep.subr.bf16.mxu0 0
        %2083 = vmatpush1.bf16.msra.mxu0 0
        %2084 = vmatprep.subr.bf16.mxu0 0
        %2085 = vmatpush1.bf16.msra.mxu0 0
        %2086 = vmatprep.subr.bf16.mxu0 0
        %2087 = vmatpush1.bf16.msra.mxu0 %v2070
        %2088 = vmatprep.subr.bf16.mxu0 0
        %2089 = vmatpush2.bf16.msra.mxu0 0
        %2090 = vmatprep.subr.bf16.mxu0 0
        %2091 = vmatpush2.bf16.msra.mxu0 0
        %2092 = vmatprep.subr.bf16.mxu0 0
        %2093 = vmatpush2.bf16.msra.mxu0 0
        %2094 = vmatprep.subr.bf16.mxu0 0
        %2095 = vmatpush2.bf16.msra.mxu0 0
        %2096 = vmatprep.subr.bf16.mxu0 0
        %2097 = vmatpush2.bf16.msra.mxu0 0
        %2098 = vmatprep.subr.bf16.mxu0 0
        %2099 = vmatpush2.bf16.msra.mxu0 0
        %2100 = vmatprep.subr.bf16.mxu0 0
        %2101 = vmatpush2.bf16.msra.mxu0 0
        %2102 = vmatprep.subr.bf16.mxu0 0
        %2103 = vmatpush2.bf16.msra.mxu0 0
        %2104 = vmatprep.mubr.bf16.mxu0 0
        %2105 = vmatmul.mubr.bf16.gmra.mxu0 %v2067
        %v2106 = vpop.f32.mrf.mxu0
        %v2107 = vadd.f32 0.0, %v2106
        %v2108 = vpop.f32.mrf.mxu0
        %v2109 = vpop.f32.mrf.mxu0
        %v2110 = vpop.f32.mrf.mxu0
        %2111 = vdwg.mxu0
        %2113 = vrot.lane.b32.xlu0 %v2001, 120
        %v2114 = vpop.permute.xlu0 %2113
        %2115 = vrot.lane.b32.xlu0 %v2002, 120
        %v2116 = vpop.permute.xlu0 %2115
        %v2118 = vsel %vm1309, %v2114, 0
        %v2121 = vsel %vm1309, %v2116, 0
        %2123 = vmatprep.subr.bf16.mxu0 0
        %2124 = vmatpush1.bf16.xpose.msra.mxu0 0
        %2125 = vmatprep.subr.bf16.mxu0 0
        %2126 = vmatpush1.bf16.xpose.msra.mxu0 0
        %2127 = vmatprep.subr.bf16.mxu0 0
        %2128 = vmatpush1.bf16.xpose.msra.mxu0 0
        %2129 = vmatprep.subr.bf16.mxu0 0
        %2130 = vmatpush1.bf16.xpose.msra.mxu0 0
        %2131 = vmatprep.subr.bf16.mxu0 0
        %2132 = vmatpush1.bf16.xpose.msra.mxu0 0
        %2133 = vmatprep.subr.bf16.mxu0 0
        %2134 = vmatpush1.bf16.xpose.msra.mxu0 0
        %2135 = vmatprep.subr.bf16.mxu0 0
        %2136 = vmatpush1.bf16.xpose.msra.mxu0 0
        %2137 = vmatprep.subr.bf16.mxu0 0
        %2138 = vmatpush1.bf16.xpose.msra.mxu0 %v2121
        %2139 = vmatprep.subr.bf16.mxu0 0
        %2140 = vmatpush2.bf16.xpose.msra.mxu0 0
        %2141 = vmatprep.subr.bf16.mxu0 0
        %2142 = vmatpush2.bf16.xpose.msra.mxu0 0
        %2143 = vmatprep.subr.bf16.mxu0 0
        %2144 = vmatpush2.bf16.xpose.msra.mxu0 0
        %2145 = vmatprep.subr.bf16.mxu0 0
        %2146 = vmatpush2.bf16.xpose.msra.mxu0 0
        %2147 = vmatprep.subr.bf16.mxu0 0
        %2148 = vmatpush2.bf16.xpose.msra.mxu0 0
        %2149 = vmatprep.subr.bf16.mxu0 0
        %2150 = vmatpush2.bf16.xpose.msra.mxu0 0
        %2151 = vmatprep.subr.bf16.mxu0 0
        %2152 = vmatpush2.bf16.xpose.msra.mxu0 0
        %2153 = vmatprep.subr.bf16.mxu0 0
        %2154 = vmatpush2.bf16.xpose.msra.mxu0 0
        %2155 = vmatprep.mubr.bf16.mxu0 0
        %2156 = vmatmul.mubr.bf16.gmra.mxu0 %v2118
        %v2157 = vpop.f32.mrf.mxu0
        %v2158 = vadd.f32 0.0, %v2157
        %v2159 = vpop.f32.mrf.mxu0
        %v2160 = vpop.f32.mrf.mxu0
        %v2161 = vpop.f32.mrf.mxu0
        %2162 = vdwg.mxu0
        %v2163 = vsel %vm2049, %v2158, -inf
        %2164 = vmax.xlane.f32.xlu0 %v2163
        %v2165 = vpop.xlane.xlu0 %2164
        %v2166 = vsub.f32 %v2158, %v2165
        %v2167 = vmul.f32 %v2166, 1.442695
        %v2168 = vpow.pop %v2167
        %v2169 = vsel %vm2049, %v2168, 0.0
        %2170 = vadd.xlane.f32.xlu0 %v2169
        %v2171 = vpop.xlane.xlu0 %2170
        %v2172 = vrcp.pop %v2171
        %v2173 = vmul.f32 %v2168, %v2172
        %v2174 = vpack.c.bf16 %v2173, %v2173
        %2175 = vrot.lane.b32.xlu0 %v2002, 88
        %v2176 = vpop.permute.xlu0 %2175
        %v2178 = vsel %vm2065, %v2174, 0
        %v2181 = vsel %vm1375, %v2176, 0
        %2183 = vmatprep.subr.bf16.mxu0 0
        %2184 = vmatpush1.bf16.msra.mxu0 0
        %2185 = vmatprep.subr.bf16.mxu0 0
        %2186 = vmatpush1.bf16.msra.mxu0 0
        %2187 = vmatprep.subr.bf16.mxu0 0
        %2188 = vmatpush1.bf16.msra.mxu0 0
        %2189 = vmatprep.subr.bf16.mxu0 0
        %2190 = vmatpush1.bf16.msra.mxu0 0
        %2191 = vmatprep.subr.bf16.mxu0 0
        %2192 = vmatpush1.bf16.msra.mxu0 0
        %2193 = vmatprep.subr.bf16.mxu0 0
        %2194 = vmatpush1.bf16.msra.mxu0 0
        %2195 = vmatprep.subr.bf16.mxu0 0
        %2196 = vmatpush1.bf16.msra.mxu0 0
        %2197 = vmatprep.subr.bf16.mxu0 0
        %2198 = vmatpush1.bf16.msra.mxu0 %v2181
        %2199 = vmatprep.subr.bf16.mxu0 0
        %2200 = vmatpush2.bf16.msra.mxu0 0
        %2201 = vmatprep.subr.bf16.mxu0 0
        %2202 = vmatpush2.bf16.msra.mxu0 0
        %2203 = vmatprep.subr.bf16.mxu0 0
        %2204 = vmatpush2.bf16.msra.mxu0 0
        %2205 = vmatprep.subr.bf16.mxu0 0
        %2206 = vmatpush2.bf16.msra.mxu0 0
        %2207 = vmatprep.subr.bf16.mxu0 0
        %2208 = vmatpush2.bf16.msra.mxu0 0
        %2209 = vmatprep.subr.bf16.mxu0 0
        %2210 = vmatpush2.bf16.msra.mxu0 0
        %2211 = vmatprep.subr.bf16.mxu0 0
        %2212 = vmatpush2.bf16.msra.mxu0 0
        %2213 = vmatprep.subr.bf16.mxu0 0
        %2214 = vmatpush2.bf16.msra.mxu0 0
        %2215 = vmatprep.mubr.bf16.mxu0 0
        %2216 = vmatmul.mubr.bf16.gmra.mxu0 %v2178
        %v2217 = vpop.f32.mrf.mxu0
        %v2218 = vadd.f32 0.0, %v2217
        %v2219 = vpop.f32.mrf.mxu0
        %v2220 = vpop.f32.mrf.mxu0
        %v2221 = vpop.f32.mrf.mxu0
        %2222 = vdwg.mxu0
        %2223 = vrot.lane.b32.xlu0 %v2001, 112
        %v2224 = vpop.permute.xlu0 %2223
        %2225 = vrot.lane.b32.xlu0 %v2002, 112
        %v2226 = vpop.permute.xlu0 %2225
        %v2228 = vsel %vm1309, %v2224, 0
        %v2231 = vsel %vm1309, %v2226, 0
        %2233 = vmatprep.subr.bf16.mxu0 0
        %2234 = vmatpush1.bf16.xpose.msra.mxu0 0
        %2235 = vmatprep.subr.bf16.mxu0 0
        %2236 = vmatpush1.bf16.xpose.msra.mxu0 0
        %2237 = vmatprep.subr.bf16.mxu0 0
        %2238 = vmatpush1.bf16.xpose.msra.mxu0 0
        %2239 = vmatprep.subr.bf16.mxu0 0
        %2240 = vmatpush1.bf16.xpose.msra.mxu0 0
        %2241 = vmatprep.subr.bf16.mxu0 0
        %2242 = vmatpush1.bf16.xpose.msra.mxu0 0
        %2243 = vmatprep.subr.bf16.mxu0 0
        %2244 = vmatpush1.bf16.xpose.msra.mxu0 0
        %2245 = vmatprep.subr.bf16.mxu0 0
        %2246 = vmatpush1.bf16.xpose.msra.mxu0 0
        %2247 = vmatprep.subr.bf16.mxu0 0
        %2248 = vmatpush1.bf16.xpose.msra.mxu0 %v2231
        %2249 = vmatprep.subr.bf16.mxu0 0
        %2250 = vmatpush2.bf16.xpose.msra.mxu0 0
        %2251 = vmatprep.subr.bf16.mxu0 0
        %2252 = vmatpush2.bf16.xpose.msra.mxu0 0
        %2253 = vmatprep.subr.bf16.mxu0 0
        %2254 = vmatpush2.bf16.xpose.msra.mxu0 0
        %2255 = vmatprep.subr.bf16.mxu0 0
        %2256 = vmatpush2.bf16.xpose.msra.mxu0 0
        %2257 = vmatprep.subr.bf16.mxu0 0
        %2258 = vmatpush2.bf16.xpose.msra.mxu0 0
        %2259 = vmatprep.subr.bf16.mxu0 0
        %2260 = vmatpush2.bf16.xpose.msra.mxu0 0
        %2261 = vmatprep.subr.bf16.mxu0 0
        %2262 = vmatpush2.bf16.xpose.msra.mxu0 0
        %2263 = vmatprep.subr.bf16.mxu0 0
        %2264 = vmatpush2.bf16.xpose.msra.mxu0 0
        %2265 = vmatprep.mubr.bf16.mxu0 0
        %2266 = vmatmul.mubr.bf16.gmra.mxu0 %v2228
        %v2267 = vpop.f32.mrf.mxu0
        %v2268 = vadd.f32 0.0, %v2267
        %v2269 = vpop.f32.mrf.mxu0
        %v2270 = vpop.f32.mrf.mxu0
        %v2271 = vpop.f32.mrf.mxu0
        %2272 = vdwg.mxu0
        %v2273 = vsel %vm2049, %v2268, -inf
        %2274 = vmax.xlane.f32.xlu0 %v2273
        %v2275 = vpop.xlane.xlu0 %2274
        %v2276 = vsub.f32 %v2268, %v2275
        %v2277 = vmul.f32 %v2276, 1.442695
        %v2278 = vpow.pop %v2277
        %v2279 = vsel %vm2049, %v2278, 0.0
        %2280 = vadd.xlane.f32.xlu0 %v2279
        %v2281 = vpop.xlane.xlu0 %2280
        %v2282 = vrcp.pop %v2281
        %v2283 = vmul.f32 %v2278, %v2282
        %v2284 = vpack.c.bf16 %v2283, %v2283
        %2285 = vrot.lane.b32.xlu0 %v2002, 80
        %v2286 = vpop.permute.xlu0 %2285
        %v2288 = vsel %vm2065, %v2284, 0
        %v2291 = vsel %vm1375, %v2286, 0
        %2293 = vmatprep.subr.bf16.mxu0 0
        %2294 = vmatpush1.bf16.msra.mxu0 0
        %2295 = vmatprep.subr.bf16.mxu0 0
        %2296 = vmatpush1.bf16.msra.mxu0 0
        %2297 = vmatprep.subr.bf16.mxu0 0
        %2298 = vmatpush1.bf16.msra.mxu0 0
        %2299 = vmatprep.subr.bf16.mxu0 0
        %2300 = vmatpush1.bf16.msra.mxu0 0
        %2301 = vmatprep.subr.bf16.mxu0 0
        %2302 = vmatpush1.bf16.msra.mxu0 0
        %2303 = vmatprep.subr.bf16.mxu0 0
        %2304 = vmatpush1.bf16.msra.mxu0 0
        %2305 = vmatprep.subr.bf16.mxu0 0
        %2306 = vmatpush1.bf16.msra.mxu0 0
        %2307 = vmatprep.subr.bf16.mxu0 0
        %2308 = vmatpush1.bf16.msra.mxu0 %v2291
        %2309 = vmatprep.subr.bf16.mxu0 0
        %2310 = vmatpush2.bf16.msra.mxu0 0
        %2311 = vmatprep.subr.bf16.mxu0 0
        %2312 = vmatpush2.bf16.msra.mxu0 0
        %2313 = vmatprep.subr.bf16.mxu0 0
        %2314 = vmatpush2.bf16.msra.mxu0 0
        %2315 = vmatprep.subr.bf16.mxu0 0
        %2316 = vmatpush2.bf16.msra.mxu0 0
        %2317 = vmatprep.subr.bf16.mxu0 0
        %2318 = vmatpush2.bf16.msra.mxu0 0
        %2319 = vmatprep.subr.bf16.mxu0 0
        %2320 = vmatpush2.bf16.msra.mxu0 0
        %2321 = vmatprep.subr.bf16.mxu0 0
        %2322 = vmatpush2.bf16.msra.mxu0 0
        %2323 = vmatprep.subr.bf16.mxu0 0
        %2324 = vmatpush2.bf16.msra.mxu0 0
        %2325 = vmatprep.mubr.bf16.mxu0 0
        %2326 = vmatmul.mubr.bf16.gmra.mxu0 %v2288
        %v2327 = vpop.f32.mrf.mxu0
        %v2328 = vadd.f32 0.0, %v2327
        %v2329 = vpop.f32.mrf.mxu0
        %v2330 = vpop.f32.mrf.mxu0
        %v2331 = vpop.f32.mrf.mxu0
        %2332 = vdwg.mxu0
        %2333 = vrot.lane.b32.xlu0 %v2001, 104
        %v2334 = vpop.permute.xlu0 %2333
        %2335 = vrot.lane.b32.xlu0 %v2002, 104
        %v2336 = vpop.permute.xlu0 %2335
        %v2338 = vsel %vm1309, %v2334, 0
        %v2341 = vsel %vm1309, %v2336, 0
        %2343 = vmatprep.subr.bf16.mxu0 0
        %2344 = vmatpush1.bf16.xpose.msra.mxu0 0
        %2345 = vmatprep.subr.bf16.mxu0 0
        %2346 = vmatpush1.bf16.xpose.msra.mxu0 0
        %2347 = vmatprep.subr.bf16.mxu0 0
        %2348 = vmatpush1.bf16.xpose.msra.mxu0 0
        %2349 = vmatprep.subr.bf16.mxu0 0
        %2350 = vmatpush1.bf16.xpose.msra.mxu0 0
        %2351 = vmatprep.subr.bf16.mxu0 0
        %2352 = vmatpush1.bf16.xpose.msra.mxu0 0
        %2353 = vmatprep.subr.bf16.mxu0 0
        %2354 = vmatpush1.bf16.xpose.msra.mxu0 0
        %2355 = vmatprep.subr.bf16.mxu0 0
        %2356 = vmatpush1.bf16.xpose.msra.mxu0 0
        %2357 = vmatprep.subr.bf16.mxu0 0
        %2358 = vmatpush1.bf16.xpose.msra.mxu0 %v2341
        %2359 = vmatprep.subr.bf16.mxu0 0
        %2360 = vmatpush2.bf16.xpose.msra.mxu0 0
        %2361 = vmatprep.subr.bf16.mxu0 0
        %2362 = vmatpush2.bf16.xpose.msra.mxu0 0
        %2363 = vmatprep.subr.bf16.mxu0 0
        %2364 = vmatpush2.bf16.xpose.msra.mxu0 0
        %2365 = vmatprep.subr.bf16.mxu0 0
        %2366 = vmatpush2.bf16.xpose.msra.mxu0 0
        %2367 = vmatprep.subr.bf16.mxu0 0
        %2368 = vmatpush2.bf16.xpose.msra.mxu0 0
        %2369 = vmatprep.subr.bf16.mxu0 0
        %2370 = vmatpush2.bf16.xpose.msra.mxu0 0
        %2371 = vmatprep.subr.bf16.mxu0 0
        %2372 = vmatpush2.bf16.xpose.msra.mxu0 0
        %2373 = vmatprep.subr.bf16.mxu0 0
        %2374 = vmatpush2.bf16.xpose.msra.mxu0 0
        %2375 = vmatprep.mubr.bf16.mxu0 0
        %2376 = vmatmul.mubr.bf16.gmra.mxu0 %v2338
        %v2377 = vpop.f32.mrf.mxu0
        %v2378 = vadd.f32 0.0, %v2377
        %v2379 = vpop.f32.mrf.mxu0
        %v2380 = vpop.f32.mrf.mxu0
        %v2381 = vpop.f32.mrf.mxu0
        %2382 = vdwg.mxu0
        %v2383 = vsel %vm2049, %v2378, -inf
        %2384 = vmax.xlane.f32.xlu0 %v2383
        %v2385 = vpop.xlane.xlu0 %2384
        %v2386 = vsub.f32 %v2378, %v2385
        %v2387 = vmul.f32 %v2386, 1.442695
        %v2388 = vpow.pop %v2387
        %v2389 = vsel %vm2049, %v2388, 0.0
        %2390 = vadd.xlane.f32.xlu0 %v2389
        %v2391 = vpop.xlane.xlu0 %2390
        %v2392 = vrcp.pop %v2391
        %v2393 = vmul.f32 %v2388, %v2392
        %v2394 = vpack.c.bf16 %v2393, %v2393
        %2395 = vrot.lane.b32.xlu0 %v2002, 72
        %v2396 = vpop.permute.xlu0 %2395
        %v2398 = vsel %vm2065, %v2394, 0
        %v2401 = vsel %vm1375, %v2396, 0
        %2403 = vmatprep.subr.bf16.mxu0 0
        %2404 = vmatpush1.bf16.msra.mxu0 0
        %2405 = vmatprep.subr.bf16.mxu0 0
        %2406 = vmatpush1.bf16.msra.mxu0 0
        %2407 = vmatprep.subr.bf16.mxu0 0
        %2408 = vmatpush1.bf16.msra.mxu0 0
        %2409 = vmatprep.subr.bf16.mxu0 0
        %2410 = vmatpush1.bf16.msra.mxu0 0
        %2411 = vmatprep.subr.bf16.mxu0 0
        %2412 = vmatpush1.bf16.msra.mxu0 0
        %2413 = vmatprep.subr.bf16.mxu0 0
        %2414 = vmatpush1.bf16.msra.mxu0 0
        %2415 = vmatprep.subr.bf16.mxu0 0
        %2416 = vmatpush1.bf16.msra.mxu0 0
        %2417 = vmatprep.subr.bf16.mxu0 0
        %2418 = vmatpush1.bf16.msra.mxu0 %v2401
        %2419 = vmatprep.subr.bf16.mxu0 0
        %2420 = vmatpush2.bf16.msra.mxu0 0
        %2421 = vmatprep.subr.bf16.mxu0 0
        %2422 = vmatpush2.bf16.msra.mxu0 0
        %2423 = vmatprep.subr.bf16.mxu0 0
        %2424 = vmatpush2.bf16.msra.mxu0 0
        %2425 = vmatprep.subr.bf16.mxu0 0
        %2426 = vmatpush2.bf16.msra.mxu0 0
        %2427 = vmatprep.subr.bf16.mxu0 0
        %2428 = vmatpush2.bf16.msra.mxu0 0
        %2429 = vmatprep.subr.bf16.mxu0 0
        %2430 = vmatpush2.bf16.msra.mxu0 0
        %2431 = vmatprep.subr.bf16.mxu0 0
        %2432 = vmatpush2.bf16.msra.mxu0 0
        %2433 = vmatprep.subr.bf16.mxu0 0
        %2434 = vmatpush2.bf16.msra.mxu0 0
        %2435 = vmatprep.mubr.bf16.mxu0 0
        %2436 = vmatmul.mubr.bf16.gmra.mxu0 %v2398
        %v2437 = vpop.f32.mrf.mxu0
        %v2438 = vadd.f32 0.0, %v2437
        %v2439 = vpop.f32.mrf.mxu0
        %v2440 = vpop.f32.mrf.mxu0
        %v2441 = vpop.f32.mrf.mxu0
        %2442 = vdwg.mxu0
        %2444 = vrot.lane.b32.xlu0 %v2218, 8
        %v2445 = vpop.permute.xlu0 %2444
        %2448 = vrot.lane.b32.xlu0 %v2328, 16
        %v2449 = vpop.permute.xlu0 %2448
        %2452 = vrot.lane.b32.xlu0 %v2438, 24
        %v2453 = vpop.permute.xlu0 %2452
        %v2455 = vsel %vm1309, %v2107, %v2445
        %v2456 = vsel %vm1765, %v2455, %v2449
        %v2457 = vsel %vm1767, %v2456, %v2453
        %v2458 = vpack.c.bf16 %v2457, %v2457
        %v2460 = vlaneseq
        %v2461 = vshrl.u32 %v2460, 7
        %v2462 = vsub.s32 0, %v2461
        %v2463 = vrot.slane %v2000, %v2462
        %v2469 = vunpack.c.l.b16 %v1996
        %v2470 = vunpack.c.l.b16 %v1997
        %v2471 = vunpack.c.l.b16 %v1998
        %v2472 = vunpack.c.l.b16 %v1999
        %v2473 = vpack.c.b16 %v2470, %v2469
        %v2474 = vpack.c.b16 %v2472, %v2471
        %v2478 = vsel %vm1256, %v2458, 0
        %2480 = vmatprep.subr.bf16.mxu0 0
        %2481 = vmatpush1.bf16.msra.mxu0 0
        %2482 = vmatprep.subr.bf16.mxu0 0
        %2483 = vmatpush1.bf16.msra.mxu0 0
        %2484 = vmatprep.subr.bf16.mxu0 0
        %2485 = vmatpush1.bf16.msra.mxu0 0
        %2486 = vmatprep.subr.bf16.mxu0 0
        %2487 = vmatpush1.bf16.msra.mxu0 0
        %2488 = vmatprep.subr.bf16.mxu0 0
        %2489 = vmatpush1.bf16.msra.mxu0 0
        %2490 = vmatprep.subr.bf16.mxu0 0
        %2491 = vmatpush1.bf16.msra.mxu0 0
        %2492 = vmatprep.subr.bf16.mxu0 0
        %2493 = vmatpush1.bf16.msra.mxu0 %v2474
        %2494 = vmatprep.subr.bf16.mxu0 0
        %2495 = vmatpush1.bf16.msra.mxu0 %v2473
        %2496 = vmatprep.subr.bf16.mxu0 0
        %2497 = vmatpush2.bf16.msra.mxu0 0
        %2498 = vmatprep.subr.bf16.mxu0 0
        %2499 = vmatpush2.bf16.msra.mxu0 0
        %2500 = vmatprep.subr.bf16.mxu0 0
        %2501 = vmatpush2.bf16.msra.mxu0 0
        %2502 = vmatprep.subr.bf16.mxu0 0
        %2503 = vmatpush2.bf16.msra.mxu0 0
        %2504 = vmatprep.subr.bf16.mxu0 0
        %2505 = vmatpush2.bf16.msra.mxu0 0
        %2506 = vmatprep.subr.bf16.mxu0 0
        %2507 = vmatpush2.bf16.msra.mxu0 0
        %2508 = vmatprep.subr.bf16.mxu0 0
        %2509 = vmatpush2.bf16.msra.mxu0 0
        %2510 = vmatprep.subr.bf16.mxu0 0
        %2511 = vmatpush2.bf16.msra.mxu0 0
        %2512 = vmatprep.mubr.bf16.mxu0 0
        %2513 = vmatmul.mubr.bf16.gmra.mxu0 %v2478
        %v2514 = vpop.f32.mrf.mxu0
        %v2515 = vadd.f32 %v2463, %v2514
        %v2516 = vpop.f32.mrf.mxu0
        %v2517 = vpop.f32.mrf.mxu0
        %v2518 = vpop.f32.mrf.mxu0
        %2519 = vdwg.mxu0
        %v2520 = vadd.f32 %v1862, %v2515
        %v2521 = vld [vmem:[%s965] sm:$0x1]
        %v2522 = vld [vmem:[%s973] sm:$0x1]
        %v2523 = vsel %vm1834, %v2520, 0.0
        %2524 = vadd.xlane.f32.xlu0 %v2523
        %v2525 = vpop.xlane.xlu0 %2524
        %v2526 = vmul.f32 %v2525, %v1838
        %v2527 = vsub.f32 %v2520, %v2526
        %v2528 = vmul.f32 %v2527, %v2527
        %v2529 = vsel %vm1834, %v2528, 0.0
        %2530 = vadd.xlane.f32.xlu0 %v2529
        %v2531 = vpop.xlane.xlu0 %2530
        %v2532 = vmul.f32 %v2531, %v1838
        %v2533 = vadd.f32 %v2532, 1e-05
        %v2534 = vrsqrt.pop %v2533
        %v2535 = vmul.f32 %v2527, %v2534
        %v2537 = vlaneseq
        %v2538 = vshrl.u32 %v2537, 7
        %v2539 = vsub.s32 0, %v2538
        %v2540 = vrot.slane %v2521, %v2539
        %v2542 = vmul.f32 %v2535, %v2540
        %v2544 = vlaneseq
        %v2545 = vshrl.u32 %v2544, 7
        %v2546 = vsub.s32 0, %v2545
        %v2547 = vrot.slane %v2522, %v2546
        %v2549 = vadd.f32 %v2542, %v2547
        %v2550 = vpack.c.bf16 %v2549, %v2549
        %v2551 = vld [vmem:[%s1205] sm:$0xff]
        %v2552 = vld [vmem:[%s1205 + $0x8] sm:$0xff]
        %v2553 = vld [vmem:[%s1205 + $0x10] sm:$0xff]
        %v2554 = vld [vmem:[%s1205 + $0x18] sm:$0xff]
        %v2555 = vld [vmem:[%s997] sm:$0x1]
        %v2557 = vlaneseq
        %v2558 = vshrl.u32 %v2557, 7
        %v2559 = vsub.s32 0, %v2558
        %v2560 = vrot.slane %v2555, %v2559
        %v2563 = vsel %vm1256, %v2550, 0
        %2565 = vmatprep.subr.mxu0 0.0
        %2566 = vmatpush1.msra.mxu0 0.0
        %2567 = vmatprep.subr.mxu0 0.0
        %2568 = vmatpush1.msra.mxu0 0.0
        %2569 = vmatprep.subr.mxu0 0.0
        %2570 = vmatpush1.msra.mxu0 0.0
        %2571 = vmatprep.subr.mxu0 0.0
        %2572 = vmatpush1.msra.mxu0 0.0
        %2573 = vmatprep.subr.mxu0 0.0
        %2574 = vmatpush1.msra.mxu0 0.0
        %2575 = vmatprep.subr.mxu0 0.0
        %2576 = vmatpush1.msra.mxu0 0.0
        %2577 = vmatprep.subr.mxu0 0.0
        %2578 = vmatpush1.msra.mxu0 0.0
        %2579 = vmatprep.subr.mxu0 0.0
        %2580 = vmatpush1.msra.mxu0 0.0
        %2581 = vmatprep.subr.mxu0 0.0
        %2582 = vmatpush1.msra.mxu0 0.0
        %2583 = vmatprep.subr.mxu0 0.0
        %2584 = vmatpush1.msra.mxu0 0.0
        %2585 = vmatprep.subr.mxu0 0.0
        %2586 = vmatpush1.msra.mxu0 0.0
        %2587 = vmatprep.subr.mxu0 0.0
        %2588 = vmatpush1.msra.mxu0 0.0
        %2589 = vmatprep.subr.mxu0 0.0
        %2590 = vmatpush1.msra.mxu0 %v2554
        %2591 = vmatprep.subr.mxu0 0.0
        %2592 = vmatpush1.msra.mxu0 %v2553
        %2593 = vmatprep.subr.mxu0 0.0
        %2594 = vmatpush1.msra.mxu0 %v2552
        %2595 = vmatprep.subr.mxu0 0.0
        %2596 = vmatpush1.msra.mxu0 %v2551
        %2597 = vmatprep.subr.mxu0 0.0
        %2598 = vmatpush2.msra.mxu0 0.0
        %2599 = vmatprep.subr.mxu0 0.0
        %2600 = vmatpush2.msra.mxu0 0.0
        %2601 = vmatprep.subr.mxu0 0.0
        %2602 = vmatpush2.msra.mxu0 0.0
        %2603 = vmatprep.subr.mxu0 0.0
        %2604 = vmatpush2.msra.mxu0 0.0
        %2605 = vmatprep.subr.mxu0 0.0
        %2606 = vmatpush2.msra.mxu0 0.0
        %2607 = vmatprep.subr.mxu0 0.0
        %2608 = vmatpush2.msra.mxu0 0.0
        %2609 = vmatprep.subr.mxu0 0.0
        %2610 = vmatpush2.msra.mxu0 0.0
        %2611 = vmatprep.subr.mxu0 0.0
        %2612 = vmatpush2.msra.mxu0 0.0
        %2613 = vmatprep.subr.mxu0 0.0
        %2614 = vmatpush2.msra.mxu0 0.0
        %2615 = vmatprep.subr.mxu0 0.0
        %2616 = vmatpush2.msra.mxu0 0.0
        %2617 = vmatprep.subr.mxu0 0.0
        %2618 = vmatpush2.msra.mxu0 0.0
        %2619 = vmatprep.subr.mxu0 0.0
        %2620 = vmatpush2.msra.mxu0 0.0
        %2621 = vmatprep.subr.mxu0 0.0
        %2622 = vmatpush2.msra.mxu0 0.0
        %2623 = vmatprep.subr.mxu0 0.0
        %2624 = vmatpush2.msra.mxu0 0.0
        %2625 = vmatprep.subr.mxu0 0.0
        %2626 = vmatpush2.msra.mxu0 0.0
        %2627 = vmatprep.subr.mxu0 0.0
        %2628 = vmatpush2.msra.mxu0 0.0
        %2629 = vmatprep.mubr.bf16.mxu0 0
        %2630 = vmatmul.mubr.bf16.gmra.mxu0 %v2563
        %v2631 = vpop.f32.mrf.mxu0
        %v2632 = vadd.f32 %v2560, %v2631
        %v2633 = vpop.f32.mrf.mxu0
        %v2634 = vpop.f32.mrf.mxu0
        %v2635 = vpop.f32.mrf.mxu0
        %2636 = vdwg.mxu0
        %v2637 = vmax.f32 %v2632, 0.0
        %v2638 = vpack.c.bf16 %v2637, %v2637
        %v2639 = vld [vmem:[%s1210] sm:$0xff]
        %v2640 = vld [vmem:[%s1210 + $0x8] sm:$0xff]
        %v2641 = vld [vmem:[%s1210 + $0x10] sm:$0xff]
        %v2642 = vld [vmem:[%s1210 + $0x18] sm:$0xff]
        %v2643 = vld [vmem:[%s1210 + $0x20] sm:$0xff]
        %v2644 = vld [vmem:[%s1210 + $0x28] sm:$0xff]
        %v2645 = vld [vmem:[%s1210 + $0x30] sm:$0xff]
        %v2646 = vld [vmem:[%s1210 + $0x38] sm:$0xff]
        %v2647 = vld [vmem:[%s1005] sm:$0x1]
        %v2649 = vlaneseq
        %v2650 = vshrl.u32 %v2649, 7
        %v2651 = vsub.s32 0, %v2650
        %v2652 = vrot.slane %v2647, %v2651
        %vm2654 = vcmask 523264
        %v2656 = vsel %vm2654, %v2638, 0
        %2658 = vmatprep.subr.mxu0 0.0
        %2659 = vmatpush1.msra.mxu0 0.0
        %2660 = vmatprep.subr.mxu0 0.0
        %2661 = vmatpush1.msra.mxu0 0.0
        %2662 = vmatprep.subr.mxu0 0.0
        %2663 = vmatpush1.msra.mxu0 0.0
        %2664 = vmatprep.subr.mxu0 0.0
        %2665 = vmatpush1.msra.mxu0 0.0
        %2666 = vmatprep.subr.mxu0 0.0
        %2667 = vmatpush1.msra.mxu0 0.0
        %2668 = vmatprep.subr.mxu0 0.0
        %2669 = vmatpush1.msra.mxu0 0.0
        %2670 = vmatprep.subr.mxu0 0.0
        %2671 = vmatpush1.msra.mxu0 0.0
        %2672 = vmatprep.subr.mxu0 0.0
        %2673 = vmatpush1.msra.mxu0 0.0
        %2674 = vmatprep.subr.mxu0 0.0
        %2675 = vmatpush1.msra.mxu0 %v2646
        %2676 = vmatprep.subr.mxu0 0.0
        %2677 = vmatpush1.msra.mxu0 %v2645
        %2678 = vmatprep.subr.mxu0 0.0
        %2679 = vmatpush1.msra.mxu0 %v2644
        %2680 = vmatprep.subr.mxu0 0.0
        %2681 = vmatpush1.msra.mxu0 %v2643
        %2682 = vmatprep.subr.mxu0 0.0
        %2683 = vmatpush1.msra.mxu0 %v2642
        %2684 = vmatprep.subr.mxu0 0.0
        %2685 = vmatpush1.msra.mxu0 %v2641
        %2686 = vmatprep.subr.mxu0 0.0
        %2687 = vmatpush1.msra.mxu0 %v2640
        %2688 = vmatprep.subr.mxu0 0.0
        %2689 = vmatpush1.msra.mxu0 %v2639
        %2690 = vmatprep.subr.mxu0 0.0
        %2691 = vmatpush2.msra.mxu0 0.0
        %2692 = vmatprep.subr.mxu0 0.0
        %2693 = vmatpush2.msra.mxu0 0.0
        %2694 = vmatprep.subr.mxu0 0.0
        %2695 = vmatpush2.msra.mxu0 0.0
        %2696 = vmatprep.subr.mxu0 0.0
        %2697 = vmatpush2.msra.mxu0 0.0
        %2698 = vmatprep.subr.mxu0 0.0
        %2699 = vmatpush2.msra.mxu0 0.0
        %2700 = vmatprep.subr.mxu0 0.0
        %2701 = vmatpush2.msra.mxu0 0.0
        %2702 = vmatprep.subr.mxu0 0.0
        %2703 = vmatpush2.msra.mxu0 0.0
        %2704 = vmatprep.subr.mxu0 0.0
        %2705 = vmatpush2.msra.mxu0 0.0
        %2706 = vmatprep.subr.mxu0 0.0
        %2707 = vmatpush2.msra.mxu0 0.0
        %2708 = vmatprep.subr.mxu0 0.0
        %2709 = vmatpush2.msra.mxu0 0.0
        %2710 = vmatprep.subr.mxu0 0.0
        %2711 = vmatpush2.msra.mxu0 0.0
        %2712 = vmatprep.subr.mxu0 0.0
        %2713 = vmatpush2.msra.mxu0 0.0
        %2714 = vmatprep.subr.mxu0 0.0
        %2715 = vmatpush2.msra.mxu0 0.0
        %2716 = vmatprep.subr.mxu0 0.0
        %2717 = vmatpush2.msra.mxu0 0.0
        %2718 = vmatprep.subr.mxu0 0.0
        %2719 = vmatpush2.msra.mxu0 0.0
        %2720 = vmatprep.subr.mxu0 0.0
        %2721 = vmatpush2.msra.mxu0 0.0
        %2722 = vmatprep.mubr.bf16.mxu0 0
        %2723 = vmatmul.mubr.bf16.gmra.mxu0 %v2656
        %v2724 = vpop.f32.mrf.mxu0
        %v2725 = vadd.f32 %v2652, %v2724
        %v2726 = vpop.f32.mrf.mxu0
        %v2727 = vpop.f32.mrf.mxu0
        %v2728 = vpop.f32.mrf.mxu0
        %2729 = vdwg.mxu0
        %v2730 = vadd.f32 %v2549, %v2725
        %v2731 = vld [vmem:[%s981] sm:$0x1]
        %v2732 = vld [vmem:[%s989] sm:$0x1]
        %v2733 = vsel %vm1834, %v2730, 0.0
        %2734 = vadd.xlane.f32.xlu0 %v2733
        %v2735 = vpop.xlane.xlu0 %2734
        %v2736 = vmul.f32 %v2735, %v1838
        %v2737 = vsub.f32 %v2730, %v2736
        %v2738 = vmul.f32 %v2737, %v2737
        %v2739 = vsel %vm1834, %v2738, 0.0
        %2740 = vadd.xlane.f32.xlu0 %v2739
        %v2741 = vpop.xlane.xlu0 %2740
        %v2742 = vmul.f32 %v2741, %v1838
        %v2743 = vadd.f32 %v2742, 1e-05
        %v2744 = vrsqrt.pop %v2743
        %v2745 = vmul.f32 %v2737, %v2744
        %v2747 = vlaneseq
        %v2748 = vshrl.u32 %v2747, 7
        %v2749 = vsub.s32 0, %v2748
        %v2750 = vrot.slane %v2731, %v2749
        %v2752 = vmul.f32 %v2745, %v2750
        %v2754 = vlaneseq
        %v2755 = vshrl.u32 %v2754, 7
        %v2756 = vsub.s32 0, %v2755
        %v2757 = vrot.slane %v2732, %v2756
        %v2759 = vadd.f32 %v2752, %v2757
        %2760 = vst.msk [vmem:[#allocation2] sm:$0x7f] %vm1834, %v2759
        %p2761 = scmp.eq.s32.totalorder %s52, 1
        // Predicated region
        $region149: #{tpu_custom_call.1} parent=115 // pred_check
          %p2762 = pneg %p2761
        $region150: #{tpu_custom_call.1} parent=115 // pred_check_branch
          %2764 = sbr.rel (%p2762) target = $region152
        $region151: #{tpu_custom_call.1} parent=115 // pred_region
          %v2765 = vpack.c.bf16 %v2759, %v2759
          %v2766 = vld [vmem:[%s22] sm:$0xf]
          %v2767 = vld [vmem:[%s22 + $0x4] sm:$0xf]
          %v2768 = vld [vmem:[%s22 + $0x8] sm:$0xf]
          %v2769 = vld [vmem:[%s22 + $0xc] sm:$0xf]
          %v2770 = vld [vmem:[%s23] sm:$0x1]
          %v2772 = vlaneseq
          %v2773 = vshrl.u32 %v2772, 7
          %v2774 = vsub.s32 0, %v2773
          %v2775 = vrot.slane %v2770, %v2774
          %v2781 = vunpack.c.l.b16 %v2766
          %v2782 = vunpack.c.l.b16 %v2767
          %v2783 = vunpack.c.l.b16 %v2768
          %v2784 = vunpack.c.l.b16 %v2769
          %v2785 = vpack.c.b16 %v2782, %v2781
          %v2786 = vpack.c.b16 %v2784, %v2783
          %v2790 = vsel %vm1256, %v2765, 0
          %2792 = vmatprep.subr.bf16.mxu0 0
          %2793 = vmatpush1.bf16.msra.mxu0 0
          %2794 = vmatprep.subr.bf16.mxu0 0
          %2795 = vmatpush1.bf16.msra.mxu0 0
          %2796 = vmatprep.subr.bf16.mxu0 0
          %2797 = vmatpush1.bf16.msra.mxu0 0
          %2798 = vmatprep.subr.bf16.mxu0 0
          %2799 = vmatpush1.bf16.msra.mxu0 0
          %2800 = vmatprep.subr.bf16.mxu0 0
          %2801 = vmatpush1.bf16.msra.mxu0 0
          %2802 = vmatprep.subr.bf16.mxu0 0
          %2803 = vmatpush1.bf16.msra.mxu0 0
          %2804 = vmatprep.subr.bf16.mxu0 0
          %2805 = vmatpush1.bf16.msra.mxu0 %v2786
          %2806 = vmatprep.subr.bf16.mxu0 0
          %2807 = vmatpush1.bf16.msra.mxu0 %v2785
          %2808 = vmatprep.subr.bf16.mxu0 0
          %2809 = vmatpush2.bf16.msra.mxu0 0
          %2810 = vmatprep.subr.bf16.mxu0 0
          %2811 = vmatpush2.bf16.msra.mxu0 0
          %2812 = vmatprep.subr.bf16.mxu0 0
          %2813 = vmatpush2.bf16.msra.mxu0 0
          %2814 = vmatprep.subr.bf16.mxu0 0
          %2815 = vmatpush2.bf16.msra.mxu0 0
          %2816 = vmatprep.subr.bf16.mxu0 0
          %2817 = vmatpush2.bf16.msra.mxu0 0
          %2818 = vmatprep.subr.bf16.mxu0 0
          %2819 = vmatpush2.bf16.msra.mxu0 0
          %2820 = vmatprep.subr.bf16.mxu0 0
          %2821 = vmatpush2.bf16.msra.mxu0 0
          %2822 = vmatprep.subr.bf16.mxu0 0
          %2823 = vmatpush2.bf16.msra.mxu0 0
          %2824 = vmatprep.mubr.bf16.mxu0 0
          %2825 = vmatmul.mubr.bf16.gmra.mxu0 %v2790
          %v2826 = vpop.f32.mrf.mxu0
          %v2827 = vadd.f32 %v2775, %v2826
          %v2828 = vpop.f32.mrf.mxu0
          %v2829 = vpop.f32.mrf.mxu0
          %v2830 = vpop.f32.mrf.mxu0
          %2831 = vdwg.mxu0
          %2832 = vst [vmem:[%s1214] sm:$0x7f] %v2827
        $region152: #{tpu_custom_call.1} parent=115 // pred_fallthru
          _
        %p2833 = scmp.lt.s32.totalorder %s51, 1
        %s2834 = scalar_select %p2833, %s51, 1
        %s2835 = smul.addr %s2834, 8
        %s2836 = scalar_lea.vmem %s24, %s2835
        // Predicated region
        $region153: #{tpu_custom_call.1} parent=115 // pred_check
          %p2837 = pneg %p691
        $region154: #{tpu_custom_call.1} parent=115 // pred_check_branch
          %2839 = sbr.rel (%p2837) target = $region156
        $region155: #{tpu_custom_call.1} parent=115 // pred_region
          _
        $region156: #{tpu_custom_call.1} parent=115 // pred_fallthru
          _
      $region116: #{tpu_custom_call.1} parent=5 // pred_fallthru
        _
      %p2840 = scmp.le.s32.totalorder 2, %s42
      // Predicated region
      $region157: #{tpu_custom_call.1} parent=5 // pred_check
        %p2841 = pneg %p2840
      $region158: #{tpu_custom_call.1} parent=5 // pred_check_branch
        %2843 = sbr.rel (%p2841) target = $region160
      $region159: #{tpu_custom_call.1} parent=5 // pred_region
        %s2844 = ssub.s32 %s42, 2
        // Predicated region
        $region161: #{tpu_custom_call.1} parent=159 // pred_check
          %p2845 = pneg %p697
        $region162: #{tpu_custom_call.1} parent=159 // pred_check_branch
          %2847 = sbr.rel (%p2845) target = $region164
        $region163: #{tpu_custom_call.1} parent=159 // pred_region
          %p2848 = scmp.lt.s32.totalorder %s53, 1
          %s2849 = scalar_select %p2848, %s53, 1
          %s2850 = smul.addr %s2849, 8
          %s2851 = scalar_lea.vmem %s24, %s2850
        $region164: #{tpu_custom_call.1} parent=159 // pred_fallthru
          _
      $region160: #{tpu_custom_call.1} parent=5 // pred_fallthru
        _
    $region6: #{tpu_custom_call.1} parent=1 // loop_footer
      %s46 = sadd.s32 1, %s42
    $region7: #{tpu_custom_call.1} parent=1 // loop_footer_branch
      %41 = sbr.rel target = $region3
    $region8: #{tpu_custom_call.1} parent=1 // loop_exit
      _
    %2852 = vsyncpa [#allocation4], 1
    %s2853 = scalar_lea.sflag [#allocation4], 1
    %2854 = vsyncpa %s2853, 1
    %2855 = vsyncpa [#allocation6], 1
    %s2856 = scalar_lea.sflag [#allocation6], 1
    %2857 = vsyncpa %s2856, 1
    %2858 = vsyncpa [#allocation9], 1
    %s2859 = scalar_lea.sflag [#allocation9], 1
    %2860 = vsyncpa %s2859, 1
    %2861 = vsyncpa [#allocation12], 1
    %s2862 = scalar_lea.sflag [#allocation12], 1
    %2863 = vsyncpa %s2862, 1

</llo_original>
